<compile_context>
chip_gen: v6e
topology: v6e:2x2x1
jax: 0.10.0
libtpu: 0.0.40
codegen_flags: <defaults>
</compile_context>

<pallas_src>
import functools

import jax
import jax.numpy as jnp
from jax import lax
from jax.experimental import pallas as pl
from jax.experimental.pallas import tpu as pltpu


# ----------------------------------------------------------------------------- kernel
def _history_encoder_kernel(*refs, H, W, dims):
    """Fused 4-layer conv3x3(pad=1) + folded-BN (+ReLU) for one batch element.

    refs layout (inputs, then outputs, then scratch):
      refs[0]                     x_ref    (1, cin0, H*W)        f32  (NCHW flattened)
      refs[1+2i], refs[2+2i]      w_i      (9, cout_i, cin_i)    (BN scale folded in)
                                  shift_i  (cout_i, 1)
      refs[1+2L]                  o_ref    (1, cout_last, H*W)
      refs[2+2L]                  pad_ref  (Cmax, (H+2)*W + 2)   VMEM scratch (flat padded act)
    """
    n_layers = len(dims) - 1
    x_ref = refs[0]
    layer_refs = refs[1:1 + 2 * n_layers]
    o_ref = refs[1 + 2 * n_layers]
    pad_ref = refs[2 + 2 * n_layers]

    HW = H * W
    OFF = W + 1  # activation interior starts after one zero pad row + one zero lane

    # Column-validity masks over the flattened H*W lane axis (indexed by OUTPUT position).
    # Vertical out-of-bounds taps read the zero pad rows; horizontal OOB taps (including the
    # corner cases that wrap back into the activation region) are zeroed by these masks.
    col = lax.broadcasted_iota(jnp.int32, (1, HW), 1) % W
    not_left = col != 0          # tap reads w-1: invalid at w == 0
    not_right = col != (W - 1)   # tap reads w+1: invalid at w == W-1

    # Re-zero the flat padded scratch every step (only ~6 vector stores). Scratch persists
    # across grid iterations but a one-time init would break under megacore grid splitting.
    pad_ref[...] = jnp.zeros_like(pad_ref)

    a = x_ref[0].astype(jnp.float32)  # (cin0, HW): channels on sublanes, HW lane-dense
    for li in range(n_layers):
        cin, cout = dims[li], dims[li + 1]
        w_ref = layer_refs[2 * li]       # (9, cout, cin), BN scale folded in
        s_ref = layer_refs[2 * li + 1]   # (cout, 1)

        # Current activation into the interior of the zero-padded flat scratch.
        # (Rows [cin:Cmax] may hold stale data from wider layers; they are never read.)
        pad_ref[:cin, OFF:OFF + HW] = a

        # 3x3 conv as 9 accumulated MXU dots over contiguous lane-offset tap reads.
        acc = jnp.zeros((cout, HW), jnp.float32)
        for dy in range(3):
            for dx in range(3):
                k = dy * 3 + dx
                start = OFF + (dy - 1) * W + (dx - 1)          # static, in-bounds slice
                tap = pad_ref[:cin, start:start + HW]           # (cin, HW)
                if dx == 0:
                    tap = jnp.where(not_left, tap, 0.0)
                elif dx == 2:
                    tap = jnp.where(not_right, tap, 0.0)
                acc = acc + jnp.dot(w_ref[k], tap,
                                    preferred_element_type=jnp.float32)

        y = acc + s_ref[...]              # folded-BN shift epilogue
        if li < n_layers - 1:             # last block is Conv+BN with no ReLU
            y = jnp.maximum(y, 0.0)
        a = y                             # stays on-chip across all four layers

    o_ref[0] = a.astype(o_ref.dtype)      # (cout_last, HW): lane-dense NCHW-native store


# ----------------------------------------------------------------------------- wrapper
def history_encoder_forward(x_nchw, params):
    """NCHW input/output. The kernel runs channel-major with H*W on the lane axis."""
    x = x_nchw.astype(jnp.float32)
    N, cin0, H, W = x.shape
    HW = H * W
    x_flat = x.reshape(N, cin0, HW)       # flatten only (free); no NCHW->NHWC transpose

    dims = [int(cin0)] + [int(p["w"].shape[-1]) for p in params]
    cmax = max(dims[:-1])                 # widest *input* channel count across layers
    cout_last = dims[-1]
    padl = (H + 2) * W + 2                # flat padded-activation length

    flat_inputs = [x_flat]
    in_specs = [pl.BlockSpec((1, cin0, HW), lambda n: (n, 0, 0))]
    for p in params:
        kh, kw, cin, cout = p["w"].shape
        # Fold BN scale and pre-transpose: HWIO (3,3,cin,cout) -> (9, cout, cin).
        w_fold = (p["w"] * p["scale"]).reshape(kh * kw, cin, cout)
        w_t = jnp.transpose(w_fold, (0, 2, 1)).astype(jnp.float32)
        shift = p["shift"].reshape(cout, 1).astype(jnp.float32)
        flat_inputs += [w_t, shift]
        in_specs += [pl.BlockSpec(w_t.shape, lambda n: (0, 0, 0)),
                     pl.BlockSpec(shift.shape, lambda n: (0, 0))]

    kernel = functools.partial(_history_encoder_kernel, H=H, W=W, dims=tuple(dims))

    out_flat = pl.pallas_call(
        kernel,
        out_shape=jax.ShapeDtypeStruct((N, cout_last, HW), jnp.float32),
        grid_spec=pltpu.PrefetchScalarGridSpec(
            num_scalar_prefetch=0,
            grid=(N,),
            in_specs=in_specs,
            out_specs=pl.BlockSpec((1, cout_last, HW), lambda n: (n, 0, 0)),
            scratch_shapes=[
                pltpu.VMEM((cmax, padl), jnp.float32),   # flat zero-padded activation
            ],
        ),
        compiler_params=pltpu.CompilerParams(
            dimension_semantics=("parallel",)),
    )(*flat_inputs)

    return out_flat.reshape(N, cout_last, H, W)   # metadata-only reshape, no transpose


# --------------------------------------------------------------------------- parameters
def init_history_encoder_params(key, in_channels, out_channels, hidden_dim):
    """Deterministic init mimicking the PyTorch module's _init_weights.

    Conv2d: kaiming_normal_(fan_out, relu) -> std = sqrt(2 / (Cout*3*3)), bias = 0.
    BatchNorm2d (inference): gamma=1, beta=0, running_mean=0, running_var=1, eps=1e-5.
    Weights stored HWIO; BN folded into (scale, shift).
    """
    dims = [in_channels, hidden_dim, hidden_dim // 2, hidden_dim // 4, out_channels]
    eps = 1e-5
    params = []
    for i in range(4):
        cin, cout = dims[i], dims[i + 1]
        key, sub = jax.random.split(key)
        std = (2.0 / (cout * 3 * 3)) ** 0.5
        w = jax.random.normal(sub, (3, 3, cin, cout), jnp.float32) * std
        conv_bias = jnp.zeros((cout,), jnp.float32)
        gamma = jnp.ones((cout,), jnp.float32)
        beta = jnp.zeros((cout,), jnp.float32)
        running_mean = jnp.zeros((cout,), jnp.float32)
        running_var = jnp.ones((cout,), jnp.float32)
        scale = gamma / jnp.sqrt(running_var + eps)
        shift = (conv_bias - running_mean) * scale + beta
        params.append({"w": w, "scale": scale, "shift": shift})
    return params


# --------------------------------------------------------------------------- reference
def _reference_forward(x_nchw, params):
    x = x_nchw.astype(jnp.float32)
    n_layers = len(params)
    for i, p in enumerate(params):
        y = lax.conv_general_dilated(
            x, p["w"], window_strides=(1, 1), padding="SAME",
            dimension_numbers=("NCHW", "HWIO", "NCHW"))
        y = y * p["scale"][None, :, None, None] + p["shift"][None, :, None, None]
        if i < n_layers - 1:
            y = jnp.maximum(y, 0.0)
        x = y
    return x


if __name__ == "__main__":
    # Small shapes consistent with the module: seq_length=4 RGB frames -> in_channels=12.
    batch, in_channels, out_channels, hidden_dim, H, W = 2, 12, 3, 16, 16, 16

    key = jax.random.PRNGKey(0)
    key, xkey = jax.random.split(key)
    x = jax.random.normal(xkey, (batch, in_channels, H, W), jnp.float32)  # NCHW

    params = init_history_encoder_params(key, in_channels, out_channels, hidden_dim)

    out = history_encoder_forward(x, params)
    out = jax.block_until_ready(out)
    assert out.shape == (batch, out_channels, H, W), out.shape

    ref = jax.block_until_ready(_reference_forward(x, params))
    assert jnp.allclose(out, ref, atol=1e-4, rtol=1e-4), "mismatch vs reference"

    print("KERNEL_OK")
</pallas_src>

<mosaic_0001>
module attributes {stable_mosaic.version = 11 : i64} {
  func.func @_history_encoder_kernel(%arg0: i32, %arg1: memref<1x12x256xf32, #tpu.memory_space<vmem>>, %arg2: memref<9x16x12xf32, #tpu.memory_space<vmem>>, %arg3: memref<16x1xf32, #tpu.memory_space<vmem>>, %arg4: memref<9x8x16xf32, #tpu.memory_space<vmem>>, %arg5: memref<8x1xf32, #tpu.memory_space<vmem>>, %arg6: memref<9x4x8xf32, #tpu.memory_space<vmem>>, %arg7: memref<4x1xf32, #tpu.memory_space<vmem>>, %arg8: memref<9x3x4xf32, #tpu.memory_space<vmem>>, %arg9: memref<3x1xf32, #tpu.memory_space<vmem>>, %arg10: memref<1x3x256xf32, #tpu.memory_space<vmem>>, %arg11: memref<16x290xf32, #tpu.memory_space<vmem>>) attributes {dimension_semantics = [#tpu.dimension_semantics<parallel>], iteration_bounds = array<i64: 2>, scalar_prefetch = 0 : i64, scratch_operands = 1 : i64, tpu.core_type = #tpu.core_type<tc>, window_params = [{transform_indices = @transform_0, window_bounds = array<i64: 1, 12, 256>}, {pipeline_mode = #tpu.pipeline_mode<synchronous>, transform_indices = @transform_1, window_bounds = array<i64: 9, 16, 12>}, {pipeline_mode = #tpu.pipeline_mode<synchronous>, transform_indices = @transform_2, window_bounds = array<i64: 16, 1>}, {pipeline_mode = #tpu.pipeline_mode<synchronous>, transform_indices = @transform_3, window_bounds = array<i64: 9, 8, 16>}, {pipeline_mode = #tpu.pipeline_mode<synchronous>, transform_indices = @transform_4, window_bounds = array<i64: 8, 1>}, {pipeline_mode = #tpu.pipeline_mode<synchronous>, transform_indices = @transform_5, window_bounds = array<i64: 9, 4, 8>}, {pipeline_mode = #tpu.pipeline_mode<synchronous>, transform_indices = @transform_6, window_bounds = array<i64: 4, 1>}, {pipeline_mode = #tpu.pipeline_mode<synchronous>, transform_indices = @transform_7, window_bounds = array<i64: 9, 3, 4>}, {pipeline_mode = #tpu.pipeline_mode<synchronous>, transform_indices = @transform_8, window_bounds = array<i64: 3, 1>}, {transform_indices = @transform_9, window_bounds = array<i64: 1, 3, 256>}]} {
    %0 = tpu.iota {dimensions = array<i32: 1>} : vector<1x256xi32>
    %c16_i32 = arith.constant 16 : i32
    %c0_i32 = arith.constant 0 : i32
    %1 = arith.cmpi eq, %c16_i32, %c0_i32 : i32
    %c1_i32 = arith.constant 1 : i32
    %2 = arith.select %1, %c1_i32, %c16_i32 : i32
    %3 = vector.broadcast %2 : i32 to vector<1x256xi32>
    %4 = arith.remsi %0, %3 : vector<1x256xi32>
    %c0_i32_0 = arith.constant 0 : i32
    %5 = vector.broadcast %c0_i32_0 : i32 to vector<1x256xi32>
    %6 = arith.cmpi ne, %4, %5 : vector<1x256xi32>
    %c0_i32_1 = arith.constant 0 : i32
    %7 = vector.broadcast %c0_i32_1 : i32 to vector<1x256xi32>
    %8 = arith.cmpi slt, %4, %7 : vector<1x256xi32>
    %c0_i32_2 = arith.constant 0 : i32
    %9 = arith.cmpi slt, %2, %c0_i32_2 : i32
    %10 = vector.broadcast %9 : i1 to vector<1x256xi1>
    %11 = vector.broadcast %10 : vector<1x256xi1> to vector<1x256xi1>
    %12 = arith.xori %8, %11 : vector<1x256xi1>
    %13 = arith.andi %12, %6 : vector<1x256xi1>
    %14 = vector.broadcast %2 : i32 to vector<1x256xi32>
    %15 = arith.addi %4, %14 : vector<1x256xi32>
    %16 = arith.select %13, %15, %4 : vector<1x256xi1>, vector<1x256xi32>
    %c0_i32_3 = arith.constant 0 : i32
    %17 = vector.broadcast %c0_i32_3 : i32 to vector<1x256xi32>
    %18 = arith.cmpi ne, %16, %17 : vector<1x256xi32>
    %c15_i32 = arith.constant 15 : i32
    %19 = vector.broadcast %c15_i32 : i32 to vector<1x256xi32>
    %20 = arith.cmpi ne, %16, %19 : vector<1x256xi32>
    %cst = arith.constant 0.000000e+00 : f32
    %21 = vector.broadcast %cst : f32 to vector<16x290xf32>
    %c0 = arith.constant 0 : index
    %c0_4 = arith.constant 0 : index
    %22 = vector.load %arg11[%c0, %c0_4] : memref<16x290xf32, #tpu.memory_space<vmem>>, vector<16x290xf32>
    tpu.vector_store %arg11[%c0, %c0_4], %21 {strides = array<i32>} : memref<16x290xf32, #tpu.memory_space<vmem>>, vector<16x290xf32>,
    %c0_5 = arith.constant 0 : index
    %c0_6 = arith.constant 0 : index
    %c0_7 = arith.constant 0 : index
    %23 = vector.load %arg1[%c0_5, %c0_6, %c0_7] : memref<1x12x256xf32, #tpu.memory_space<vmem>>, vector<1x12x256xf32>
    %24 = vector.shape_cast %23 : vector<1x12x256xf32> to vector<12x256xf32>
    %c0_8 = arith.constant 0 : index
    %c17 = arith.constant 17 : index
    %25 = vector.load %arg11[%c0_8, %c17] : memref<16x290xf32, #tpu.memory_space<vmem>>, vector<12x256xf32>
    tpu.vector_store %arg11[%c0_8, %c17], %24 {strides = array<i32>} : memref<16x290xf32, #tpu.memory_space<vmem>>, vector<12x256xf32>,
    %cst_9 = arith.constant 0.000000e+00 : f32
    %26 = vector.broadcast %cst_9 : f32 to vector<16x256xf32>
    %c0_10 = arith.constant 0 : index
    %c0_11 = arith.constant 0 : index
    %27 = vector.load %arg11[%c0_10, %c0_11] : memref<16x290xf32, #tpu.memory_space<vmem>>, vector<12x256xf32>
    %cst_12 = arith.constant 0.000000e+00 : f32
    %28 = vector.shape_cast %18 : vector<1x256xi1> to vector<1x256xi1>
    %29 = vector.broadcast %28 : vector<1x256xi1> to vector<12x256xi1>
    %30 = vector.broadcast %cst_12 : f32 to vector<12x256xf32>
    %31 = arith.select %29, %27, %30 : vector<12x256xi1>, vector<12x256xf32>
    %c0_13 = arith.constant 0 : index
    %c0_14 = arith.constant 0 : index
    %c0_15 = arith.constant 0 : index
    %32 = vector.load %arg2[%c0_13, %c0_14, %c0_15] : memref<9x16x12xf32, #tpu.memory_space<vmem>>, vector<1x16x12xf32>
    %33 = vector.shape_cast %32 : vector<1x16x12xf32> to vector<16x12xf32>
    %cst_16 = arith.constant dense<0.000000e+00> : vector<16x256xf32>
    %34 = tpu.matmul %33, %31, %cst_16 {dimension_numbers = #tpu.dot_dimension_numbers<[1], [0], [0], [1], [0, 0, 1, 1], [], []>} : vector<16x12xf32>, vector<12x256xf32>, vector<16x256xf32> -> vector<16x256xf32>
    %35 = arith.addf %26, %34 : vector<16x256xf32>
    %c0_17 = arith.constant 0 : index
    %c1 = arith.constant 1 : index
    %36 = vector.load %arg11[%c0_17, %c1] : memref<16x290xf32, #tpu.memory_space<vmem>>, vector<12x256xf32>
    %c1_18 = arith.constant 1 : index
    %c0_19 = arith.constant 0 : index
    %c0_20 = arith.constant 0 : index
    %37 = vector.load %arg2[%c1_18, %c0_19, %c0_20] : memref<9x16x12xf32, #tpu.memory_space<vmem>>, vector<1x16x12xf32>
    %38 = vector.shape_cast %37 : vector<1x16x12xf32> to vector<16x12xf32>
    %cst_21 = arith.constant dense<0.000000e+00> : vector<16x256xf32>
    %39 = tpu.matmul %38, %36, %cst_21 {dimension_numbers = #tpu.dot_dimension_numbers<[1], [0], [0], [1], [0, 0, 1, 1], [], []>} : vector<16x12xf32>, vector<12x256xf32>, vector<16x256xf32> -> vector<16x256xf32>
    %40 = arith.addf %35, %39 : vector<16x256xf32>
    %c0_22 = arith.constant 0 : index
    %c2 = arith.constant 2 : index
    %41 = vector.load %arg11[%c0_22, %c2] : memref<16x290xf32, #tpu.memory_space<vmem>>, vector<12x256xf32>
    %cst_23 = arith.constant 0.000000e+00 : f32
    %42 = vector.shape_cast %20 : vector<1x256xi1> to vector<1x256xi1>
    %43 = vector.broadcast %42 : vector<1x256xi1> to vector<12x256xi1>
    %44 = vector.broadcast %cst_23 : f32 to vector<12x256xf32>
    %45 = arith.select %43, %41, %44 : vector<12x256xi1>, vector<12x256xf32>
    %c2_24 = arith.constant 2 : index
    %c0_25 = arith.constant 0 : index
    %c0_26 = arith.constant 0 : index
    %46 = vector.load %arg2[%c2_24, %c0_25, %c0_26] : memref<9x16x12xf32, #tpu.memory_space<vmem>>, vector<1x16x12xf32>
    %47 = vector.shape_cast %46 : vector<1x16x12xf32> to vector<16x12xf32>
    %cst_27 = arith.constant dense<0.000000e+00> : vector<16x256xf32>
    %48 = tpu.matmul %47, %45, %cst_27 {dimension_numbers = #tpu.dot_dimension_numbers<[1], [0], [0], [1], [0, 0, 1, 1], [], []>} : vector<16x12xf32>, vector<12x256xf32>, vector<16x256xf32> -> vector<16x256xf32>
    %49 = arith.addf %40, %48 : vector<16x256xf32>
    %c0_28 = arith.constant 0 : index
    %c16 = arith.constant 16 : index
    %50 = vector.load %arg11[%c0_28, %c16] : memref<16x290xf32, #tpu.memory_space<vmem>>, vector<12x256xf32>
    %cst_29 = arith.constant 0.000000e+00 : f32
    %51 = vector.shape_cast %18 : vector<1x256xi1> to vector<1x256xi1>
    %52 = vector.broadcast %51 : vector<1x256xi1> to vector<12x256xi1>
    %53 = vector.broadcast %cst_29 : f32 to vector<12x256xf32>
    %54 = arith.select %52, %50, %53 : vector<12x256xi1>, vector<12x256xf32>
    %c3 = arith.constant 3 : index
    %c0_30 = arith.constant 0 : index
    %c0_31 = arith.constant 0 : index
    %55 = vector.load %arg2[%c3, %c0_30, %c0_31] : memref<9x16x12xf32, #tpu.memory_space<vmem>>, vector<1x16x12xf32>
    %56 = vector.shape_cast %55 : vector<1x16x12xf32> to vector<16x12xf32>
    %cst_32 = arith.constant dense<0.000000e+00> : vector<16x256xf32>
    %57 = tpu.matmul %56, %54, %cst_32 {dimension_numbers = #tpu.dot_dimension_numbers<[1], [0], [0], [1], [0, 0, 1, 1], [], []>} : vector<16x12xf32>, vector<12x256xf32>, vector<16x256xf32> -> vector<16x256xf32>
    %58 = arith.addf %49, %57 : vector<16x256xf32>
    %c0_33 = arith.constant 0 : index
    %c17_34 = arith.constant 17 : index
    %59 = vector.load %arg11[%c0_33, %c17_34] : memref<16x290xf32, #tpu.memory_space<vmem>>, vector<12x256xf32>
    %c4 = arith.constant 4 : index
    %c0_35 = arith.constant 0 : index
    %c0_36 = arith.constant 0 : index
    %60 = vector.load %arg2[%c4, %c0_35, %c0_36] : memref<9x16x12xf32, #tpu.memory_space<vmem>>, vector<1x16x12xf32>
    %61 = vector.shape_cast %60 : vector<1x16x12xf32> to vector<16x12xf32>
    %cst_37 = arith.constant dense<0.000000e+00> : vector<16x256xf32>
    %62 = tpu.matmul %61, %59, %cst_37 {dimension_numbers = #tpu.dot_dimension_numbers<[1], [0], [0], [1], [0, 0, 1, 1], [], []>} : vector<16x12xf32>, vector<12x256xf32>, vector<16x256xf32> -> vector<16x256xf32>
    %63 = arith.addf %58, %62 : vector<16x256xf32>
    %c0_38 = arith.constant 0 : index
    %c18 = arith.constant 18 : index
    %64 = vector.load %arg11[%c0_38, %c18] : memref<16x290xf32, #tpu.memory_space<vmem>>, vector<12x256xf32>
    %cst_39 = arith.constant 0.000000e+00 : f32
    %65 = vector.shape_cast %20 : vector<1x256xi1> to vector<1x256xi1>
    %66 = vector.broadcast %65 : vector<1x256xi1> to vector<12x256xi1>
    %67 = vector.broadcast %cst_39 : f32 to vector<12x256xf32>
    %68 = arith.select %66, %64, %67 : vector<12x256xi1>, vector<12x256xf32>
    %c5 = arith.constant 5 : index
    %c0_40 = arith.constant 0 : index
    %c0_41 = arith.constant 0 : index
    %69 = vector.load %arg2[%c5, %c0_40, %c0_41] : memref<9x16x12xf32, #tpu.memory_space<vmem>>, vector<1x16x12xf32>
    %70 = vector.shape_cast %69 : vector<1x16x12xf32> to vector<16x12xf32>
    %cst_42 = arith.constant dense<0.000000e+00> : vector<16x256xf32>
    %71 = tpu.matmul %70, %68, %cst_42 {dimension_numbers = #tpu.dot_dimension_numbers<[1], [0], [0], [1], [0, 0, 1, 1], [], []>} : vector<16x12xf32>, vector<12x256xf32>, vector<16x256xf32> -> vector<16x256xf32>
    %72 = arith.addf %63, %71 : vector<16x256xf32>
    %c0_43 = arith.constant 0 : index
    %c32 = arith.constant 32 : index
    %73 = vector.load %arg11[%c0_43, %c32] : memref<16x290xf32, #tpu.memory_space<vmem>>, vector<12x256xf32>
    %cst_44 = arith.constant 0.000000e+00 : f32
    %74 = vector.shape_cast %18 : vector<1x256xi1> to vector<1x256xi1>
    %75 = vector.broadcast %74 : vector<1x256xi1> to vector<12x256xi1>
    %76 = vector.broadcast %cst_44 : f32 to vector<12x256xf32>
    %77 = arith.select %75, %73, %76 : vector<12x256xi1>, vector<12x256xf32>
    %c6 = arith.constant 6 : index
    %c0_45 = arith.constant 0 : index
    %c0_46 = arith.constant 0 : index
    %78 = vector.load %arg2[%c6, %c0_45, %c0_46] : memref<9x16x12xf32, #tpu.memory_space<vmem>>, vector<1x16x12xf32>
    %79 = vector.shape_cast %78 : vector<1x16x12xf32> to vector<16x12xf32>
    %cst_47 = arith.constant dense<0.000000e+00> : vector<16x256xf32>
    %80 = tpu.matmul %79, %77, %cst_47 {dimension_numbers = #tpu.dot_dimension_numbers<[1], [0], [0], [1], [0, 0, 1, 1], [], []>} : vector<16x12xf32>, vector<12x256xf32>, vector<16x256xf32> -> vector<16x256xf32>
    %81 = arith.addf %72, %80 : vector<16x256xf32>
    %c0_48 = arith.constant 0 : index
    %c33 = arith.constant 33 : index
    %82 = vector.load %arg11[%c0_48, %c33] : memref<16x290xf32, #tpu.memory_space<vmem>>, vector<12x256xf32>
    %c7 = arith.constant 7 : index
    %c0_49 = arith.constant 0 : index
    %c0_50 = arith.constant 0 : index
    %83 = vector.load %arg2[%c7, %c0_49, %c0_50] : memref<9x16x12xf32, #tpu.memory_space<vmem>>, vector<1x16x12xf32>
    %84 = vector.shape_cast %83 : vector<1x16x12xf32> to vector<16x12xf32>
    %cst_51 = arith.constant dense<0.000000e+00> : vector<16x256xf32>
    %85 = tpu.matmul %84, %82, %cst_51 {dimension_numbers = #tpu.dot_dimension_numbers<[1], [0], [0], [1], [0, 0, 1, 1], [], []>} : vector<16x12xf32>, vector<12x256xf32>, vector<16x256xf32> -> vector<16x256xf32>
    %86 = arith.addf %81, %85 : vector<16x256xf32>
    %c0_52 = arith.constant 0 : index
    %c34 = arith.constant 34 : index
    %87 = vector.load %arg11[%c0_52, %c34] : memref<16x290xf32, #tpu.memory_space<vmem>>, vector<12x256xf32>
    %cst_53 = arith.constant 0.000000e+00 : f32
    %88 = vector.shape_cast %20 : vector<1x256xi1> to vector<1x256xi1>
    %89 = vector.broadcast %88 : vector<1x256xi1> to vector<12x256xi1>
    %90 = vector.broadcast %cst_53 : f32 to vector<12x256xf32>
    %91 = arith.select %89, %87, %90 : vector<12x256xi1>, vector<12x256xf32>
    %c8 = arith.constant 8 : index
    %c0_54 = arith.constant 0 : index
    %c0_55 = arith.constant 0 : index
    %92 = vector.load %arg2[%c8, %c0_54, %c0_55] : memref<9x16x12xf32, #tpu.memory_space<vmem>>, vector<1x16x12xf32>
    %93 = vector.shape_cast %92 : vector<1x16x12xf32> to vector<16x12xf32>
    %cst_56 = arith.constant dense<0.000000e+00> : vector<16x256xf32>
    %94 = tpu.matmul %93, %91, %cst_56 {dimension_numbers = #tpu.dot_dimension_numbers<[1], [0], [0], [1], [0, 0, 1, 1], [], []>} : vector<16x12xf32>, vector<12x256xf32>, vector<16x256xf32> -> vector<16x256xf32>
    %95 = arith.addf %86, %94 : vector<16x256xf32>
    %c0_57 = arith.constant 0 : index
    %c0_58 = arith.constant 0 : index
    %96 = vector.load %arg3[%c0_57, %c0_58] : memref<16x1xf32, #tpu.memory_space<vmem>>, vector<16x1xf32>
    %97 = vector.broadcast %96 : vector<16x1xf32> to vector<16x256xf32>
    %98 = arith.addf %95, %97 : vector<16x256xf32>
    %cst_59 = arith.constant 0.000000e+00 : f32
    %99 = vector.broadcast %cst_59 : f32 to vector<16x256xf32>
    %100 = arith.maximumf %98, %99 : vector<16x256xf32>
    %c0_60 = arith.constant 0 : index
    %c17_61 = arith.constant 17 : index
    %101 = vector.load %arg11[%c0_60, %c17_61] : memref<16x290xf32, #tpu.memory_space<vmem>>, vector<16x256xf32>
    tpu.vector_store %arg11[%c0_60, %c17_61], %100 {strides = array<i32>} : memref<16x290xf32, #tpu.memory_space<vmem>>, vector<16x256xf32>,
    %cst_62 = arith.constant 0.000000e+00 : f32
    %102 = vector.broadcast %cst_62 : f32 to vector<8x256xf32>
    %c0_63 = arith.constant 0 : index
    %c0_64 = arith.constant 0 : index
    %103 = vector.load %arg11[%c0_63, %c0_64] : memref<16x290xf32, #tpu.memory_space<vmem>>, vector<16x256xf32>
    %cst_65 = arith.constant 0.000000e+00 : f32
    %104 = vector.shape_cast %18 : vector<1x256xi1> to vector<1x256xi1>
    %105 = vector.broadcast %104 : vector<1x256xi1> to vector<16x256xi1>
    %106 = vector.broadcast %cst_65 : f32 to vector<16x256xf32>
    %107 = arith.select %105, %103, %106 : vector<16x256xi1>, vector<16x256xf32>
    %c0_66 = arith.constant 0 : index
    %c0_67 = arith.constant 0 : index
    %c0_68 = arith.constant 0 : index
    %108 = vector.load %arg4[%c0_66, %c0_67, %c0_68] : memref<9x8x16xf32, #tpu.memory_space<vmem>>, vector<1x8x16xf32>
    %109 = vector.shape_cast %108 : vector<1x8x16xf32> to vector<8x16xf32>
    %cst_69 = arith.constant dense<0.000000e+00> : vector<8x256xf32>
    %110 = tpu.matmul %109, %107, %cst_69 {dimension_numbers = #tpu.dot_dimension_numbers<[1], [0], [0], [1], [0, 0, 1, 1], [], []>} : vector<8x16xf32>, vector<16x256xf32>, vector<8x256xf32> -> vector<8x256xf32>
    %111 = arith.addf %102, %110 : vector<8x256xf32>
    %c0_70 = arith.constant 0 : index
    %c1_71 = arith.constant 1 : index
    %112 = vector.load %arg11[%c0_70, %c1_71] : memref<16x290xf32, #tpu.memory_space<vmem>>, vector<16x256xf32>
    %c1_72 = arith.constant 1 : index
    %c0_73 = arith.constant 0 : index
    %c0_74 = arith.constant 0 : index
    %113 = vector.load %arg4[%c1_72, %c0_73, %c0_74] : memref<9x8x16xf32, #tpu.memory_space<vmem>>, vector<1x8x16xf32>
    %114 = vector.shape_cast %113 : vector<1x8x16xf32> to vector<8x16xf32>
    %cst_75 = arith.constant dense<0.000000e+00> : vector<8x256xf32>
    %115 = tpu.matmul %114, %112, %cst_75 {dimension_numbers = #tpu.dot_dimension_numbers<[1], [0], [0], [1], [0, 0, 1, 1], [], []>} : vector<8x16xf32>, vector<16x256xf32>, vector<8x256xf32> -> vector<8x256xf32>
    %116 = arith.addf %111, %115 : vector<8x256xf32>
    %c0_76 = arith.constant 0 : index
    %c2_77 = arith.constant 2 : index
    %117 = vector.load %arg11[%c0_76, %c2_77] : memref<16x290xf32, #tpu.memory_space<vmem>>, vector<16x256xf32>
    %cst_78 = arith.constant 0.000000e+00 : f32
    %118 = vector.shape_cast %20 : vector<1x256xi1> to vector<1x256xi1>
    %119 = vector.broadcast %118 : vector<1x256xi1> to vector<16x256xi1>
    %120 = vector.broadcast %cst_78 : f32 to vector<16x256xf32>
    %121 = arith.select %119, %117, %120 : vector<16x256xi1>, vector<16x256xf32>
    %c2_79 = arith.constant 2 : index
    %c0_80 = arith.constant 0 : index
    %c0_81 = arith.constant 0 : index
    %122 = vector.load %arg4[%c2_79, %c0_80, %c0_81] : memref<9x8x16xf32, #tpu.memory_space<vmem>>, vector<1x8x16xf32>
    %123 = vector.shape_cast %122 : vector<1x8x16xf32> to vector<8x16xf32>
    %cst_82 = arith.constant dense<0.000000e+00> : vector<8x256xf32>
    %124 = tpu.matmul %123, %121, %cst_82 {dimension_numbers = #tpu.dot_dimension_numbers<[1], [0], [0], [1], [0, 0, 1, 1], [], []>} : vector<8x16xf32>, vector<16x256xf32>, vector<8x256xf32> -> vector<8x256xf32>
    %125 = arith.addf %116, %124 : vector<8x256xf32>
    %c0_83 = arith.constant 0 : index
    %c16_84 = arith.constant 16 : index
    %126 = vector.load %arg11[%c0_83, %c16_84] : memref<16x290xf32, #tpu.memory_space<vmem>>, vector<16x256xf32>
    %cst_85 = arith.constant 0.000000e+00 : f32
    %127 = vector.shape_cast %18 : vector<1x256xi1> to vector<1x256xi1>
    %128 = vector.broadcast %127 : vector<1x256xi1> to vector<16x256xi1>
    %129 = vector.broadcast %cst_85 : f32 to vector<16x256xf32>
    %130 = arith.select %128, %126, %129 : vector<16x256xi1>, vector<16x256xf32>
    %c3_86 = arith.constant 3 : index
    %c0_87 = arith.constant 0 : index
    %c0_88 = arith.constant 0 : index
    %131 = vector.load %arg4[%c3_86, %c0_87, %c0_88] : memref<9x8x16xf32, #tpu.memory_space<vmem>>, vector<1x8x16xf32>
    %132 = vector.shape_cast %131 : vector<1x8x16xf32> to vector<8x16xf32>
    %cst_89 = arith.constant dense<0.000000e+00> : vector<8x256xf32>
    %133 = tpu.matmul %132, %130, %cst_89 {dimension_numbers = #tpu.dot_dimension_numbers<[1], [0], [0], [1], [0, 0, 1, 1], [], []>} : vector<8x16xf32>, vector<16x256xf32>, vector<8x256xf32> -> vector<8x256xf32>
    %134 = arith.addf %125, %133 : vector<8x256xf32>
    %c0_90 = arith.constant 0 : index
    %c17_91 = arith.constant 17 : index
    %135 = vector.load %arg11[%c0_90, %c17_91] : memref<16x290xf32, #tpu.memory_space<vmem>>, vector<16x256xf32>
    %c4_92 = arith.constant 4 : index
    %c0_93 = arith.constant 0 : index
    %c0_94 = arith.constant 0 : index
    %136 = vector.load %arg4[%c4_92, %c0_93, %c0_94] : memref<9x8x16xf32, #tpu.memory_space<vmem>>, vector<1x8x16xf32>
    %137 = vector.shape_cast %136 : vector<1x8x16xf32> to vector<8x16xf32>
    %cst_95 = arith.constant dense<0.000000e+00> : vector<8x256xf32>
    %138 = tpu.matmul %137, %135, %cst_95 {dimension_numbers = #tpu.dot_dimension_numbers<[1], [0], [0], [1], [0, 0, 1, 1], [], []>} : vector<8x16xf32>, vector<16x256xf32>, vector<8x256xf32> -> vector<8x256xf32>
    %139 = arith.addf %134, %138 : vector<8x256xf32>
    %c0_96 = arith.constant 0 : index
    %c18_97 = arith.constant 18 : index
    %140 = vector.load %arg11[%c0_96, %c18_97] : memref<16x290xf32, #tpu.memory_space<vmem>>, vector<16x256xf32>
    %cst_98 = arith.constant 0.000000e+00 : f32
    %141 = vector.shape_cast %20 : vector<1x256xi1> to vector<1x256xi1>
    %142 = vector.broadcast %141 : vector<1x256xi1> to vector<16x256xi1>
    %143 = vector.broadcast %cst_98 : f32 to vector<16x256xf32>
    %144 = arith.select %142, %140, %143 : vector<16x256xi1>, vector<16x256xf32>
    %c5_99 = arith.constant 5 : index
    %c0_100 = arith.constant 0 : index
    %c0_101 = arith.constant 0 : index
    %145 = vector.load %arg4[%c5_99, %c0_100, %c0_101] : memref<9x8x16xf32, #tpu.memory_space<vmem>>, vector<1x8x16xf32>
    %146 = vector.shape_cast %145 : vector<1x8x16xf32> to vector<8x16xf32>
    %cst_102 = arith.constant dense<0.000000e+00> : vector<8x256xf32>
    %147 = tpu.matmul %146, %144, %cst_102 {dimension_numbers = #tpu.dot_dimension_numbers<[1], [0], [0], [1], [0, 0, 1, 1], [], []>} : vector<8x16xf32>, vector<16x256xf32>, vector<8x256xf32> -> vector<8x256xf32>
    %148 = arith.addf %139, %147 : vector<8x256xf32>
    %c0_103 = arith.constant 0 : index
    %c32_104 = arith.constant 32 : index
    %149 = vector.load %arg11[%c0_103, %c32_104] : memref<16x290xf32, #tpu.memory_space<vmem>>, vector<16x256xf32>
    %cst_105 = arith.constant 0.000000e+00 : f32
    %150 = vector.shape_cast %18 : vector<1x256xi1> to vector<1x256xi1>
    %151 = vector.broadcast %150 : vector<1x256xi1> to vector<16x256xi1>
    %152 = vector.broadcast %cst_105 : f32 to vector<16x256xf32>
    %153 = arith.select %151, %149, %152 : vector<16x256xi1>, vector<16x256xf32>
    %c6_106 = arith.constant 6 : index
    %c0_107 = arith.constant 0 : index
    %c0_108 = arith.constant 0 : index
    %154 = vector.load %arg4[%c6_106, %c0_107, %c0_108] : memref<9x8x16xf32, #tpu.memory_space<vmem>>, vector<1x8x16xf32>
    %155 = vector.shape_cast %154 : vector<1x8x16xf32> to vector<8x16xf32>
    %cst_109 = arith.constant dense<0.000000e+00> : vector<8x256xf32>
    %156 = tpu.matmul %155, %153, %cst_109 {dimension_numbers = #tpu.dot_dimension_numbers<[1], [0], [0], [1], [0, 0, 1, 1], [], []>} : vector<8x16xf32>, vector<16x256xf32>, vector<8x256xf32> -> vector<8x256xf32>
    %157 = arith.addf %148, %156 : vector<8x256xf32>
    %c0_110 = arith.constant 0 : index
    %c33_111 = arith.constant 33 : index
    %158 = vector.load %arg11[%c0_110, %c33_111] : memref<16x290xf32, #tpu.memory_space<vmem>>, vector<16x256xf32>
    %c7_112 = arith.constant 7 : index
    %c0_113 = arith.constant 0 : index
    %c0_114 = arith.constant 0 : index
    %159 = vector.load %arg4[%c7_112, %c0_113, %c0_114] : memref<9x8x16xf32, #tpu.memory_space<vmem>>, vector<1x8x16xf32>
    %160 = vector.shape_cast %159 : vector<1x8x16xf32> to vector<8x16xf32>
    %cst_115 = arith.constant dense<0.000000e+00> : vector<8x256xf32>
    %161 = tpu.matmul %160, %158, %cst_115 {dimension_numbers = #tpu.dot_dimension_numbers<[1], [0], [0], [1], [0, 0, 1, 1], [], []>} : vector<8x16xf32>, vector<16x256xf32>, vector<8x256xf32> -> vector<8x256xf32>
    %162 = arith.addf %157, %161 : vector<8x256xf32>
    %c0_116 = arith.constant 0 : index
    %c34_117 = arith.constant 34 : index
    %163 = vector.load %arg11[%c0_116, %c34_117] : memref<16x290xf32, #tpu.memory_space<vmem>>, vector<16x256xf32>
    %cst_118 = arith.constant 0.000000e+00 : f32
    %164 = vector.shape_cast %20 : vector<1x256xi1> to vector<1x256xi1>
    %165 = vector.broadcast %164 : vector<1x256xi1> to vector<16x256xi1>
    %166 = vector.broadcast %cst_118 : f32 to vector<16x256xf32>
    %167 = arith.select %165, %163, %166 : vector<16x256xi1>, vector<16x256xf32>
    %c8_119 = arith.constant 8 : index
    %c0_120 = arith.constant 0 : index
    %c0_121 = arith.constant 0 : index
    %168 = vector.load %arg4[%c8_119, %c0_120, %c0_121] : memref<9x8x16xf32, #tpu.memory_space<vmem>>, vector<1x8x16xf32>
    %169 = vector.shape_cast %168 : vector<1x8x16xf32> to vector<8x16xf32>
    %cst_122 = arith.constant dense<0.000000e+00> : vector<8x256xf32>
    %170 = tpu.matmul %169, %167, %cst_122 {dimension_numbers = #tpu.dot_dimension_numbers<[1], [0], [0], [1], [0, 0, 1, 1], [], []>} : vector<8x16xf32>, vector<16x256xf32>, vector<8x256xf32> -> vector<8x256xf32>
    %171 = arith.addf %162, %170 : vector<8x256xf32>
    %c0_123 = arith.constant 0 : index
    %c0_124 = arith.constant 0 : index
    %172 = vector.load %arg5[%c0_123, %c0_124] : memref<8x1xf32, #tpu.memory_space<vmem>>, vector<8x1xf32>
    %173 = vector.broadcast %172 : vector<8x1xf32> to vector<8x256xf32>
    %174 = arith.addf %171, %173 : vector<8x256xf32>
    %cst_125 = arith.constant 0.000000e+00 : f32
    %175 = vector.broadcast %cst_125 : f32 to vector<8x256xf32>
    %176 = arith.maximumf %174, %175 : vector<8x256xf32>
    %c0_126 = arith.constant 0 : index
    %c17_127 = arith.constant 17 : index
    %177 = vector.load %arg11[%c0_126, %c17_127] : memref<16x290xf32, #tpu.memory_space<vmem>>, vector<8x256xf32>
    tpu.vector_store %arg11[%c0_126, %c17_127], %176 {strides = array<i32>} : memref<16x290xf32, #tpu.memory_space<vmem>>, vector<8x256xf32>,
    %cst_128 = arith.constant 0.000000e+00 : f32
    %178 = vector.broadcast %cst_128 : f32 to vector<4x256xf32>
    %c0_129 = arith.constant 0 : index
    %c0_130 = arith.constant 0 : index
    %179 = vector.load %arg11[%c0_129, %c0_130] : memref<16x290xf32, #tpu.memory_space<vmem>>, vector<8x256xf32>
    %cst_131 = arith.constant 0.000000e+00 : f32
    %180 = vector.shape_cast %18 : vector<1x256xi1> to vector<1x256xi1>
    %181 = vector.broadcast %180 : vector<1x256xi1> to vector<8x256xi1>
    %182 = vector.broadcast %cst_131 : f32 to vector<8x256xf32>
    %183 = arith.select %181, %179, %182 : vector<8x256xi1>, vector<8x256xf32>
    %c0_132 = arith.constant 0 : index
    %c0_133 = arith.constant 0 : index
    %c0_134 = arith.constant 0 : index
    %184 = vector.load %arg6[%c0_132, %c0_133, %c0_134] : memref<9x4x8xf32, #tpu.memory_space<vmem>>, vector<1x4x8xf32>
    %185 = vector.shape_cast %184 : vector<1x4x8xf32> to vector<4x8xf32>
    %cst_135 = arith.constant dense<0.000000e+00> : vector<4x256xf32>
    %186 = tpu.matmul %185, %183, %cst_135 {dimension_numbers = #tpu.dot_dimension_numbers<[1], [0], [0], [1], [0, 0, 1, 1], [], []>} : vector<4x8xf32>, vector<8x256xf32>, vector<4x256xf32> -> vector<4x256xf32>
    %187 = arith.addf %178, %186 : vector<4x256xf32>
    %c0_136 = arith.constant 0 : index
    %c1_137 = arith.constant 1 : index
    %188 = vector.load %arg11[%c0_136, %c1_137] : memref<16x290xf32, #tpu.memory_space<vmem>>, vector<8x256xf32>
    %c1_138 = arith.constant 1 : index
    %c0_139 = arith.constant 0 : index
    %c0_140 = arith.constant 0 : index
    %189 = vector.load %arg6[%c1_138, %c0_139, %c0_140] : memref<9x4x8xf32, #tpu.memory_space<vmem>>, vector<1x4x8xf32>
    %190 = vector.shape_cast %189 : vector<1x4x8xf32> to vector<4x8xf32>
    %cst_141 = arith.constant dense<0.000000e+00> : vector<4x256xf32>
    %191 = tpu.matmul %190, %188, %cst_141 {dimension_numbers = #tpu.dot_dimension_numbers<[1], [0], [0], [1], [0, 0, 1, 1], [], []>} : vector<4x8xf32>, vector<8x256xf32>, vector<4x256xf32> -> vector<4x256xf32>
    %192 = arith.addf %187, %191 : vector<4x256xf32>
    %c0_142 = arith.constant 0 : index
    %c2_143 = arith.constant 2 : index
    %193 = vector.load %arg11[%c0_142, %c2_143] : memref<16x290xf32, #tpu.memory_space<vmem>>, vector<8x256xf32>
    %cst_144 = arith.constant 0.000000e+00 : f32
    %194 = vector.shape_cast %20 : vector<1x256xi1> to vector<1x256xi1>
    %195 = vector.broadcast %194 : vector<1x256xi1> to vector<8x256xi1>
    %196 = vector.broadcast %cst_144 : f32 to vector<8x256xf32>
    %197 = arith.select %195, %193, %196 : vector<8x256xi1>, vector<8x256xf32>
    %c2_145 = arith.constant 2 : index
    %c0_146 = arith.constant 0 : index
    %c0_147 = arith.constant 0 : index
    %198 = vector.load %arg6[%c2_145, %c0_146, %c0_147] : memref<9x4x8xf32, #tpu.memory_space<vmem>>, vector<1x4x8xf32>
    %199 = vector.shape_cast %198 : vector<1x4x8xf32> to vector<4x8xf32>
    %cst_148 = arith.constant dense<0.000000e+00> : vector<4x256xf32>
    %200 = tpu.matmul %199, %197, %cst_148 {dimension_numbers = #tpu.dot_dimension_numbers<[1], [0], [0], [1], [0, 0, 1, 1], [], []>} : vector<4x8xf32>, vector<8x256xf32>, vector<4x256xf32> -> vector<4x256xf32>
    %201 = arith.addf %192, %200 : vector<4x256xf32>
    %c0_149 = arith.constant 0 : index
    %c16_150 = arith.constant 16 : index
    %202 = vector.load %arg11[%c0_149, %c16_150] : memref<16x290xf32, #tpu.memory_space<vmem>>, vector<8x256xf32>
    %cst_151 = arith.constant 0.000000e+00 : f32
    %203 = vector.shape_cast %18 : vector<1x256xi1> to vector<1x256xi1>
    %204 = vector.broadcast %203 : vector<1x256xi1> to vector<8x256xi1>
    %205 = vector.broadcast %cst_151 : f32 to vector<8x256xf32>
    %206 = arith.select %204, %202, %205 : vector<8x256xi1>, vector<8x256xf32>
    %c3_152 = arith.constant 3 : index
    %c0_153 = arith.constant 0 : index
    %c0_154 = arith.constant 0 : index
    %207 = vector.load %arg6[%c3_152, %c0_153, %c0_154] : memref<9x4x8xf32, #tpu.memory_space<vmem>>, vector<1x4x8xf32>
    %208 = vector.shape_cast %207 : vector<1x4x8xf32> to vector<4x8xf32>
    %cst_155 = arith.constant dense<0.000000e+00> : vector<4x256xf32>
    %209 = tpu.matmul %208, %206, %cst_155 {dimension_numbers = #tpu.dot_dimension_numbers<[1], [0], [0], [1], [0, 0, 1, 1], [], []>} : vector<4x8xf32>, vector<8x256xf32>, vector<4x256xf32> -> vector<4x256xf32>
    %210 = arith.addf %201, %209 : vector<4x256xf32>
    %c0_156 = arith.constant 0 : index
    %c17_157 = arith.constant 17 : index
    %211 = vector.load %arg11[%c0_156, %c17_157] : memref<16x290xf32, #tpu.memory_space<vmem>>, vector<8x256xf32>
    %c4_158 = arith.constant 4 : index
    %c0_159 = arith.constant 0 : index
    %c0_160 = arith.constant 0 : index
    %212 = vector.load %arg6[%c4_158, %c0_159, %c0_160] : memref<9x4x8xf32, #tpu.memory_space<vmem>>, vector<1x4x8xf32>
    %213 = vector.shape_cast %212 : vector<1x4x8xf32> to vector<4x8xf32>
    %cst_161 = arith.constant dense<0.000000e+00> : vector<4x256xf32>
    %214 = tpu.matmul %213, %211, %cst_161 {dimension_numbers = #tpu.dot_dimension_numbers<[1], [0], [0], [1], [0, 0, 1, 1], [], []>} : vector<4x8xf32>, vector<8x256xf32>, vector<4x256xf32> -> vector<4x256xf32>
    %215 = arith.addf %210, %214 : vector<4x256xf32>
    %c0_162 = arith.constant 0 : index
    %c18_163 = arith.constant 18 : index
    %216 = vector.load %arg11[%c0_162, %c18_163] : memref<16x290xf32, #tpu.memory_space<vmem>>, vector<8x256xf32>
    %cst_164 = arith.constant 0.000000e+00 : f32
    %217 = vector.shape_cast %20 : vector<1x256xi1> to vector<1x256xi1>
    %218 = vector.broadcast %217 : vector<1x256xi1> to vector<8x256xi1>
    %219 = vector.broadcast %cst_164 : f32 to vector<8x256xf32>
    %220 = arith.select %218, %216, %219 : vector<8x256xi1>, vector<8x256xf32>
    %c5_165 = arith.constant 5 : index
    %c0_166 = arith.constant 0 : index
    %c0_167 = arith.constant 0 : index
    %221 = vector.load %arg6[%c5_165, %c0_166, %c0_167] : memref<9x4x8xf32, #tpu.memory_space<vmem>>, vector<1x4x8xf32>
    %222 = vector.shape_cast %221 : vector<1x4x8xf32> to vector<4x8xf32>
    %cst_168 = arith.constant dense<0.000000e+00> : vector<4x256xf32>
    %223 = tpu.matmul %222, %220, %cst_168 {dimension_numbers = #tpu.dot_dimension_numbers<[1], [0], [0], [1], [0, 0, 1, 1], [], []>} : vector<4x8xf32>, vector<8x256xf32>, vector<4x256xf32> -> vector<4x256xf32>
    %224 = arith.addf %215, %223 : vector<4x256xf32>
    %c0_169 = arith.constant 0 : index
    %c32_170 = arith.constant 32 : index
    %225 = vector.load %arg11[%c0_169, %c32_170] : memref<16x290xf32, #tpu.memory_space<vmem>>, vector<8x256xf32>
    %cst_171 = arith.constant 0.000000e+00 : f32
    %226 = vector.shape_cast %18 : vector<1x256xi1> to vector<1x256xi1>
    %227 = vector.broadcast %226 : vector<1x256xi1> to vector<8x256xi1>
    %228 = vector.broadcast %cst_171 : f32 to vector<8x256xf32>
    %229 = arith.select %227, %225, %228 : vector<8x256xi1>, vector<8x256xf32>
    %c6_172 = arith.constant 6 : index
    %c0_173 = arith.constant 0 : index
    %c0_174 = arith.constant 0 : index
    %230 = vector.load %arg6[%c6_172, %c0_173, %c0_174] : memref<9x4x8xf32, #tpu.memory_space<vmem>>, vector<1x4x8xf32>
    %231 = vector.shape_cast %230 : vector<1x4x8xf32> to vector<4x8xf32>
    %cst_175 = arith.constant dense<0.000000e+00> : vector<4x256xf32>
    %232 = tpu.matmul %231, %229, %cst_175 {dimension_numbers = #tpu.dot_dimension_numbers<[1], [0], [0], [1], [0, 0, 1, 1], [], []>} : vector<4x8xf32>, vector<8x256xf32>, vector<4x256xf32> -> vector<4x256xf32>
    %233 = arith.addf %224, %232 : vector<4x256xf32>
    %c0_176 = arith.constant 0 : index
    %c33_177 = arith.constant 33 : index
    %234 = vector.load %arg11[%c0_176, %c33_177] : memref<16x290xf32, #tpu.memory_space<vmem>>, vector<8x256xf32>
    %c7_178 = arith.constant 7 : index
    %c0_179 = arith.constant 0 : index
    %c0_180 = arith.constant 0 : index
    %235 = vector.load %arg6[%c7_178, %c0_179, %c0_180] : memref<9x4x8xf32, #tpu.memory_space<vmem>>, vector<1x4x8xf32>
    %236 = vector.shape_cast %235 : vector<1x4x8xf32> to vector<4x8xf32>
    %cst_181 = arith.constant dense<0.000000e+00> : vector<4x256xf32>
    %237 = tpu.matmul %236, %234, %cst_181 {dimension_numbers = #tpu.dot_dimension_numbers<[1], [0], [0], [1], [0, 0, 1, 1], [], []>} : vector<4x8xf32>, vector<8x256xf32>, vector<4x256xf32> -> vector<4x256xf32>
    %238 = arith.addf %233, %237 : vector<4x256xf32>
    %c0_182 = arith.constant 0 : index
    %c34_183 = arith.constant 34 : index
    %239 = vector.load %arg11[%c0_182, %c34_183] : memref<16x290xf32, #tpu.memory_space<vmem>>, vector<8x256xf32>
    %cst_184 = arith.constant 0.000000e+00 : f32
    %240 = vector.shape_cast %20 : vector<1x256xi1> to vector<1x256xi1>
    %241 = vector.broadcast %240 : vector<1x256xi1> to vector<8x256xi1>
    %242 = vector.broadcast %cst_184 : f32 to vector<8x256xf32>
    %243 = arith.select %241, %239, %242 : vector<8x256xi1>, vector<8x256xf32>
    %c8_185 = arith.constant 8 : index
    %c0_186 = arith.constant 0 : index
    %c0_187 = arith.constant 0 : index
    %244 = vector.load %arg6[%c8_185, %c0_186, %c0_187] : memref<9x4x8xf32, #tpu.memory_space<vmem>>, vector<1x4x8xf32>
    %245 = vector.shape_cast %244 : vector<1x4x8xf32> to vector<4x8xf32>
    %cst_188 = arith.constant dense<0.000000e+00> : vector<4x256xf32>
    %246 = tpu.matmul %245, %243, %cst_188 {dimension_numbers = #tpu.dot_dimension_numbers<[1], [0], [0], [1], [0, 0, 1, 1], [], []>} : vector<4x8xf32>, vector<8x256xf32>, vector<4x256xf32> -> vector<4x256xf32>
    %247 = arith.addf %238, %246 : vector<4x256xf32>
    %c0_189 = arith.constant 0 : index
    %c0_190 = arith.constant 0 : index
    %248 = vector.load %arg7[%c0_189, %c0_190] : memref<4x1xf32, #tpu.memory_space<vmem>>, vector<4x1xf32>
    %249 = vector.broadcast %248 : vector<4x1xf32> to vector<4x256xf32>
    %250 = arith.addf %247, %249 : vector<4x256xf32>
    %cst_191 = arith.constant 0.000000e+00 : f32
    %251 = vector.broadcast %cst_191 : f32 to vector<4x256xf32>
    %252 = arith.maximumf %250, %251 : vector<4x256xf32>
    %c0_192 = arith.constant 0 : index
    %c17_193 = arith.constant 17 : index
    %253 = vector.load %arg11[%c0_192, %c17_193] : memref<16x290xf32, #tpu.memory_space<vmem>>, vector<4x256xf32>
    tpu.vector_store %arg11[%c0_192, %c17_193], %252 {strides = array<i32>} : memref<16x290xf32, #tpu.memory_space<vmem>>, vector<4x256xf32>,
    %cst_194 = arith.constant 0.000000e+00 : f32
    %254 = vector.broadcast %cst_194 : f32 to vector<3x256xf32>
    %c0_195 = arith.constant 0 : index
    %c0_196 = arith.constant 0 : index
    %255 = vector.load %arg11[%c0_195, %c0_196] : memref<16x290xf32, #tpu.memory_space<vmem>>, vector<4x256xf32>
    %cst_197 = arith.constant 0.000000e+00 : f32
    %256 = vector.shape_cast %18 : vector<1x256xi1> to vector<1x256xi1>
    %257 = vector.broadcast %256 : vector<1x256xi1> to vector<4x256xi1>
    %258 = vector.broadcast %cst_197 : f32 to vector<4x256xf32>
    %259 = arith.select %257, %255, %258 : vector<4x256xi1>, vector<4x256xf32>
    %c0_198 = arith.constant 0 : index
    %c0_199 = arith.constant 0 : index
    %c0_200 = arith.constant 0 : index
    %260 = vector.load %arg8[%c0_198, %c0_199, %c0_200] : memref<9x3x4xf32, #tpu.memory_space<vmem>>, vector<1x3x4xf32>
    %261 = vector.shape_cast %260 : vector<1x3x4xf32> to vector<3x4xf32>
    %cst_201 = arith.constant dense<0.000000e+00> : vector<3x256xf32>
    %262 = tpu.matmul %261, %259, %cst_201 {dimension_numbers = #tpu.dot_dimension_numbers<[1], [0], [0], [1], [0, 0, 1, 1], [], []>} : vector<3x4xf32>, vector<4x256xf32>, vector<3x256xf32> -> vector<3x256xf32>
    %263 = arith.addf %254, %262 : vector<3x256xf32>
    %c0_202 = arith.constant 0 : index
    %c1_203 = arith.constant 1 : index
    %264 = vector.load %arg11[%c0_202, %c1_203] : memref<16x290xf32, #tpu.memory_space<vmem>>, vector<4x256xf32>
    %c1_204 = arith.constant 1 : index
    %c0_205 = arith.constant 0 : index
    %c0_206 = arith.constant 0 : index
    %265 = vector.load %arg8[%c1_204, %c0_205, %c0_206] : memref<9x3x4xf32, #tpu.memory_space<vmem>>, vector<1x3x4xf32>
    %266 = vector.shape_cast %265 : vector<1x3x4xf32> to vector<3x4xf32>
    %cst_207 = arith.constant dense<0.000000e+00> : vector<3x256xf32>
    %267 = tpu.matmul %266, %264, %cst_207 {dimension_numbers = #tpu.dot_dimension_numbers<[1], [0], [0], [1], [0, 0, 1, 1], [], []>} : vector<3x4xf32>, vector<4x256xf32>, vector<3x256xf32> -> vector<3x256xf32>
    %268 = arith.addf %263, %267 : vector<3x256xf32>
    %c0_208 = arith.constant 0 : index
    %c2_209 = arith.constant 2 : index
    %269 = vector.load %arg11[%c0_208, %c2_209] : memref<16x290xf32, #tpu.memory_space<vmem>>, vector<4x256xf32>
    %cst_210 = arith.constant 0.000000e+00 : f32
    %270 = vector.shape_cast %20 : vector<1x256xi1> to vector<1x256xi1>
    %271 = vector.broadcast %270 : vector<1x256xi1> to vector<4x256xi1>
    %272 = vector.broadcast %cst_210 : f32 to vector<4x256xf32>
    %273 = arith.select %271, %269, %272 : vector<4x256xi1>, vector<4x256xf32>
    %c2_211 = arith.constant 2 : index
    %c0_212 = arith.constant 0 : index
    %c0_213 = arith.constant 0 : index
    %274 = vector.load %arg8[%c2_211, %c0_212, %c0_213] : memref<9x3x4xf32, #tpu.memory_space<vmem>>, vector<1x3x4xf32>
    %275 = vector.shape_cast %274 : vector<1x3x4xf32> to vector<3x4xf32>
    %cst_214 = arith.constant dense<0.000000e+00> : vector<3x256xf32>
    %276 = tpu.matmul %275, %273, %cst_214 {dimension_numbers = #tpu.dot_dimension_numbers<[1], [0], [0], [1], [0, 0, 1, 1], [], []>} : vector<3x4xf32>, vector<4x256xf32>, vector<3x256xf32> -> vector<3x256xf32>
    %277 = arith.addf %268, %276 : vector<3x256xf32>
    %c0_215 = arith.constant 0 : index
    %c16_216 = arith.constant 16 : index
    %278 = vector.load %arg11[%c0_215, %c16_216] : memref<16x290xf32, #tpu.memory_space<vmem>>, vector<4x256xf32>
    %cst_217 = arith.constant 0.000000e+00 : f32
    %279 = vector.shape_cast %18 : vector<1x256xi1> to vector<1x256xi1>
    %280 = vector.broadcast %279 : vector<1x256xi1> to vector<4x256xi1>
    %281 = vector.broadcast %cst_217 : f32 to vector<4x256xf32>
    %282 = arith.select %280, %278, %281 : vector<4x256xi1>, vector<4x256xf32>
    %c3_218 = arith.constant 3 : index
    %c0_219 = arith.constant 0 : index
    %c0_220 = arith.constant 0 : index
    %283 = vector.load %arg8[%c3_218, %c0_219, %c0_220] : memref<9x3x4xf32, #tpu.memory_space<vmem>>, vector<1x3x4xf32>
    %284 = vector.shape_cast %283 : vector<1x3x4xf32> to vector<3x4xf32>
    %cst_221 = arith.constant dense<0.000000e+00> : vector<3x256xf32>
    %285 = tpu.matmul %284, %282, %cst_221 {dimension_numbers = #tpu.dot_dimension_numbers<[1], [0], [0], [1], [0, 0, 1, 1], [], []>} : vector<3x4xf32>, vector<4x256xf32>, vector<3x256xf32> -> vector<3x256xf32>
    %286 = arith.addf %277, %285 : vector<3x256xf32>
    %c0_222 = arith.constant 0 : index
    %c17_223 = arith.constant 17 : index
    %287 = vector.load %arg11[%c0_222, %c17_223] : memref<16x290xf32, #tpu.memory_space<vmem>>, vector<4x256xf32>
    %c4_224 = arith.constant 4 : index
    %c0_225 = arith.constant 0 : index
    %c0_226 = arith.constant 0 : index
    %288 = vector.load %arg8[%c4_224, %c0_225, %c0_226] : memref<9x3x4xf32, #tpu.memory_space<vmem>>, vector<1x3x4xf32>
    %289 = vector.shape_cast %288 : vector<1x3x4xf32> to vector<3x4xf32>
    %cst_227 = arith.constant dense<0.000000e+00> : vector<3x256xf32>
    %290 = tpu.matmul %289, %287, %cst_227 {dimension_numbers = #tpu.dot_dimension_numbers<[1], [0], [0], [1], [0, 0, 1, 1], [], []>} : vector<3x4xf32>, vector<4x256xf32>, vector<3x256xf32> -> vector<3x256xf32>
    %291 = arith.addf %286, %290 : vector<3x256xf32>
    %c0_228 = arith.constant 0 : index
    %c18_229 = arith.constant 18 : index
    %292 = vector.load %arg11[%c0_228, %c18_229] : memref<16x290xf32, #tpu.memory_space<vmem>>, vector<4x256xf32>
    %cst_230 = arith.constant 0.000000e+00 : f32
    %293 = vector.shape_cast %20 : vector<1x256xi1> to vector<1x256xi1>
    %294 = vector.broadcast %293 : vector<1x256xi1> to vector<4x256xi1>
    %295 = vector.broadcast %cst_230 : f32 to vector<4x256xf32>
    %296 = arith.select %294, %292, %295 : vector<4x256xi1>, vector<4x256xf32>
    %c5_231 = arith.constant 5 : index
    %c0_232 = arith.constant 0 : index
    %c0_233 = arith.constant 0 : index
    %297 = vector.load %arg8[%c5_231, %c0_232, %c0_233] : memref<9x3x4xf32, #tpu.memory_space<vmem>>, vector<1x3x4xf32>
    %298 = vector.shape_cast %297 : vector<1x3x4xf32> to vector<3x4xf32>
    %cst_234 = arith.constant dense<0.000000e+00> : vector<3x256xf32>
    %299 = tpu.matmul %298, %296, %cst_234 {dimension_numbers = #tpu.dot_dimension_numbers<[1], [0], [0], [1], [0, 0, 1, 1], [], []>} : vector<3x4xf32>, vector<4x256xf32>, vector<3x256xf32> -> vector<3x256xf32>
    %300 = arith.addf %291, %299 : vector<3x256xf32>
    %c0_235 = arith.constant 0 : index
    %c32_236 = arith.constant 32 : index
    %301 = vector.load %arg11[%c0_235, %c32_236] : memref<16x290xf32, #tpu.memory_space<vmem>>, vector<4x256xf32>
    %cst_237 = arith.constant 0.000000e+00 : f32
    %302 = vector.shape_cast %18 : vector<1x256xi1> to vector<1x256xi1>
    %303 = vector.broadcast %302 : vector<1x256xi1> to vector<4x256xi1>
    %304 = vector.broadcast %cst_237 : f32 to vector<4x256xf32>
    %305 = arith.select %303, %301, %304 : vector<4x256xi1>, vector<4x256xf32>
    %c6_238 = arith.constant 6 : index
    %c0_239 = arith.constant 0 : index
    %c0_240 = arith.constant 0 : index
    %306 = vector.load %arg8[%c6_238, %c0_239, %c0_240] : memref<9x3x4xf32, #tpu.memory_space<vmem>>, vector<1x3x4xf32>
    %307 = vector.shape_cast %306 : vector<1x3x4xf32> to vector<3x4xf32>
    %cst_241 = arith.constant dense<0.000000e+00> : vector<3x256xf32>
    %308 = tpu.matmul %307, %305, %cst_241 {dimension_numbers = #tpu.dot_dimension_numbers<[1], [0], [0], [1], [0, 0, 1, 1], [], []>} : vector<3x4xf32>, vector<4x256xf32>, vector<3x256xf32> -> vector<3x256xf32>
    %309 = arith.addf %300, %308 : vector<3x256xf32>
    %c0_242 = arith.constant 0 : index
    %c33_243 = arith.constant 33 : index
    %310 = vector.load %arg11[%c0_242, %c33_243] : memref<16x290xf32, #tpu.memory_space<vmem>>, vector<4x256xf32>
    %c7_244 = arith.constant 7 : index
    %c0_245 = arith.constant 0 : index
    %c0_246 = arith.constant 0 : index
    %311 = vector.load %arg8[%c7_244, %c0_245, %c0_246] : memref<9x3x4xf32, #tpu.memory_space<vmem>>, vector<1x3x4xf32>
    %312 = vector.shape_cast %311 : vector<1x3x4xf32> to vector<3x4xf32>
    %cst_247 = arith.constant dense<0.000000e+00> : vector<3x256xf32>
    %313 = tpu.matmul %312, %310, %cst_247 {dimension_numbers = #tpu.dot_dimension_numbers<[1], [0], [0], [1], [0, 0, 1, 1], [], []>} : vector<3x4xf32>, vector<4x256xf32>, vector<3x256xf32> -> vector<3x256xf32>
    %314 = arith.addf %309, %313 : vector<3x256xf32>
    %c0_248 = arith.constant 0 : index
    %c34_249 = arith.constant 34 : index
    %315 = vector.load %arg11[%c0_248, %c34_249] : memref<16x290xf32, #tpu.memory_space<vmem>>, vector<4x256xf32>
    %cst_250 = arith.constant 0.000000e+00 : f32
    %316 = vector.shape_cast %20 : vector<1x256xi1> to vector<1x256xi1>
    %317 = vector.broadcast %316 : vector<1x256xi1> to vector<4x256xi1>
    %318 = vector.broadcast %cst_250 : f32 to vector<4x256xf32>
    %319 = arith.select %317, %315, %318 : vector<4x256xi1>, vector<4x256xf32>
    %c8_251 = arith.constant 8 : index
    %c0_252 = arith.constant 0 : index
    %c0_253 = arith.constant 0 : index
    %320 = vector.load %arg8[%c8_251, %c0_252, %c0_253] : memref<9x3x4xf32, #tpu.memory_space<vmem>>, vector<1x3x4xf32>
    %321 = vector.shape_cast %320 : vector<1x3x4xf32> to vector<3x4xf32>
    %cst_254 = arith.constant dense<0.000000e+00> : vector<3x256xf32>
    %322 = tpu.matmul %321, %319, %cst_254 {dimension_numbers = #tpu.dot_dimension_numbers<[1], [0], [0], [1], [0, 0, 1, 1], [], []>} : vector<3x4xf32>, vector<4x256xf32>, vector<3x256xf32> -> vector<3x256xf32>
    %323 = arith.addf %314, %322 : vector<3x256xf32>
    %c0_255 = arith.constant 0 : index
    %c0_256 = arith.constant 0 : index
    %324 = vector.load %arg9[%c0_255, %c0_256] : memref<3x1xf32, #tpu.memory_space<vmem>>, vector<3x1xf32>
    %325 = vector.broadcast %324 : vector<3x1xf32> to vector<3x256xf32>
    %326 = arith.addf %323, %325 : vector<3x256xf32>
    %c0_257 = arith.constant 0 : index
    %c0_258 = arith.constant 0 : index
    %c0_259 = arith.constant 0 : index
    %327 = vector.load %arg10[%c0_257, %c0_258, %c0_259] : memref<1x3x256xf32, #tpu.memory_space<vmem>>, vector<1x3x256xf32>
    %328 = vector.shape_cast %327 : vector<1x3x256xf32> to vector<3x256xf32>
    %329 = vector.shape_cast %326 : vector<3x256xf32> to vector<1x3x256xf32>
    tpu.vector_store %arg10[%c0_257, %c0_258, %c0_259], %329 {strides = array<i32>} : memref<1x3x256xf32, #tpu.memory_space<vmem>>, vector<1x3x256xf32>,
    return
  }
  func.func @transform_0(%arg0: i32) -> (i32, i32, i32) {
    %c0_i32 = arith.constant 0 : i32
    %c0_i32_0 = arith.constant 0 : i32
    %c0_i32_1 = arith.constant 0 : i32
    return %arg0, %c0_i32, %c0_i32_0 : i32, i32, i32
  }
  func.func @transform_1(%arg0: i32) -> (i32, i32, i32) {
    %c0_i32 = arith.constant 0 : i32
    %c0_i32_0 = arith.constant 0 : i32
    %c0_i32_1 = arith.constant 0 : i32
    %c0_i32_2 = arith.constant 0 : i32
    return %c0_i32, %c0_i32_0, %c0_i32_1 : i32, i32, i32
  }
  func.func @transform_2(%arg0: i32) -> (i32, i32) {
    %c0_i32 = arith.constant 0 : i32
    %c0_i32_0 = arith.constant 0 : i32
    %c0_i32_1 = arith.constant 0 : i32
    return %c0_i32, %c0_i32_0 : i32, i32
  }
  func.func @transform_3(%arg0: i32) -> (i32, i32, i32) {
    %c0_i32 = arith.constant 0 : i32
    %c0_i32_0 = arith.constant 0 : i32
    %c0_i32_1 = arith.constant 0 : i32
    %c0_i32_2 = arith.constant 0 : i32
    return %c0_i32, %c0_i32_0, %c0_i32_1 : i32, i32, i32
  }
  func.func @transform_4(%arg0: i32) -> (i32, i32) {
    %c0_i32 = arith.constant 0 : i32
    %c0_i32_0 = arith.constant 0 : i32
    %c0_i32_1 = arith.constant 0 : i32
    return %c0_i32, %c0_i32_0 : i32, i32
  }
  func.func @transform_5(%arg0: i32) -> (i32, i32, i32) {
    %c0_i32 = arith.constant 0 : i32
    %c0_i32_0 = arith.constant 0 : i32
    %c0_i32_1 = arith.constant 0 : i32
    %c0_i32_2 = arith.constant 0 : i32
    return %c0_i32, %c0_i32_0, %c0_i32_1 : i32, i32, i32
  }
  func.func @transform_6(%arg0: i32) -> (i32, i32) {
    %c0_i32 = arith.constant 0 : i32
    %c0_i32_0 = arith.constant 0 : i32
    %c0_i32_1 = arith.constant 0 : i32
    return %c0_i32, %c0_i32_0 : i32, i32
  }
  func.func @transform_7(%arg0: i32) -> (i32, i32, i32) {
    %c0_i32 = arith.constant 0 : i32
    %c0_i32_0 = arith.constant 0 : i32
    %c0_i32_1 = arith.constant 0 : i32
    %c0_i32_2 = arith.constant 0 : i32
    return %c0_i32, %c0_i32_0, %c0_i32_1 : i32, i32, i32
  }
  func.func @transform_8(%arg0: i32) -> (i32, i32) {
    %c0_i32 = arith.constant 0 : i32
    %c0_i32_0 = arith.constant 0 : i32
    %c0_i32_1 = arith.constant 0 : i32
    return %c0_i32, %c0_i32_0 : i32, i32
  }
  func.func @transform_9(%arg0: i32) -> (i32, i32, i32) {
    %c0_i32 = arith.constant 0 : i32
    %c0_i32_0 = arith.constant 0 : i32
    %c0_i32_1 = arith.constant 0 : i32
    return %arg0, %c0_i32, %c0_i32_0 : i32, i32, i32
  }
}

</mosaic_0001>

<llo_original>
// kernel: tpu_custom_call.1
$region0: #{tpu_custom_call.1}
  #allocation0 [shape = 'u32[]', space=smem, size = 0x4, offset = 0x4, fixed_abs, tag = 'smem constant byte address 0x4 - core index']
  #allocation1 [shape = 'u32[144,128]{1,0:T(1,128)}', space=vmem, size = 0x12000, scoped, tag = 'internal scratch']
  #allocation2 [shape = 'f32[16,290]{1,0:T(8,128)}', space=vmem, size = 0x6000, scoped, tag = 'scratch operand']
  %s0 = inlined_call_operand.vmem [shape: f32[2,12,256], index: 0, kind: input, shape index: {}]
  %s1 = inlined_call_operand.vmem [shape: f32[9,16,12], index: 1, kind: input, shape index: {}]
  %s2 = inlined_call_operand.vmem [shape: f32[16,1], index: 2, kind: input, shape index: {}]
  %s3 = inlined_call_operand.vmem [shape: f32[9,8,16], index: 3, kind: input, shape index: {}]
  %s4 = inlined_call_operand.vmem [shape: f32[8,1], index: 4, kind: input, shape index: {}]
  %s5 = inlined_call_operand.vmem [shape: f32[9,4,8], index: 5, kind: input, shape index: {}]
  %s6 = inlined_call_operand.vmem [shape: f32[4,1], index: 6, kind: input, shape index: {}]
  %s7 = inlined_call_operand.vmem [shape: f32[9,3,4], index: 7, kind: input, shape index: {}]
  %s8 = inlined_call_operand.vmem [shape: f32[3,1], index: 8, kind: input, shape index: {}]
  %s9 = inlined_call_operand.vmem [shape: f32[2,3,256], index: 9, kind: output, shape index: {}]
  %s10 = sld [smem:[#allocation0]]
  $region69: #{tpu_custom_call.1} parent=0
    _
  %s12 = ssub.s32 1, %s10
  %s13 = scalar_select 0, %s12, %s10
  loop: start=0, step=1, limit=4
  $region2: #{tpu_custom_call.1} parent=0 // loop_pre_header
    _
  $region3: #{tpu_custom_call.1} parent=0 // loop_header
    %s15 = sphi 0, %s19
    %p16 = scmp.ge.s32.totalorder %s15, 4
    %s25 = sphi 0, %s27
    %s28 = sphi 0, %s25
    %s29 = sphi 0, %s28
    %s45 = sphi 0, %s29
    %s49 = sphi 0, %s49
    %s51 = sphi 0, %s49
    %s52 = sphi 0, %s51
    %s66 = sphi 0, %s52
    %s70 = sphi 0, %s70
    %s72 = sphi 0, %s70
    %s73 = sphi 0, %s72
    %s87 = sphi 0, %s73
    %s91 = sphi 0, %s91
    %s93 = sphi 0, %s91
    %s94 = sphi 0, %s93
    %s108 = sphi 0, %s94
    %s112 = sphi 0, %s112
    %s114 = sphi 0, %s112
    %s115 = sphi 0, %s114
    %s129 = sphi 0, %s115
    %s133 = sphi 0, %s133
    %s135 = sphi 0, %s133
    %s136 = sphi 0, %s135
    %s150 = sphi 0, %s136
    %s154 = sphi 0, %s154
    %s156 = sphi 0, %s154
    %s157 = sphi 0, %s156
    %s171 = sphi 0, %s157
    %s175 = sphi 0, %s175
    %s177 = sphi 0, %s175
    %s178 = sphi 0, %s177
    %s192 = sphi 0, %s178
    %s196 = sphi 0, %s196
    %s198 = sphi 0, %s196
    %s199 = sphi 0, %s198
    %s213 = sphi 0, %s199
    %s219 = sphi 0, %s221
    %s222 = sphi 0, %s219
    %s223 = sphi 0, %s222
    %s239 = sphi 0, %s223
  $region4: #{tpu_custom_call.1} parent=0 // loop_header_branch
    %18 = sbr.rel (%p16) target = $region8
  $region5: #{tpu_custom_call.1} parent=0 // loop_body
    %s20 = ssub.s32 %s15, 1
    %s21 = ssub.s32 %s15, 2
    %s22 = sadd.s32 %s15, 1
    %s23 = ssub.s32 %s15, %s22
    %p24 = scmp.eq.s32.totalorder %s23, 0
    %s26 = sadd.s32 %s25, 1
    %s27 = scalar_select %p24, %s25, %s26
    %p30 = pneg %p24
    %p31 = scmp.eq.s32.totalorder %s15, 1
    %p32 = por %p30, %p31
    %p33 = scmp.ne.s32.totalorder %s25, %s28
    %p34 = scmp.eq.s32.totalorder %s15, 0
    %p35 = por %p33, %p34
    %p36 = scmp.ne.s32.totalorder %s25, %s28
    %p37 = scmp.eq.s32.totalorder %s20, 1
    %p38 = por %p36, %p37
    %p39 = scmp.ne.s32.totalorder %s28, %s29
    %p40 = scmp.eq.s32.totalorder %s20, 0
    %p41 = por %p39, %p40
    %p42 = scmp.ne.s32.totalorder %s28, %s29
    %p43 = scmp.eq.s32.totalorder %s21, 1
    %p44 = por %p42, %p43
    %p46 = scmp.ne.s32.totalorder %s29, %s45
    %p47 = scmp.eq.s32.totalorder %s21, 0
    %p48 = por %p46, %p47
    %s50 = sadd.s32 %s49, 1
    %p53 = scmp.eq.s32.totalorder %s15, 1
    %p54 = scmp.ne.s32.totalorder %s49, %s51
    %p55 = scmp.eq.s32.totalorder %s15, 0
    %p56 = por %p54, %p55
    %p57 = scmp.ne.s32.totalorder %s49, %s51
    %p58 = scmp.eq.s32.totalorder %s20, 1
    %p59 = por %p57, %p58
    %p60 = scmp.ne.s32.totalorder %s51, %s52
    %p61 = scmp.eq.s32.totalorder %s20, 0
    %p62 = por %p60, %p61
    %p63 = scmp.ne.s32.totalorder %s51, %s52
    %p64 = scmp.eq.s32.totalorder %s21, 1
    %p65 = por %p63, %p64
    %p67 = scmp.ne.s32.totalorder %s52, %s66
    %p68 = scmp.eq.s32.totalorder %s21, 0
    %p69 = por %p67, %p68
    %s71 = sadd.s32 %s70, 1
    %p74 = scmp.eq.s32.totalorder %s15, 1
    %p75 = scmp.ne.s32.totalorder %s70, %s72
    %p76 = scmp.eq.s32.totalorder %s15, 0
    %p77 = por %p75, %p76
    %p78 = scmp.ne.s32.totalorder %s70, %s72
    %p79 = scmp.eq.s32.totalorder %s20, 1
    %p80 = por %p78, %p79
    %p81 = scmp.ne.s32.totalorder %s72, %s73
    %p82 = scmp.eq.s32.totalorder %s20, 0
    %p83 = por %p81, %p82
    %p84 = scmp.ne.s32.totalorder %s72, %s73
    %p85 = scmp.eq.s32.totalorder %s21, 1
    %p86 = por %p84, %p85
    %p88 = scmp.ne.s32.totalorder %s73, %s87
    %p89 = scmp.eq.s32.totalorder %s21, 0
    %p90 = por %p88, %p89
    %s92 = sadd.s32 %s91, 1
    %p95 = scmp.eq.s32.totalorder %s15, 1
    %p96 = scmp.ne.s32.totalorder %s91, %s93
    %p97 = scmp.eq.s32.totalorder %s15, 0
    %p98 = por %p96, %p97
    %p99 = scmp.ne.s32.totalorder %s91, %s93
    %p100 = scmp.eq.s32.totalorder %s20, 1
    %p101 = por %p99, %p100
    %p102 = scmp.ne.s32.totalorder %s93, %s94
    %p103 = scmp.eq.s32.totalorder %s20, 0
    %p104 = por %p102, %p103
    %p105 = scmp.ne.s32.totalorder %s93, %s94
    %p106 = scmp.eq.s32.totalorder %s21, 1
    %p107 = por %p105, %p106
    %p109 = scmp.ne.s32.totalorder %s94, %s108
    %p110 = scmp.eq.s32.totalorder %s21, 0
    %p111 = por %p109, %p110
    %s113 = sadd.s32 %s112, 1
    %p116 = scmp.eq.s32.totalorder %s15, 1
    %p117 = scmp.ne.s32.totalorder %s112, %s114
    %p118 = scmp.eq.s32.totalorder %s15, 0
    %p119 = por %p117, %p118
    %p120 = scmp.ne.s32.totalorder %s112, %s114
    %p121 = scmp.eq.s32.totalorder %s20, 1
    %p122 = por %p120, %p121
    %p123 = scmp.ne.s32.totalorder %s114, %s115
    %p124 = scmp.eq.s32.totalorder %s20, 0
    %p125 = por %p123, %p124
    %p126 = scmp.ne.s32.totalorder %s114, %s115
    %p127 = scmp.eq.s32.totalorder %s21, 1
    %p128 = por %p126, %p127
    %p130 = scmp.ne.s32.totalorder %s115, %s129
    %p131 = scmp.eq.s32.totalorder %s21, 0
    %p132 = por %p130, %p131
    %s134 = sadd.s32 %s133, 1
    %p137 = scmp.eq.s32.totalorder %s15, 1
    %p138 = scmp.ne.s32.totalorder %s133, %s135
    %p139 = scmp.eq.s32.totalorder %s15, 0
    %p140 = por %p138, %p139
    %p141 = scmp.ne.s32.totalorder %s133, %s135
    %p142 = scmp.eq.s32.totalorder %s20, 1
    %p143 = por %p141, %p142
    %p144 = scmp.ne.s32.totalorder %s135, %s136
    %p145 = scmp.eq.s32.totalorder %s20, 0
    %p146 = por %p144, %p145
    %p147 = scmp.ne.s32.totalorder %s135, %s136
    %p148 = scmp.eq.s32.totalorder %s21, 1
    %p149 = por %p147, %p148
    %p151 = scmp.ne.s32.totalorder %s136, %s150
    %p152 = scmp.eq.s32.totalorder %s21, 0
    %p153 = por %p151, %p152
    %s155 = sadd.s32 %s154, 1
    %p158 = scmp.eq.s32.totalorder %s15, 1
    %p159 = scmp.ne.s32.totalorder %s154, %s156
    %p160 = scmp.eq.s32.totalorder %s15, 0
    %p161 = por %p159, %p160
    %p162 = scmp.ne.s32.totalorder %s154, %s156
    %p163 = scmp.eq.s32.totalorder %s20, 1
    %p164 = por %p162, %p163
    %p165 = scmp.ne.s32.totalorder %s156, %s157
    %p166 = scmp.eq.s32.totalorder %s20, 0
    %p167 = por %p165, %p166
    %p168 = scmp.ne.s32.totalorder %s156, %s157
    %p169 = scmp.eq.s32.totalorder %s21, 1
    %p170 = por %p168, %p169
    %p172 = scmp.ne.s32.totalorder %s157, %s171
    %p173 = scmp.eq.s32.totalorder %s21, 0
    %p174 = por %p172, %p173
    %s176 = sadd.s32 %s175, 1
    %p179 = scmp.eq.s32.totalorder %s15, 1
    %p180 = scmp.ne.s32.totalorder %s175, %s177
    %p181 = scmp.eq.s32.totalorder %s15, 0
    %p182 = por %p180, %p181
    %p183 = scmp.ne.s32.totalorder %s175, %s177
    %p184 = scmp.eq.s32.totalorder %s20, 1
    %p185 = por %p183, %p184
    %p186 = scmp.ne.s32.totalorder %s177, %s178
    %p187 = scmp.eq.s32.totalorder %s20, 0
    %p188 = por %p186, %p187
    %p189 = scmp.ne.s32.totalorder %s177, %s178
    %p190 = scmp.eq.s32.totalorder %s21, 1
    %p191 = por %p189, %p190
    %p193 = scmp.ne.s32.totalorder %s178, %s192
    %p194 = scmp.eq.s32.totalorder %s21, 0
    %p195 = por %p193, %p194
    %s197 = sadd.s32 %s196, 1
    %p200 = scmp.eq.s32.totalorder %s15, 1
    %p201 = scmp.ne.s32.totalorder %s196, %s198
    %p202 = scmp.eq.s32.totalorder %s15, 0
    %p203 = por %p201, %p202
    %p204 = scmp.ne.s32.totalorder %s196, %s198
    %p205 = scmp.eq.s32.totalorder %s20, 1
    %p206 = por %p204, %p205
    %p207 = scmp.ne.s32.totalorder %s198, %s199
    %p208 = scmp.eq.s32.totalorder %s20, 0
    %p209 = por %p207, %p208
    %p210 = scmp.ne.s32.totalorder %s198, %s199
    %p211 = scmp.eq.s32.totalorder %s21, 1
    %p212 = por %p210, %p211
    %p214 = scmp.ne.s32.totalorder %s199, %s213
    %p215 = scmp.eq.s32.totalorder %s21, 0
    %p216 = por %p214, %p215
    %s217 = ssub.s32 %s15, %s22
    %p218 = scmp.eq.s32.totalorder %s217, 0
    %s220 = sadd.s32 %s219, 1
    %s221 = scalar_select %p218, %s219, %s220
    %p224 = pneg %p218
    %p225 = scmp.eq.s32.totalorder %s15, 1
    %p226 = por %p224, %p225
    %p227 = scmp.ne.s32.totalorder %s219, %s222
    %p228 = scmp.eq.s32.totalorder %s15, 0
    %p229 = por %p227, %p228
    %p230 = scmp.ne.s32.totalorder %s219, %s222
    %p231 = scmp.eq.s32.totalorder %s20, 1
    %p232 = por %p230, %p231
    %p233 = scmp.ne.s32.totalorder %s222, %s223
    %p234 = scmp.eq.s32.totalorder %s20, 0
    %p235 = por %p233, %p234
    %p236 = scmp.ne.s32.totalorder %s222, %s223
    %p237 = scmp.eq.s32.totalorder %s21, 1
    %p238 = por %p236, %p237
    %p240 = scmp.ne.s32.totalorder %s223, %s239
    %p241 = scmp.eq.s32.totalorder %s21, 0
    %p242 = por %p240, %p241
    %p243 = scmp.le.s32.totalorder 1, %s15
    %p244 = scmp.lt.s32.totalorder %s15, 3
    %p245 = pnand %p243, %p244
    %p246 = pneg %p245
    // Predicated region
    $region9: #{tpu_custom_call.1} parent=5 // pred_check
      _
    $region10: #{tpu_custom_call.1} parent=5 // pred_check_branch
      %248 = sbr.rel (%p245) target = $region12
    $region11: #{tpu_custom_call.1} parent=5 // pred_region
      %s249 = ssub.s32 %s15, 1
      // Predicated region
      $region13: #{tpu_custom_call.1} parent=11 // pred_check
        %p250 = pneg %p62
      $region14: #{tpu_custom_call.1} parent=11 // pred_check_branch
        %252 = sbr.rel (%p250) target = $region16
      $region15: #{tpu_custom_call.1} parent=11 // pred_region
        _
      $region16: #{tpu_custom_call.1} parent=11 // pred_fallthru
        _
      // Predicated region
      $region17: #{tpu_custom_call.1} parent=11 // pred_check
        %p253 = pneg %p83
      $region18: #{tpu_custom_call.1} parent=11 // pred_check_branch
        %255 = sbr.rel (%p253) target = $region20
      $region19: #{tpu_custom_call.1} parent=11 // pred_region
        _
      $region20: #{tpu_custom_call.1} parent=11 // pred_fallthru
        _
      // Predicated region
      $region21: #{tpu_custom_call.1} parent=11 // pred_check
        %p256 = pneg %p104
      $region22: #{tpu_custom_call.1} parent=11 // pred_check_branch
        %258 = sbr.rel (%p256) target = $region24
      $region23: #{tpu_custom_call.1} parent=11 // pred_region
        _
      $region24: #{tpu_custom_call.1} parent=11 // pred_fallthru
        _
      // Predicated region
      $region25: #{tpu_custom_call.1} parent=11 // pred_check
        %p259 = pneg %p125
      $region26: #{tpu_custom_call.1} parent=11 // pred_check_branch
        %261 = sbr.rel (%p259) target = $region28
      $region27: #{tpu_custom_call.1} parent=11 // pred_region
        _
      $region28: #{tpu_custom_call.1} parent=11 // pred_fallthru
        _
      // Predicated region
      $region29: #{tpu_custom_call.1} parent=11 // pred_check
        %p262 = pneg %p146
      $region30: #{tpu_custom_call.1} parent=11 // pred_check_branch
        %264 = sbr.rel (%p262) target = $region32
      $region31: #{tpu_custom_call.1} parent=11 // pred_region
        _
      $region32: #{tpu_custom_call.1} parent=11 // pred_fallthru
        _
      // Predicated region
      $region33: #{tpu_custom_call.1} parent=11 // pred_check
        %p265 = pneg %p167
      $region34: #{tpu_custom_call.1} parent=11 // pred_check_branch
        %267 = sbr.rel (%p265) target = $region36
      $region35: #{tpu_custom_call.1} parent=11 // pred_region
        _
      $region36: #{tpu_custom_call.1} parent=11 // pred_fallthru
        _
      // Predicated region
      $region37: #{tpu_custom_call.1} parent=11 // pred_check
        %p268 = pneg %p188
      $region38: #{tpu_custom_call.1} parent=11 // pred_check_branch
        %270 = sbr.rel (%p268) target = $region40
      $region39: #{tpu_custom_call.1} parent=11 // pred_region
        _
      $region40: #{tpu_custom_call.1} parent=11 // pred_fallthru
        _
      // Predicated region
      $region41: #{tpu_custom_call.1} parent=11 // pred_check
        %p271 = pneg %p209
      $region42: #{tpu_custom_call.1} parent=11 // pred_check_branch
        %273 = sbr.rel (%p271) target = $region44
      $region43: #{tpu_custom_call.1} parent=11 // pred_region
        _
      $region44: #{tpu_custom_call.1} parent=11 // pred_fallthru
        _
    $region12: #{tpu_custom_call.1} parent=5 // pred_fallthru
      _
    %p274 = scmp.lt.s32.totalorder %s15, 2
    // Predicated region
    $region45: #{tpu_custom_call.1} parent=5 // pred_check
      %p275 = pneg %p274
    $region46: #{tpu_custom_call.1} parent=5 // pred_check_branch
      %277 = sbr.rel (%p275) target = $region48
    $region47: #{tpu_custom_call.1} parent=5 // pred_region
      // Predicated region
      $region49: #{tpu_custom_call.1} parent=47 // pred_check
        %p278 = pneg %p35
      $region50: #{tpu_custom_call.1} parent=47 // pred_check_branch
        %280 = sbr.rel (%p278) target = $region52
      $region51: #{tpu_custom_call.1} parent=47 // pred_region
        %p281 = scmp.lt.s32.totalorder %s15, 1
        %s282 = scalar_select %p281, %s15, 1
        %s283 = smul.addr %s282, 4
        %s284 = smul.addr %s283, 8
        %s285 = scalar_lea.vmem %s0, %s284
      $region52: #{tpu_custom_call.1} parent=47 // pred_fallthru
        _
    $region48: #{tpu_custom_call.1} parent=5 // pred_fallthru
      _
    %p286 = scmp.le.s32.totalorder 1, %s15
    %p287 = scmp.lt.s32.totalorder %s15, 3
    %p288 = pnand %p286, %p287
    %p289 = pneg %p288
    // Predicated region
    $region53: #{tpu_custom_call.1} parent=5 // pred_check
      _
    $region54: #{tpu_custom_call.1} parent=5 // pred_check_branch
      %291 = sbr.rel (%p288) target = $region56
    $region55: #{tpu_custom_call.1} parent=5 // pred_region
      %s292 = ssub.s32 %s15, 1
      %p293 = scmp.lt.s32.totalorder %s20, 1
      %s294 = scalar_select %p293, %s20, 1
      %s295 = smul.addr %s294, 4
      %s296 = smul.addr %s295, 8
      %s297 = scalar_lea.vmem %s0, %s296
      %p298 = pneg %p41
      %p299 = pneg %p38
      %p300 = pneg %p62
      %p301 = pneg %p59
      %p302 = pneg %p83
      %p303 = pneg %p80
      %p304 = pneg %p104
      %p305 = pneg %p101
      %p306 = pneg %p125
      %p307 = pneg %p122
      %p308 = pneg %p146
      %p309 = pneg %p143
      %p310 = pneg %p167
      %p311 = pneg %p164
      %p312 = pneg %p188
      %p313 = pneg %p185
      %p314 = pneg %p209
      %p315 = pneg %p206
      %p316 = pneg %p235
      %p317 = pneg %p232
      %p318 = scmp.lt.s32.totalorder %s20, 1
      %s319 = scalar_select %p318, %s20, 1
      %s320 = smul.addr %s319, 2
      %s321 = smul.addr %s320, 4
      %s322 = scalar_lea.vmem %s9, %s321
      %p323 = scmp.lt.s32.totalorder %s20, 1
      %s324 = scalar_select %p323, %s20, 1
      %s325 = smul.addr %s324, 4
      %s326 = smul.addr %s325, 8
      %s327 = scalar_lea.vmem %s0, %s326
      %p328 = scmp.lt.s32.totalorder %s20, 1
      %s329 = scalar_select %p328, %s20, 1
      %s330 = smul.addr %s329, 2
      %s331 = smul.addr %s330, 4
      %s332 = scalar_lea.vmem %s9, %s331
      %v333 = vlaneseq
      %v334 = vand.u32 %v333, 127
      %v335 = vadd.s32 %v334, 128
      %vm336 = vcmp.lt.s32.totalorder %v334, 0
      %v337 = vsub.s32 0, %v334
      %v338 = vsel %vm336, %v337, %v334
      %v339 = vshrl.u32 %v338, 4
      %v340 = vand.u32 %v338, 15
      %v341 = vsub.s32 0, %v340
      %v342 = vsel %vm336, %v341, %v340
      %vm343 = vcmp.lt.s32.totalorder %v335, 0
      %v344 = vsub.s32 0, %v335
      %v345 = vsel %vm343, %v344, %v335
      %v346 = vshrl.u32 %v345, 4
      %v347 = vand.u32 %v345, 15
      %v348 = vsub.s32 0, %v347
      %v349 = vsel %vm343, %v348, %v347
      %vm350 = vcmp.ne.s32.totalorder %v342, 0
      %vm351 = vcmp.ne.s32.totalorder %v349, 0
      %vm352 = vcmp.lt.s32.totalorder %v342, 0
      %vm353 = vcmp.lt.s32.totalorder %v349, 0
      %vm354 = vmand %vm352, %vm350
      %vm355 = vmand %vm353, %vm351
      %v356 = vadd.s32 %v342, 16
      %v357 = vadd.s32 %v349, 16
      %v358 = vsel %vm354, %v356, %v342
      %v359 = vsel %vm355, %v357, %v349
      %vm360 = vcmp.ne.s32.totalorder %v358, 0
      %vm361 = vcmp.ne.s32.totalorder %v359, 0
      %vm362 = vcmp.ne.s32.totalorder %v358, 15
      %vm363 = vcmp.ne.s32.totalorder %v359, 15
      %364 = vst [vmem:[#allocation2] sm:$0xff] 0.0
      %365 = vst [vmem:[#allocation2 + $0x8] sm:$0xff] 0.0
      %vm366 = vcmask 277504
      %367 = vst.msk [vmem:[#allocation2 + $0x10] sm:$0xff] %vm366, 0.0
      %368 = vst [vmem:[#allocation2 + $0x18] sm:$0xff] 0.0
      %369 = vst [vmem:[#allocation2 + $0x20] sm:$0xff] 0.0
      %370 = vst.msk [vmem:[#allocation2 + $0x28] sm:$0xff] %vm366, 0.0
      %v371 = vld [vmem:[%s327] sm:$0xff]
      %v372 = vld [vmem:[%s327 + $0x8] sm:$0xff]
      %v373 = vld [vmem:[%s327 + $0x10] sm:$0xf]
      %v374 = vld [vmem:[%s327 + $0x18] sm:$0xf]
      %379 = vrot.lane.b32.xlu0 %v371, 17
      %v380 = vpop.permute.xlu0 %379
      %381 = vrot.lane.b32.xlu0 %v372, 17
      %v382 = vpop.permute.xlu0 %381
      %383 = vrot.lane.b32.xlu0 %v373, 17
      %v384 = vpop.permute.xlu0 %383
      %385 = vrot.lane.b32.xlu0 %v374, 17
      %v386 = vpop.permute.xlu0 %385
      %vm387 = vcmask 138240
      %v388 = vsel %vm387, %v380, %v382
      %v389 = vsel %vm387, %v384, %v386
      %vm396 = vcmask 1047688
      %397 = vst.msk [vmem:[#allocation2] sm:$0xff] %vm396, %v380
      %398 = vst [vmem:[#allocation2 + $0x8] sm:$0xff] %v388
      %399 = vst.msk [vmem:[#allocation2 + $0x10] sm:$0xff] %vm387, %v382
      %vm400 = vcmask 1043592
      %401 = vst.msk [vmem:[#allocation2 + $0x18] sm:$0xf] %vm400, %v384
      %402 = vst [vmem:[#allocation2 + $0x20] sm:$0xf] %v389
      %vm403 = vcmask 134144
      %404 = vst.msk [vmem:[#allocation2 + $0x28] sm:$0xf] %vm403, %v386
      %v405 = vld [vmem:[#allocation2] sm:$0xff]
      %v406 = vld [vmem:[#allocation2 + $0x8] sm:$0xff]
      %v407 = vld [vmem:[#allocation2 + $0x18] sm:$0xf]
      %v408 = vld [vmem:[#allocation2 + $0x20] sm:$0xf]
      %v409 = vsel %vm360, 1, 0
      %v410 = vsel %vm361, 1, 0
      %vm411 = vcmp.eq.s32.totalorder %v409, 1
      %vm412 = vcmp.eq.s32.totalorder %v410, 1
      %v413 = vsel %vm411, %v405, 0.0
      %v414 = vsel %vm412, %v406, 0.0
      %v415 = vsel %vm411, %v407, 0.0
      %v416 = vsel %vm412, %v408, 0.0
      %v417 = vld [vmem:[%s1] sm:$0xff]
      %v418 = vld [vmem:[%s1 + $0x8] sm:$0xff]
      %v419 = vld [vmem:[#allocation2 + $0x10] sm:$0xff]
      %v420 = vld [vmem:[#allocation2 + $0x28] sm:$0xf]
      %s421 = scalar_lea.vmem %s1, 16
      %v422 = vld [vmem:[%s421] sm:$0xff]
      %v423 = vld [vmem:[%s421 + $0x8] sm:$0xff]
      %430 = vrot.lane.b32.xlu0 %v405, 127
      %v431 = vpop.permute.xlu0 %430
      %432 = vrot.lane.b32.xlu0 %v406, 127
      %v433 = vpop.permute.xlu0 %432
      %434 = vrot.lane.b32.xlu0 %v419, 127
      %v435 = vpop.permute.xlu0 %434
      %436 = vrot.lane.b32.xlu0 %v407, 127
      %v437 = vpop.permute.xlu0 %436
      %438 = vrot.lane.b32.xlu0 %v408, 127
      %v439 = vpop.permute.xlu0 %438
      %440 = vrot.lane.b32.xlu0 %v420, 127
      %v441 = vpop.permute.xlu0 %440
      %vm442 = vcmask 1039360
      %v443 = vsel %vm442, %v431, %v433
      %v444 = vsel %vm442, %v433, %v435
      %v445 = vsel %vm442, %v437, %v439
      %v446 = vsel %vm442, %v439, %v441
      %vm449 = vcmask 97280
      %v451 = vsel %vm449, %v422, 0
      %v454 = vsel %vm449, %v423, 0
      %vm456 = vcmask 1043456
      %v457 = vsel %vm456, %v445, 0
      %v459 = vsel %vm456, %v446, 0
      %461 = vmatprep.subr.mxu0 0.0
      %462 = vmatpush1.msra.mxu0 0.0
      %463 = vmatprep.subr.mxu0 0.0
      %464 = vmatpush1.msra.mxu0 0.0
      %465 = vmatprep.subr.mxu0 0.0
      %466 = vmatpush1.msra.mxu0 0.0
      %467 = vmatprep.subr.mxu0 0.0
      %468 = vmatpush1.msra.mxu0 0.0
      %469 = vmatprep.subr.mxu0 0.0
      %470 = vmatpush1.msra.mxu0 0.0
      %471 = vmatprep.subr.mxu0 0.0
      %472 = vmatpush1.msra.mxu0 0.0
      %473 = vmatprep.subr.mxu0 0.0
      %474 = vmatpush1.msra.mxu0 0.0
      %475 = vmatprep.subr.mxu0 0.0
      %476 = vmatpush1.msra.mxu0 0.0
      %477 = vmatprep.subr.mxu0 0.0
      %478 = vmatpush1.msra.mxu0 0.0
      %479 = vmatprep.subr.mxu0 0.0
      %480 = vmatpush1.msra.mxu0 0.0
      %481 = vmatprep.subr.mxu0 0.0
      %482 = vmatpush1.msra.mxu0 0.0
      %483 = vmatprep.subr.mxu0 0.0
      %484 = vmatpush1.msra.mxu0 0.0
      %485 = vmatprep.subr.mxu0 0.0
      %486 = vmatpush1.msra.mxu0 0.0
      %487 = vmatprep.subr.mxu0 0.0
      %488 = vmatpush1.msra.mxu0 0.0
      %489 = vmatprep.subr.mxu0 %v459
      %490 = vmatpush1.msra.mxu0 %v457
      %491 = vmatprep.subr.mxu0 %v444
      %492 = vmatpush1.msra.mxu0 %v443
      %493 = vmatprep.subr.mxu0 0.0
      %494 = vmatpush2.msra.mxu0 0.0
      %495 = vmatprep.subr.mxu0 0.0
      %496 = vmatpush2.msra.mxu0 0.0
      %497 = vmatprep.subr.mxu0 0.0
      %498 = vmatpush2.msra.mxu0 0.0
      %499 = vmatprep.subr.mxu0 0.0
      %500 = vmatpush2.msra.mxu0 0.0
      %501 = vmatprep.subr.mxu0 0.0
      %502 = vmatpush2.msra.mxu0 0.0
      %503 = vmatprep.subr.mxu0 0.0
      %504 = vmatpush2.msra.mxu0 0.0
      %505 = vmatprep.subr.mxu0 0.0
      %506 = vmatpush2.msra.mxu0 0.0
      %507 = vmatprep.subr.mxu0 0.0
      %508 = vmatpush2.msra.mxu0 0.0
      %509 = vmatprep.subr.mxu0 0.0
      %510 = vmatpush2.msra.mxu0 0.0
      %511 = vmatprep.subr.mxu0 0.0
      %512 = vmatpush2.msra.mxu0 0.0
      %513 = vmatprep.subr.mxu0 0.0
      %514 = vmatpush2.msra.mxu0 0.0
      %515 = vmatprep.subr.mxu0 0.0
      %516 = vmatpush2.msra.mxu0 0.0
      %517 = vmatprep.subr.mxu0 0.0
      %518 = vmatpush2.msra.mxu0 0.0
      %519 = vmatprep.subr.mxu0 0.0
      %520 = vmatpush2.msra.mxu0 0.0
      %521 = vmatprep.subr.mxu0 0.0
      %522 = vmatpush2.msra.mxu0 0.0
      %523 = vmatprep.subr.mxu0 0.0
      %524 = vmatpush2.msra.mxu0 0.0
      %525 = vmatprep.mubr.f32.mxu0 0.0
      %526 = vmatmul.mubr.f32.gmra.mxu0 %v451
      %v527 = vpop.f32.mrf.mxu0
      %v528 = vadd.f32 0.0, %v527
      %v529 = vpop.f32.mrf.mxu0
      %v530 = vadd.f32 0.0, %v529
      %531 = vmatprep.mubr.f32.mxu0 0.0
      %532 = vmatmul.mubr.f32.gmra.mxu0 %v454
      %v533 = vpop.f32.mrf.mxu0
      %v534 = vadd.f32 0.0, %v533
      %v535 = vpop.f32.mrf.mxu0
      %v536 = vadd.f32 0.0, %v535
      %537 = vdwg.mxu0
      %v539 = vsel %vm449, %v417, 0
      %v542 = vsel %vm449, %v418, 0
      %v545 = vsel %vm456, %v415, 0
      %v548 = vsel %vm456, %v416, 0
      %550 = vmatprep.subr.mxu0 0.0
      %551 = vmatpush1.msra.mxu0 0.0
      %552 = vmatprep.subr.mxu0 0.0
      %553 = vmatpush1.msra.mxu0 0.0
      %554 = vmatprep.subr.mxu0 0.0
      %555 = vmatpush1.msra.mxu0 0.0
      %556 = vmatprep.subr.mxu0 0.0
      %557 = vmatpush1.msra.mxu0 0.0
      %558 = vmatprep.subr.mxu0 0.0
      %559 = vmatpush1.msra.mxu0 0.0
      %560 = vmatprep.subr.mxu0 0.0
      %561 = vmatpush1.msra.mxu0 0.0
      %562 = vmatprep.subr.mxu0 0.0
      %563 = vmatpush1.msra.mxu0 0.0
      %564 = vmatprep.subr.mxu0 0.0
      %565 = vmatpush1.msra.mxu0 0.0
      %566 = vmatprep.subr.mxu0 0.0
      %567 = vmatpush1.msra.mxu0 0.0
      %568 = vmatprep.subr.mxu0 0.0
      %569 = vmatpush1.msra.mxu0 0.0
      %570 = vmatprep.subr.mxu0 0.0
      %571 = vmatpush1.msra.mxu0 0.0
      %572 = vmatprep.subr.mxu0 0.0
      %573 = vmatpush1.msra.mxu0 0.0
      %574 = vmatprep.subr.mxu0 0.0
      %575 = vmatpush1.msra.mxu0 0.0
      %576 = vmatprep.subr.mxu0 0.0
      %577 = vmatpush1.msra.mxu0 0.0
      %578 = vmatprep.subr.mxu0 %v548
      %579 = vmatpush1.msra.mxu0 %v545
      %580 = vmatprep.subr.mxu0 %v414
      %581 = vmatpush1.msra.mxu0 %v413
      %582 = vmatprep.subr.mxu0 0.0
      %583 = vmatpush2.msra.mxu0 0.0
      %584 = vmatprep.subr.mxu0 0.0
      %585 = vmatpush2.msra.mxu0 0.0
      %586 = vmatprep.subr.mxu0 0.0
      %587 = vmatpush2.msra.mxu0 0.0
      %588 = vmatprep.subr.mxu0 0.0
      %589 = vmatpush2.msra.mxu0 0.0
      %590 = vmatprep.subr.mxu0 0.0
      %591 = vmatpush2.msra.mxu0 0.0
      %592 = vmatprep.subr.mxu0 0.0
      %593 = vmatpush2.msra.mxu0 0.0
      %594 = vmatprep.subr.mxu0 0.0
      %595 = vmatpush2.msra.mxu0 0.0
      %596 = vmatprep.subr.mxu0 0.0
      %597 = vmatpush2.msra.mxu0 0.0
      %598 = vmatprep.subr.mxu0 0.0
      %599 = vmatpush2.msra.mxu0 0.0
      %600 = vmatprep.subr.mxu0 0.0
      %601 = vmatpush2.msra.mxu0 0.0
      %602 = vmatprep.subr.mxu0 0.0
      %603 = vmatpush2.msra.mxu0 0.0
      %604 = vmatprep.subr.mxu0 0.0
      %605 = vmatpush2.msra.mxu0 0.0
      %606 = vmatprep.subr.mxu0 0.0
      %607 = vmatpush2.msra.mxu0 0.0
      %608 = vmatprep.subr.mxu0 0.0
      %609 = vmatpush2.msra.mxu0 0.0
      %610 = vmatprep.subr.mxu0 0.0
      %611 = vmatpush2.msra.mxu0 0.0
      %612 = vmatprep.subr.mxu0 0.0
      %613 = vmatpush2.msra.mxu0 0.0
      %614 = vmatprep.mubr.f32.mxu0 0.0
      %615 = vmatmul.mubr.f32.gmra.mxu0 %v539
      %v616 = vpop.f32.mrf.mxu0
      %v617 = vadd.f32 %v528, %v616
      %v618 = vpop.f32.mrf.mxu0
      %v619 = vadd.f32 %v530, %v618
      %620 = vmatprep.mubr.f32.mxu0 0.0
      %621 = vmatmul.mubr.f32.gmra.mxu0 %v542
      %v622 = vpop.f32.mrf.mxu0
      %v623 = vadd.f32 %v534, %v622
      %v624 = vpop.f32.mrf.mxu0
      %v625 = vadd.f32 %v536, %v624
      %626 = vdwg.mxu0
      %v627 = vsel %vm362, 1, 0
      %v628 = vsel %vm363, 1, 0
      %vm629 = vcmp.eq.s32.totalorder %v627, 1
      %vm630 = vcmp.eq.s32.totalorder %v628, 1
      %631 = vrot.lane.b32.xlu0 %v405, 126
      %v632 = vpop.permute.xlu0 %631
      %633 = vrot.lane.b32.xlu0 %v406, 126
      %v634 = vpop.permute.xlu0 %633
      %635 = vrot.lane.b32.xlu0 %v419, 126
      %v636 = vpop.permute.xlu0 %635
      %637 = vrot.lane.b32.xlu0 %v407, 126
      %v638 = vpop.permute.xlu0 %637
      %639 = vrot.lane.b32.xlu0 %v408, 126
      %v640 = vpop.permute.xlu0 %639
      %641 = vrot.lane.b32.xlu0 %v420, 126
      %v642 = vpop.permute.xlu0 %641
      %vm643 = vcmask 1031168
      %v644 = vsel %vm643, %v632, %v634
      %v645 = vsel %vm643, %v634, %v636
      %v646 = vsel %vm643, %v638, %v640
      %v647 = vsel %vm643, %v640, %v642
      %v652 = vsel %vm629, %v644, 0.0
      %v653 = vsel %vm630, %v645, 0.0
      %v654 = vsel %vm629, %v646, 0.0
      %v655 = vsel %vm630, %v647, 0.0
      %s656 = scalar_lea.vmem %s1, 32
      %v657 = vld [vmem:[%s656] sm:$0xff]
      %v658 = vld [vmem:[%s656 + $0x8] sm:$0xff]
      %v660 = vsel %vm449, %v657, 0
      %v663 = vsel %vm449, %v658, 0
      %v666 = vsel %vm456, %v654, 0
      %v669 = vsel %vm456, %v655, 0
      %671 = vmatprep.subr.mxu0 0.0
      %672 = vmatpush1.msra.mxu0 0.0
      %673 = vmatprep.subr.mxu0 0.0
      %674 = vmatpush1.msra.mxu0 0.0
      %675 = vmatprep.subr.mxu0 0.0
      %676 = vmatpush1.msra.mxu0 0.0
      %677 = vmatprep.subr.mxu0 0.0
      %678 = vmatpush1.msra.mxu0 0.0
      %679 = vmatprep.subr.mxu0 0.0
      %680 = vmatpush1.msra.mxu0 0.0
      %681 = vmatprep.subr.mxu0 0.0
      %682 = vmatpush1.msra.mxu0 0.0
      %683 = vmatprep.subr.mxu0 0.0
      %684 = vmatpush1.msra.mxu0 0.0
      %685 = vmatprep.subr.mxu0 0.0
      %686 = vmatpush1.msra.mxu0 0.0
      %687 = vmatprep.subr.mxu0 0.0
      %688 = vmatpush1.msra.mxu0 0.0
      %689 = vmatprep.subr.mxu0 0.0
      %690 = vmatpush1.msra.mxu0 0.0
      %691 = vmatprep.subr.mxu0 0.0
      %692 = vmatpush1.msra.mxu0 0.0
      %693 = vmatprep.subr.mxu0 0.0
      %694 = vmatpush1.msra.mxu0 0.0
      %695 = vmatprep.subr.mxu0 0.0
      %696 = vmatpush1.msra.mxu0 0.0
      %697 = vmatprep.subr.mxu0 0.0
      %698 = vmatpush1.msra.mxu0 0.0
      %699 = vmatprep.subr.mxu0 %v669
      %700 = vmatpush1.msra.mxu0 %v666
      %701 = vmatprep.subr.mxu0 %v653
      %702 = vmatpush1.msra.mxu0 %v652
      %703 = vmatprep.subr.mxu0 0.0
      %704 = vmatpush2.msra.mxu0 0.0
      %705 = vmatprep.subr.mxu0 0.0
      %706 = vmatpush2.msra.mxu0 0.0
      %707 = vmatprep.subr.mxu0 0.0
      %708 = vmatpush2.msra.mxu0 0.0
      %709 = vmatprep.subr.mxu0 0.0
      %710 = vmatpush2.msra.mxu0 0.0
      %711 = vmatprep.subr.mxu0 0.0
      %712 = vmatpush2.msra.mxu0 0.0
      %713 = vmatprep.subr.mxu0 0.0
      %714 = vmatpush2.msra.mxu0 0.0
      %715 = vmatprep.subr.mxu0 0.0
      %716 = vmatpush2.msra.mxu0 0.0
      %717 = vmatprep.subr.mxu0 0.0
      %718 = vmatpush2.msra.mxu0 0.0
      %719 = vmatprep.subr.mxu0 0.0
      %720 = vmatpush2.msra.mxu0 0.0
      %721 = vmatprep.subr.mxu0 0.0
      %722 = vmatpush2.msra.mxu0 0.0
      %723 = vmatprep.subr.mxu0 0.0
      %724 = vmatpush2.msra.mxu0 0.0
      %725 = vmatprep.subr.mxu0 0.0
      %726 = vmatpush2.msra.mxu0 0.0
      %727 = vmatprep.subr.mxu0 0.0
      %728 = vmatpush2.msra.mxu0 0.0
      %729 = vmatprep.subr.mxu0 0.0
      %730 = vmatpush2.msra.mxu0 0.0
      %731 = vmatprep.subr.mxu0 0.0
      %732 = vmatpush2.msra.mxu0 0.0
      %733 = vmatprep.subr.mxu0 0.0
      %734 = vmatpush2.msra.mxu0 0.0
      %735 = vmatprep.mubr.f32.mxu0 0.0
      %736 = vmatmul.mubr.f32.gmra.mxu0 %v660
      %v737 = vpop.f32.mrf.mxu0
      %v738 = vadd.f32 0.0, %v737
      %v739 = vpop.f32.mrf.mxu0
      %v740 = vadd.f32 0.0, %v739
      %741 = vmatprep.mubr.f32.mxu0 0.0
      %742 = vmatmul.mubr.f32.gmra.mxu0 %v663
      %v743 = vpop.f32.mrf.mxu0
      %v744 = vadd.f32 0.0, %v743
      %v745 = vpop.f32.mrf.mxu0
      %v746 = vadd.f32 0.0, %v745
      %747 = vdwg.mxu0
      %v748 = vadd.f32 %v617, %v738
      %v749 = vadd.f32 %v619, %v740
      %v750 = vadd.f32 %v623, %v744
      %v751 = vadd.f32 %v625, %v746
      %752 = vrot.lane.b32.xlu0 %v405, 112
      %v753 = vpop.permute.xlu0 %752
      %754 = vrot.lane.b32.xlu0 %v406, 112
      %v755 = vpop.permute.xlu0 %754
      %756 = vrot.lane.b32.xlu0 %v419, 112
      %v757 = vpop.permute.xlu0 %756
      %758 = vrot.lane.b32.xlu0 %v407, 112
      %v759 = vpop.permute.xlu0 %758
      %760 = vrot.lane.b32.xlu0 %v408, 112
      %v761 = vpop.permute.xlu0 %760
      %762 = vrot.lane.b32.xlu0 %v420, 112
      %v763 = vpop.permute.xlu0 %762
      %vm764 = vcmask 916480
      %v765 = vsel %vm764, %v753, %v755
      %v766 = vsel %vm764, %v755, %v757
      %v767 = vsel %vm764, %v759, %v761
      %v768 = vsel %vm764, %v761, %v763
      %v773 = vsel %vm411, %v765, 0.0
      %v774 = vsel %vm412, %v766, 0.0
      %v775 = vsel %vm411, %v767, 0.0
      %v776 = vsel %vm412, %v768, 0.0
      %s777 = scalar_lea.vmem %s1, 48
      %v778 = vld [vmem:[%s777] sm:$0xff]
      %v779 = vld [vmem:[%s777 + $0x8] sm:$0xff]
      %v781 = vsel %vm449, %v778, 0
      %v784 = vsel %vm449, %v779, 0
      %v787 = vsel %vm456, %v775, 0
      %v790 = vsel %vm456, %v776, 0
      %792 = vmatprep.subr.mxu0 0.0
      %793 = vmatpush1.msra.mxu0 0.0
      %794 = vmatprep.subr.mxu0 0.0
      %795 = vmatpush1.msra.mxu0 0.0
      %796 = vmatprep.subr.mxu0 0.0
      %797 = vmatpush1.msra.mxu0 0.0
      %798 = vmatprep.subr.mxu0 0.0
      %799 = vmatpush1.msra.mxu0 0.0
      %800 = vmatprep.subr.mxu0 0.0
      %801 = vmatpush1.msra.mxu0 0.0
      %802 = vmatprep.subr.mxu0 0.0
      %803 = vmatpush1.msra.mxu0 0.0
      %804 = vmatprep.subr.mxu0 0.0
      %805 = vmatpush1.msra.mxu0 0.0
      %806 = vmatprep.subr.mxu0 0.0
      %807 = vmatpush1.msra.mxu0 0.0
      %808 = vmatprep.subr.mxu0 0.0
      %809 = vmatpush1.msra.mxu0 0.0
      %810 = vmatprep.subr.mxu0 0.0
      %811 = vmatpush1.msra.mxu0 0.0
      %812 = vmatprep.subr.mxu0 0.0
      %813 = vmatpush1.msra.mxu0 0.0
      %814 = vmatprep.subr.mxu0 0.0
      %815 = vmatpush1.msra.mxu0 0.0
      %816 = vmatprep.subr.mxu0 0.0
      %817 = vmatpush1.msra.mxu0 0.0
      %818 = vmatprep.subr.mxu0 0.0
      %819 = vmatpush1.msra.mxu0 0.0
      %820 = vmatprep.subr.mxu0 %v790
      %821 = vmatpush1.msra.mxu0 %v787
      %822 = vmatprep.subr.mxu0 %v774
      %823 = vmatpush1.msra.mxu0 %v773
      %824 = vmatprep.subr.mxu0 0.0
      %825 = vmatpush2.msra.mxu0 0.0
      %826 = vmatprep.subr.mxu0 0.0
      %827 = vmatpush2.msra.mxu0 0.0
      %828 = vmatprep.subr.mxu0 0.0
      %829 = vmatpush2.msra.mxu0 0.0
      %830 = vmatprep.subr.mxu0 0.0
      %831 = vmatpush2.msra.mxu0 0.0
      %832 = vmatprep.subr.mxu0 0.0
      %833 = vmatpush2.msra.mxu0 0.0
      %834 = vmatprep.subr.mxu0 0.0
      %835 = vmatpush2.msra.mxu0 0.0
      %836 = vmatprep.subr.mxu0 0.0
      %837 = vmatpush2.msra.mxu0 0.0
      %838 = vmatprep.subr.mxu0 0.0
      %839 = vmatpush2.msra.mxu0 0.0
      %840 = vmatprep.subr.mxu0 0.0
      %841 = vmatpush2.msra.mxu0 0.0
      %842 = vmatprep.subr.mxu0 0.0
      %843 = vmatpush2.msra.mxu0 0.0
      %844 = vmatprep.subr.mxu0 0.0
      %845 = vmatpush2.msra.mxu0 0.0
      %846 = vmatprep.subr.mxu0 0.0
      %847 = vmatpush2.msra.mxu0 0.0
      %848 = vmatprep.subr.mxu0 0.0
      %849 = vmatpush2.msra.mxu0 0.0
      %850 = vmatprep.subr.mxu0 0.0
      %851 = vmatpush2.msra.mxu0 0.0
      %852 = vmatprep.subr.mxu0 0.0
      %853 = vmatpush2.msra.mxu0 0.0
      %854 = vmatprep.subr.mxu0 0.0
      %855 = vmatpush2.msra.mxu0 0.0
      %856 = vmatprep.mubr.f32.mxu0 0.0
      %857 = vmatmul.mubr.f32.gmra.mxu0 %v781
      %v858 = vpop.f32.mrf.mxu0
      %v859 = vadd.f32 0.0, %v858
      %v860 = vpop.f32.mrf.mxu0
      %v861 = vadd.f32 0.0, %v860
      %862 = vmatprep.mubr.f32.mxu0 0.0
      %863 = vmatmul.mubr.f32.gmra.mxu0 %v784
      %v864 = vpop.f32.mrf.mxu0
      %v865 = vadd.f32 0.0, %v864
      %v866 = vpop.f32.mrf.mxu0
      %v867 = vadd.f32 0.0, %v866
      %868 = vdwg.mxu0
      %v869 = vadd.f32 %v748, %v859
      %v870 = vadd.f32 %v749, %v861
      %v871 = vadd.f32 %v750, %v865
      %v872 = vadd.f32 %v751, %v867
      %s873 = scalar_lea.vmem %s1, 64
      %v874 = vld [vmem:[%s873] sm:$0xff]
      %v875 = vld [vmem:[%s873 + $0x8] sm:$0xff]
      %876 = vrot.lane.b32.xlu0 %v405, 111
      %v877 = vpop.permute.xlu0 %876
      %878 = vrot.lane.b32.xlu0 %v406, 111
      %v879 = vpop.permute.xlu0 %878
      %880 = vrot.lane.b32.xlu0 %v419, 111
      %v881 = vpop.permute.xlu0 %880
      %882 = vrot.lane.b32.xlu0 %v407, 111
      %v883 = vpop.permute.xlu0 %882
      %884 = vrot.lane.b32.xlu0 %v408, 111
      %v885 = vpop.permute.xlu0 %884
      %886 = vrot.lane.b32.xlu0 %v420, 111
      %v887 = vpop.permute.xlu0 %886
      %vm888 = vcmask 908288
      %v889 = vsel %vm888, %v877, %v879
      %v890 = vsel %vm888, %v879, %v881
      %v891 = vsel %vm888, %v883, %v885
      %v892 = vsel %vm888, %v885, %v887
      %v896 = vsel %vm449, %v874, 0
      %v899 = vsel %vm449, %v875, 0
      %v901 = vsel %vm456, %v891, 0
      %v903 = vsel %vm456, %v892, 0
      %905 = vmatprep.subr.mxu0 0.0
      %906 = vmatpush1.msra.mxu0 0.0
      %907 = vmatprep.subr.mxu0 0.0
      %908 = vmatpush1.msra.mxu0 0.0
      %909 = vmatprep.subr.mxu0 0.0
      %910 = vmatpush1.msra.mxu0 0.0
      %911 = vmatprep.subr.mxu0 0.0
      %912 = vmatpush1.msra.mxu0 0.0
      %913 = vmatprep.subr.mxu0 0.0
      %914 = vmatpush1.msra.mxu0 0.0
      %915 = vmatprep.subr.mxu0 0.0
      %916 = vmatpush1.msra.mxu0 0.0
      %917 = vmatprep.subr.mxu0 0.0
      %918 = vmatpush1.msra.mxu0 0.0
      %919 = vmatprep.subr.mxu0 0.0
      %920 = vmatpush1.msra.mxu0 0.0
      %921 = vmatprep.subr.mxu0 0.0
      %922 = vmatpush1.msra.mxu0 0.0
      %923 = vmatprep.subr.mxu0 0.0
      %924 = vmatpush1.msra.mxu0 0.0
      %925 = vmatprep.subr.mxu0 0.0
      %926 = vmatpush1.msra.mxu0 0.0
      %927 = vmatprep.subr.mxu0 0.0
      %928 = vmatpush1.msra.mxu0 0.0
      %929 = vmatprep.subr.mxu0 0.0
      %930 = vmatpush1.msra.mxu0 0.0
      %931 = vmatprep.subr.mxu0 0.0
      %932 = vmatpush1.msra.mxu0 0.0
      %933 = vmatprep.subr.mxu0 %v903
      %934 = vmatpush1.msra.mxu0 %v901
      %935 = vmatprep.subr.mxu0 %v890
      %936 = vmatpush1.msra.mxu0 %v889
      %937 = vmatprep.subr.mxu0 0.0
      %938 = vmatpush2.msra.mxu0 0.0
      %939 = vmatprep.subr.mxu0 0.0
      %940 = vmatpush2.msra.mxu0 0.0
      %941 = vmatprep.subr.mxu0 0.0
      %942 = vmatpush2.msra.mxu0 0.0
      %943 = vmatprep.subr.mxu0 0.0
      %944 = vmatpush2.msra.mxu0 0.0
      %945 = vmatprep.subr.mxu0 0.0
      %946 = vmatpush2.msra.mxu0 0.0
      %947 = vmatprep.subr.mxu0 0.0
      %948 = vmatpush2.msra.mxu0 0.0
      %949 = vmatprep.subr.mxu0 0.0
      %950 = vmatpush2.msra.mxu0 0.0
      %951 = vmatprep.subr.mxu0 0.0
      %952 = vmatpush2.msra.mxu0 0.0
      %953 = vmatprep.subr.mxu0 0.0
      %954 = vmatpush2.msra.mxu0 0.0
      %955 = vmatprep.subr.mxu0 0.0
      %956 = vmatpush2.msra.mxu0 0.0
      %957 = vmatprep.subr.mxu0 0.0
      %958 = vmatpush2.msra.mxu0 0.0
      %959 = vmatprep.subr.mxu0 0.0
      %960 = vmatpush2.msra.mxu0 0.0
      %961 = vmatprep.subr.mxu0 0.0
      %962 = vmatpush2.msra.mxu0 0.0
      %963 = vmatprep.subr.mxu0 0.0
      %964 = vmatpush2.msra.mxu0 0.0
      %965 = vmatprep.subr.mxu0 0.0
      %966 = vmatpush2.msra.mxu0 0.0
      %967 = vmatprep.subr.mxu0 0.0
      %968 = vmatpush2.msra.mxu0 0.0
      %969 = vmatprep.mubr.f32.mxu0 0.0
      %970 = vmatmul.mubr.f32.gmra.mxu0 %v896
      %v971 = vpop.f32.mrf.mxu0
      %v972 = vadd.f32 0.0, %v971
      %v973 = vpop.f32.mrf.mxu0
      %v974 = vadd.f32 0.0, %v973
      %975 = vmatprep.mubr.f32.mxu0 0.0
      %976 = vmatmul.mubr.f32.gmra.mxu0 %v899
      %v977 = vpop.f32.mrf.mxu0
      %v978 = vadd.f32 0.0, %v977
      %v979 = vpop.f32.mrf.mxu0
      %v980 = vadd.f32 0.0, %v979
      %981 = vdwg.mxu0
      %v982 = vadd.f32 %v869, %v972
      %v983 = vadd.f32 %v870, %v974
      %v984 = vadd.f32 %v871, %v978
      %v985 = vadd.f32 %v872, %v980
      %986 = vrot.lane.b32.xlu0 %v405, 110
      %v987 = vpop.permute.xlu0 %986
      %988 = vrot.lane.b32.xlu0 %v406, 110
      %v989 = vpop.permute.xlu0 %988
      %990 = vrot.lane.b32.xlu0 %v419, 110
      %v991 = vpop.permute.xlu0 %990
      %992 = vrot.lane.b32.xlu0 %v407, 110
      %v993 = vpop.permute.xlu0 %992
      %994 = vrot.lane.b32.xlu0 %v408, 110
      %v995 = vpop.permute.xlu0 %994
      %996 = vrot.lane.b32.xlu0 %v420, 110
      %v997 = vpop.permute.xlu0 %996
      %vm998 = vcmask 900096
      %v999 = vsel %vm998, %v987, %v989
      %v1000 = vsel %vm998, %v989, %v991
      %v1001 = vsel %vm998, %v993, %v995
      %v1002 = vsel %vm998, %v995, %v997
      %v1007 = vsel %vm629, %v999, 0.0
      %v1008 = vsel %vm630, %v1000, 0.0
      %v1009 = vsel %vm629, %v1001, 0.0
      %v1010 = vsel %vm630, %v1002, 0.0
      %s1011 = scalar_lea.vmem %s1, 80
      %v1012 = vld [vmem:[%s1011] sm:$0xff]
      %v1013 = vld [vmem:[%s1011 + $0x8] sm:$0xff]
      %v1015 = vsel %vm449, %v1012, 0
      %v1018 = vsel %vm449, %v1013, 0
      %v1021 = vsel %vm456, %v1009, 0
      %v1024 = vsel %vm456, %v1010, 0
      %1026 = vmatprep.subr.mxu0 0.0
      %1027 = vmatpush1.msra.mxu0 0.0
      %1028 = vmatprep.subr.mxu0 0.0
      %1029 = vmatpush1.msra.mxu0 0.0
      %1030 = vmatprep.subr.mxu0 0.0
      %1031 = vmatpush1.msra.mxu0 0.0
      %1032 = vmatprep.subr.mxu0 0.0
      %1033 = vmatpush1.msra.mxu0 0.0
      %1034 = vmatprep.subr.mxu0 0.0
      %1035 = vmatpush1.msra.mxu0 0.0
      %1036 = vmatprep.subr.mxu0 0.0
      %1037 = vmatpush1.msra.mxu0 0.0
      %1038 = vmatprep.subr.mxu0 0.0
      %1039 = vmatpush1.msra.mxu0 0.0
      %1040 = vmatprep.subr.mxu0 0.0
      %1041 = vmatpush1.msra.mxu0 0.0
      %1042 = vmatprep.subr.mxu0 0.0
      %1043 = vmatpush1.msra.mxu0 0.0
      %1044 = vmatprep.subr.mxu0 0.0
      %1045 = vmatpush1.msra.mxu0 0.0
      %1046 = vmatprep.subr.mxu0 0.0
      %1047 = vmatpush1.msra.mxu0 0.0
      %1048 = vmatprep.subr.mxu0 0.0
      %1049 = vmatpush1.msra.mxu0 0.0
      %1050 = vmatprep.subr.mxu0 0.0
      %1051 = vmatpush1.msra.mxu0 0.0
      %1052 = vmatprep.subr.mxu0 0.0
      %1053 = vmatpush1.msra.mxu0 0.0
      %1054 = vmatprep.subr.mxu0 %v1024
      %1055 = vmatpush1.msra.mxu0 %v1021
      %1056 = vmatprep.subr.mxu0 %v1008
      %1057 = vmatpush1.msra.mxu0 %v1007
      %1058 = vmatprep.subr.mxu0 0.0
      %1059 = vmatpush2.msra.mxu0 0.0
      %1060 = vmatprep.subr.mxu0 0.0
      %1061 = vmatpush2.msra.mxu0 0.0
      %1062 = vmatprep.subr.mxu0 0.0
      %1063 = vmatpush2.msra.mxu0 0.0
      %1064 = vmatprep.subr.mxu0 0.0
      %1065 = vmatpush2.msra.mxu0 0.0
      %1066 = vmatprep.subr.mxu0 0.0
      %1067 = vmatpush2.msra.mxu0 0.0
      %1068 = vmatprep.subr.mxu0 0.0
      %1069 = vmatpush2.msra.mxu0 0.0
      %1070 = vmatprep.subr.mxu0 0.0
      %1071 = vmatpush2.msra.mxu0 0.0
      %1072 = vmatprep.subr.mxu0 0.0
      %1073 = vmatpush2.msra.mxu0 0.0
      %1074 = vmatprep.subr.mxu0 0.0
      %1075 = vmatpush2.msra.mxu0 0.0
      %1076 = vmatprep.subr.mxu0 0.0
      %1077 = vmatpush2.msra.mxu0 0.0
      %1078 = vmatprep.subr.mxu0 0.0
      %1079 = vmatpush2.msra.mxu0 0.0
      %1080 = vmatprep.subr.mxu0 0.0
      %1081 = vmatpush2.msra.mxu0 0.0
      %1082 = vmatprep.subr.mxu0 0.0
      %1083 = vmatpush2.msra.mxu0 0.0
      %1084 = vmatprep.subr.mxu0 0.0
      %1085 = vmatpush2.msra.mxu0 0.0
      %1086 = vmatprep.subr.mxu0 0.0
      %1087 = vmatpush2.msra.mxu0 0.0
      %1088 = vmatprep.subr.mxu0 0.0
      %1089 = vmatpush2.msra.mxu0 0.0
      %1090 = vmatprep.mubr.f32.mxu0 0.0
      %1091 = vmatmul.mubr.f32.gmra.mxu0 %v1015
      %v1092 = vpop.f32.mrf.mxu0
      %v1093 = vadd.f32 0.0, %v1092
      %v1094 = vpop.f32.mrf.mxu0
      %v1095 = vadd.f32 0.0, %v1094
      %1096 = vmatprep.mubr.f32.mxu0 0.0
      %1097 = vmatmul.mubr.f32.gmra.mxu0 %v1018
      %v1098 = vpop.f32.mrf.mxu0
      %v1099 = vadd.f32 0.0, %v1098
      %v1100 = vpop.f32.mrf.mxu0
      %v1101 = vadd.f32 0.0, %v1100
      %1102 = vdwg.mxu0
      %v1103 = vadd.f32 %v982, %v1093
      %v1104 = vadd.f32 %v983, %v1095
      %v1105 = vadd.f32 %v984, %v1099
      %v1106 = vadd.f32 %v985, %v1101
      %1107 = vrot.lane.b32.xlu0 %v405, 96
      %v1108 = vpop.permute.xlu0 %1107
      %1109 = vrot.lane.b32.xlu0 %v406, 96
      %v1110 = vpop.permute.xlu0 %1109
      %1111 = vrot.lane.b32.xlu0 %v419, 96
      %v1112 = vpop.permute.xlu0 %1111
      %1113 = vrot.lane.b32.xlu0 %v407, 96
      %v1114 = vpop.permute.xlu0 %1113
      %1115 = vrot.lane.b32.xlu0 %v408, 96
      %v1116 = vpop.permute.xlu0 %1115
      %1117 = vrot.lane.b32.xlu0 %v420, 96
      %v1118 = vpop.permute.xlu0 %1117
      %vm1119 = vcmask 785408
      %v1120 = vsel %vm1119, %v1108, %v1110
      %v1121 = vsel %vm1119, %v1110, %v1112
      %v1122 = vsel %vm1119, %v1114, %v1116
      %v1123 = vsel %vm1119, %v1116, %v1118
      %v1128 = vsel %vm411, %v1120, 0.0
      %v1129 = vsel %vm412, %v1121, 0.0
      %v1130 = vsel %vm411, %v1122, 0.0
      %v1131 = vsel %vm412, %v1123, 0.0
      %s1132 = scalar_lea.vmem %s1, 96
      %v1133 = vld [vmem:[%s1132] sm:$0xff]
      %v1134 = vld [vmem:[%s1132 + $0x8] sm:$0xff]
      %v1136 = vsel %vm449, %v1133, 0
      %v1139 = vsel %vm449, %v1134, 0
      %v1142 = vsel %vm456, %v1130, 0
      %v1145 = vsel %vm456, %v1131, 0
      %1147 = vmatprep.subr.mxu0 0.0
      %1148 = vmatpush1.msra.mxu0 0.0
      %1149 = vmatprep.subr.mxu0 0.0
      %1150 = vmatpush1.msra.mxu0 0.0
      %1151 = vmatprep.subr.mxu0 0.0
      %1152 = vmatpush1.msra.mxu0 0.0
      %1153 = vmatprep.subr.mxu0 0.0
      %1154 = vmatpush1.msra.mxu0 0.0
      %1155 = vmatprep.subr.mxu0 0.0
      %1156 = vmatpush1.msra.mxu0 0.0
      %1157 = vmatprep.subr.mxu0 0.0
      %1158 = vmatpush1.msra.mxu0 0.0
      %1159 = vmatprep.subr.mxu0 0.0
      %1160 = vmatpush1.msra.mxu0 0.0
      %1161 = vmatprep.subr.mxu0 0.0
      %1162 = vmatpush1.msra.mxu0 0.0
      %1163 = vmatprep.subr.mxu0 0.0
      %1164 = vmatpush1.msra.mxu0 0.0
      %1165 = vmatprep.subr.mxu0 0.0
      %1166 = vmatpush1.msra.mxu0 0.0
      %1167 = vmatprep.subr.mxu0 0.0
      %1168 = vmatpush1.msra.mxu0 0.0
      %1169 = vmatprep.subr.mxu0 0.0
      %1170 = vmatpush1.msra.mxu0 0.0
      %1171 = vmatprep.subr.mxu0 0.0
      %1172 = vmatpush1.msra.mxu0 0.0
      %1173 = vmatprep.subr.mxu0 0.0
      %1174 = vmatpush1.msra.mxu0 0.0
      %1175 = vmatprep.subr.mxu0 %v1145
      %1176 = vmatpush1.msra.mxu0 %v1142
      %1177 = vmatprep.subr.mxu0 %v1129
      %1178 = vmatpush1.msra.mxu0 %v1128
      %1179 = vmatprep.subr.mxu0 0.0
      %1180 = vmatpush2.msra.mxu0 0.0
      %1181 = vmatprep.subr.mxu0 0.0
      %1182 = vmatpush2.msra.mxu0 0.0
      %1183 = vmatprep.subr.mxu0 0.0
      %1184 = vmatpush2.msra.mxu0 0.0
      %1185 = vmatprep.subr.mxu0 0.0
      %1186 = vmatpush2.msra.mxu0 0.0
      %1187 = vmatprep.subr.mxu0 0.0
      %1188 = vmatpush2.msra.mxu0 0.0
      %1189 = vmatprep.subr.mxu0 0.0
      %1190 = vmatpush2.msra.mxu0 0.0
      %1191 = vmatprep.subr.mxu0 0.0
      %1192 = vmatpush2.msra.mxu0 0.0
      %1193 = vmatprep.subr.mxu0 0.0
      %1194 = vmatpush2.msra.mxu0 0.0
      %1195 = vmatprep.subr.mxu0 0.0
      %1196 = vmatpush2.msra.mxu0 0.0
      %1197 = vmatprep.subr.mxu0 0.0
      %1198 = vmatpush2.msra.mxu0 0.0
      %1199 = vmatprep.subr.mxu0 0.0
      %1200 = vmatpush2.msra.mxu0 0.0
      %1201 = vmatprep.subr.mxu0 0.0
      %1202 = vmatpush2.msra.mxu0 0.0
      %1203 = vmatprep.subr.mxu0 0.0
      %1204 = vmatpush2.msra.mxu0 0.0
      %1205 = vmatprep.subr.mxu0 0.0
      %1206 = vmatpush2.msra.mxu0 0.0
      %1207 = vmatprep.subr.mxu0 0.0
      %1208 = vmatpush2.msra.mxu0 0.0
      %1209 = vmatprep.subr.mxu0 0.0
      %1210 = vmatpush2.msra.mxu0 0.0
      %1211 = vmatprep.mubr.f32.mxu0 0.0
      %1212 = vmatmul.mubr.f32.gmra.mxu0 %v1136
      %v1213 = vpop.f32.mrf.mxu0
      %v1214 = vadd.f32 0.0, %v1213
      %v1215 = vpop.f32.mrf.mxu0
      %v1216 = vadd.f32 0.0, %v1215
      %1217 = vmatprep.mubr.f32.mxu0 0.0
      %1218 = vmatmul.mubr.f32.gmra.mxu0 %v1139
      %v1219 = vpop.f32.mrf.mxu0
      %v1220 = vadd.f32 0.0, %v1219
      %v1221 = vpop.f32.mrf.mxu0
      %v1222 = vadd.f32 0.0, %v1221
      %1223 = vdwg.mxu0
      %v1224 = vadd.f32 %v1103, %v1214
      %v1225 = vadd.f32 %v1104, %v1216
      %v1226 = vadd.f32 %v1105, %v1220
      %v1227 = vadd.f32 %v1106, %v1222
      %s1228 = scalar_lea.vmem %s1, 112
      %v1229 = vld [vmem:[%s1228] sm:$0xff]
      %v1230 = vld [vmem:[%s1228 + $0x8] sm:$0xff]
      %1231 = vrot.lane.b32.xlu0 %v405, 95
      %v1232 = vpop.permute.xlu0 %1231
      %1233 = vrot.lane.b32.xlu0 %v406, 95
      %v1234 = vpop.permute.xlu0 %1233
      %1235 = vrot.lane.b32.xlu0 %v419, 95
      %v1236 = vpop.permute.xlu0 %1235
      %1237 = vrot.lane.b32.xlu0 %v407, 95
      %v1238 = vpop.permute.xlu0 %1237
      %1239 = vrot.lane.b32.xlu0 %v408, 95
      %v1240 = vpop.permute.xlu0 %1239
      %1241 = vrot.lane.b32.xlu0 %v420, 95
      %v1242 = vpop.permute.xlu0 %1241
      %vm1243 = vcmask 777216
      %v1244 = vsel %vm1243, %v1232, %v1234
      %v1245 = vsel %vm1243, %v1234, %v1236
      %v1246 = vsel %vm1243, %v1238, %v1240
      %v1247 = vsel %vm1243, %v1240, %v1242
      %v1251 = vsel %vm449, %v1229, 0
      %v1254 = vsel %vm449, %v1230, 0
      %v1256 = vsel %vm456, %v1246, 0
      %v1258 = vsel %vm456, %v1247, 0
      %1260 = vmatprep.subr.mxu0 0.0
      %1261 = vmatpush1.msra.mxu0 0.0
      %1262 = vmatprep.subr.mxu0 0.0
      %1263 = vmatpush1.msra.mxu0 0.0
      %1264 = vmatprep.subr.mxu0 0.0
      %1265 = vmatpush1.msra.mxu0 0.0
      %1266 = vmatprep.subr.mxu0 0.0
      %1267 = vmatpush1.msra.mxu0 0.0
      %1268 = vmatprep.subr.mxu0 0.0
      %1269 = vmatpush1.msra.mxu0 0.0
      %1270 = vmatprep.subr.mxu0 0.0
      %1271 = vmatpush1.msra.mxu0 0.0
      %1272 = vmatprep.subr.mxu0 0.0
      %1273 = vmatpush1.msra.mxu0 0.0
      %1274 = vmatprep.subr.mxu0 0.0
      %1275 = vmatpush1.msra.mxu0 0.0
      %1276 = vmatprep.subr.mxu0 0.0
      %1277 = vmatpush1.msra.mxu0 0.0
      %1278 = vmatprep.subr.mxu0 0.0
      %1279 = vmatpush1.msra.mxu0 0.0
      %1280 = vmatprep.subr.mxu0 0.0
      %1281 = vmatpush1.msra.mxu0 0.0
      %1282 = vmatprep.subr.mxu0 0.0
      %1283 = vmatpush1.msra.mxu0 0.0
      %1284 = vmatprep.subr.mxu0 0.0
      %1285 = vmatpush1.msra.mxu0 0.0
      %1286 = vmatprep.subr.mxu0 0.0
      %1287 = vmatpush1.msra.mxu0 0.0
      %1288 = vmatprep.subr.mxu0 %v1258
      %1289 = vmatpush1.msra.mxu0 %v1256
      %1290 = vmatprep.subr.mxu0 %v1245
      %1291 = vmatpush1.msra.mxu0 %v1244
      %1292 = vmatprep.subr.mxu0 0.0
      %1293 = vmatpush2.msra.mxu0 0.0
      %1294 = vmatprep.subr.mxu0 0.0
      %1295 = vmatpush2.msra.mxu0 0.0
      %1296 = vmatprep.subr.mxu0 0.0
      %1297 = vmatpush2.msra.mxu0 0.0
      %1298 = vmatprep.subr.mxu0 0.0
      %1299 = vmatpush2.msra.mxu0 0.0
      %1300 = vmatprep.subr.mxu0 0.0
      %1301 = vmatpush2.msra.mxu0 0.0
      %1302 = vmatprep.subr.mxu0 0.0
      %1303 = vmatpush2.msra.mxu0 0.0
      %1304 = vmatprep.subr.mxu0 0.0
      %1305 = vmatpush2.msra.mxu0 0.0
      %1306 = vmatprep.subr.mxu0 0.0
      %1307 = vmatpush2.msra.mxu0 0.0
      %1308 = vmatprep.subr.mxu0 0.0
      %1309 = vmatpush2.msra.mxu0 0.0
      %1310 = vmatprep.subr.mxu0 0.0
      %1311 = vmatpush2.msra.mxu0 0.0
      %1312 = vmatprep.subr.mxu0 0.0
      %1313 = vmatpush2.msra.mxu0 0.0
      %1314 = vmatprep.subr.mxu0 0.0
      %1315 = vmatpush2.msra.mxu0 0.0
      %1316 = vmatprep.subr.mxu0 0.0
      %1317 = vmatpush2.msra.mxu0 0.0
      %1318 = vmatprep.subr.mxu0 0.0
      %1319 = vmatpush2.msra.mxu0 0.0
      %1320 = vmatprep.subr.mxu0 0.0
      %1321 = vmatpush2.msra.mxu0 0.0
      %1322 = vmatprep.subr.mxu0 0.0
      %1323 = vmatpush2.msra.mxu0 0.0
      %1324 = vmatprep.mubr.f32.mxu0 0.0
      %1325 = vmatmul.mubr.f32.gmra.mxu0 %v1251
      %v1326 = vpop.f32.mrf.mxu0
      %v1327 = vadd.f32 0.0, %v1326
      %v1328 = vpop.f32.mrf.mxu0
      %v1329 = vadd.f32 0.0, %v1328
      %1330 = vmatprep.mubr.f32.mxu0 0.0
      %1331 = vmatmul.mubr.f32.gmra.mxu0 %v1254
      %v1332 = vpop.f32.mrf.mxu0
      %v1333 = vadd.f32 0.0, %v1332
      %v1334 = vpop.f32.mrf.mxu0
      %v1335 = vadd.f32 0.0, %v1334
      %1336 = vdwg.mxu0
      %v1337 = vadd.f32 %v1224, %v1327
      %v1338 = vadd.f32 %v1225, %v1329
      %v1339 = vadd.f32 %v1226, %v1333
      %v1340 = vadd.f32 %v1227, %v1335
      %1341 = vrot.lane.b32.xlu0 %v405, 94
      %v1342 = vpop.permute.xlu0 %1341
      %1343 = vrot.lane.b32.xlu0 %v406, 94
      %v1344 = vpop.permute.xlu0 %1343
      %1345 = vrot.lane.b32.xlu0 %v419, 94
      %v1346 = vpop.permute.xlu0 %1345
      %1347 = vrot.lane.b32.xlu0 %v407, 94
      %v1348 = vpop.permute.xlu0 %1347
      %1349 = vrot.lane.b32.xlu0 %v408, 94
      %v1350 = vpop.permute.xlu0 %1349
      %1351 = vrot.lane.b32.xlu0 %v420, 94
      %v1352 = vpop.permute.xlu0 %1351
      %vm1353 = vcmask 769024
      %v1354 = vsel %vm1353, %v1342, %v1344
      %v1355 = vsel %vm1353, %v1344, %v1346
      %v1356 = vsel %vm1353, %v1348, %v1350
      %v1357 = vsel %vm1353, %v1350, %v1352
      %v1362 = vsel %vm629, %v1354, 0.0
      %v1363 = vsel %vm630, %v1355, 0.0
      %v1364 = vsel %vm629, %v1356, 0.0
      %v1365 = vsel %vm630, %v1357, 0.0
      %s1366 = scalar_lea.vmem %s1, 128
      %v1367 = vld [vmem:[%s1366] sm:$0xff]
      %v1368 = vld [vmem:[%s1366 + $0x8] sm:$0xff]
      %v1370 = vsel %vm449, %v1367, 0
      %v1373 = vsel %vm449, %v1368, 0
      %v1376 = vsel %vm456, %v1364, 0
      %v1379 = vsel %vm456, %v1365, 0
      %1381 = vmatprep.subr.mxu0 0.0
      %1382 = vmatpush1.msra.mxu0 0.0
      %1383 = vmatprep.subr.mxu0 0.0
      %1384 = vmatpush1.msra.mxu0 0.0
      %1385 = vmatprep.subr.mxu0 0.0
      %1386 = vmatpush1.msra.mxu0 0.0
      %1387 = vmatprep.subr.mxu0 0.0
      %1388 = vmatpush1.msra.mxu0 0.0
      %1389 = vmatprep.subr.mxu0 0.0
      %1390 = vmatpush1.msra.mxu0 0.0
      %1391 = vmatprep.subr.mxu0 0.0
      %1392 = vmatpush1.msra.mxu0 0.0
      %1393 = vmatprep.subr.mxu0 0.0
      %1394 = vmatpush1.msra.mxu0 0.0
      %1395 = vmatprep.subr.mxu0 0.0
      %1396 = vmatpush1.msra.mxu0 0.0
      %1397 = vmatprep.subr.mxu0 0.0
      %1398 = vmatpush1.msra.mxu0 0.0
      %1399 = vmatprep.subr.mxu0 0.0
      %1400 = vmatpush1.msra.mxu0 0.0
      %1401 = vmatprep.subr.mxu0 0.0
      %1402 = vmatpush1.msra.mxu0 0.0
      %1403 = vmatprep.subr.mxu0 0.0
      %1404 = vmatpush1.msra.mxu0 0.0
      %1405 = vmatprep.subr.mxu0 0.0
      %1406 = vmatpush1.msra.mxu0 0.0
      %1407 = vmatprep.subr.mxu0 0.0
      %1408 = vmatpush1.msra.mxu0 0.0
      %1409 = vmatprep.subr.mxu0 %v1379
      %1410 = vmatpush1.msra.mxu0 %v1376
      %1411 = vmatprep.subr.mxu0 %v1363
      %1412 = vmatpush1.msra.mxu0 %v1362
      %1413 = vmatprep.subr.mxu0 0.0
      %1414 = vmatpush2.msra.mxu0 0.0
      %1415 = vmatprep.subr.mxu0 0.0
      %1416 = vmatpush2.msra.mxu0 0.0
      %1417 = vmatprep.subr.mxu0 0.0
      %1418 = vmatpush2.msra.mxu0 0.0
      %1419 = vmatprep.subr.mxu0 0.0
      %1420 = vmatpush2.msra.mxu0 0.0
      %1421 = vmatprep.subr.mxu0 0.0
      %1422 = vmatpush2.msra.mxu0 0.0
      %1423 = vmatprep.subr.mxu0 0.0
      %1424 = vmatpush2.msra.mxu0 0.0
      %1425 = vmatprep.subr.mxu0 0.0
      %1426 = vmatpush2.msra.mxu0 0.0
      %1427 = vmatprep.subr.mxu0 0.0
      %1428 = vmatpush2.msra.mxu0 0.0
      %1429 = vmatprep.subr.mxu0 0.0
      %1430 = vmatpush2.msra.mxu0 0.0
      %1431 = vmatprep.subr.mxu0 0.0
      %1432 = vmatpush2.msra.mxu0 0.0
      %1433 = vmatprep.subr.mxu0 0.0
      %1434 = vmatpush2.msra.mxu0 0.0
      %1435 = vmatprep.subr.mxu0 0.0
      %1436 = vmatpush2.msra.mxu0 0.0
      %1437 = vmatprep.subr.mxu0 0.0
      %1438 = vmatpush2.msra.mxu0 0.0
      %1439 = vmatprep.subr.mxu0 0.0
      %1440 = vmatpush2.msra.mxu0 0.0
      %1441 = vmatprep.subr.mxu0 0.0
      %1442 = vmatpush2.msra.mxu0 0.0
      %1443 = vmatprep.subr.mxu0 0.0
      %1444 = vmatpush2.msra.mxu0 0.0
      %1445 = vmatprep.mubr.f32.mxu0 0.0
      %1446 = vmatmul.mubr.f32.gmra.mxu0 %v1370
      %v1447 = vpop.f32.mrf.mxu0
      %v1448 = vadd.f32 0.0, %v1447
      %v1449 = vpop.f32.mrf.mxu0
      %v1450 = vadd.f32 0.0, %v1449
      %1451 = vmatprep.mubr.f32.mxu0 0.0
      %1452 = vmatmul.mubr.f32.gmra.mxu0 %v1373
      %v1453 = vpop.f32.mrf.mxu0
      %v1454 = vadd.f32 0.0, %v1453
      %v1455 = vpop.f32.mrf.mxu0
      %v1456 = vadd.f32 0.0, %v1455
      %1457 = vdwg.mxu0
      %v1458 = vadd.f32 %v1337, %v1448
      %v1459 = vadd.f32 %v1338, %v1450
      %v1460 = vadd.f32 %v1339, %v1454
      %v1461 = vadd.f32 %v1340, %v1456
      %v1462 = vld [vmem:[%s2] sm:$0xff]
      %v1463 = vld [vmem:[%s2 + $0x8] sm:$0xff]
      %1465 = vset.pattern.permute.xlu0 0
      %1466 = vperm.xlu0 %1465, %v1462
      %v1467 = vpop.permute.xlu0 %1466
      %1470 = vset.pattern.permute.xlu0 0
      %1471 = vperm.xlu0 %1470, %v1463
      %v1472 = vpop.permute.xlu0 %1471
      %v1474 = vadd.f32 %v1458, %v1467
      %v1475 = vadd.f32 %v1459, %v1467
      %v1476 = vadd.f32 %v1460, %v1472
      %v1477 = vadd.f32 %v1461, %v1472
      %v1478 = vmax.f32 %v1474, 0.0
      %v1479 = vmax.f32 %v1475, 0.0
      %v1480 = vmax.f32 %v1476, 0.0
      %v1481 = vmax.f32 %v1477, 0.0
      %1486 = vrot.lane.b32.xlu0 %v1478, 17
      %v1487 = vpop.permute.xlu0 %1486
      %1488 = vrot.lane.b32.xlu0 %v1479, 17
      %v1489 = vpop.permute.xlu0 %1488
      %1490 = vrot.lane.b32.xlu0 %v1480, 17
      %v1491 = vpop.permute.xlu0 %1490
      %1492 = vrot.lane.b32.xlu0 %v1481, 17
      %v1493 = vpop.permute.xlu0 %1492
      %v1494 = vsel %vm387, %v1487, %v1489
      %v1495 = vsel %vm387, %v1491, %v1493
      %1502 = vst.msk [vmem:[#allocation2] sm:$0xff] %vm396, %v1487
      %1503 = vst [vmem:[#allocation2 + $0x8] sm:$0xff] %v1494
      %1504 = vst.msk [vmem:[#allocation2 + $0x10] sm:$0xff] %vm387, %v1489
      %1505 = vst.msk [vmem:[#allocation2 + $0x18] sm:$0xff] %vm396, %v1491
      %1506 = vst [vmem:[#allocation2 + $0x20] sm:$0xff] %v1495
      %1507 = vst.msk [vmem:[#allocation2 + $0x28] sm:$0xff] %vm387, %v1493
      %v1508 = vld [vmem:[#allocation2] sm:$0xff]
      %v1509 = vld [vmem:[#allocation2 + $0x8] sm:$0xff]
      %v1510 = vld [vmem:[#allocation2 + $0x18] sm:$0xff]
      %v1511 = vld [vmem:[#allocation2 + $0x20] sm:$0xff]
      %v1512 = vsel %vm411, %v1508, 0.0
      %v1513 = vsel %vm412, %v1509, 0.0
      %v1514 = vsel %vm411, %v1510, 0.0
      %v1515 = vsel %vm412, %v1511, 0.0
      %v1516 = vld [vmem:[%s3] sm:$0xff]
      %v1517 = vld [vmem:[#allocation2 + $0x10] sm:$0xff]
      %v1518 = vld [vmem:[#allocation2 + $0x28] sm:$0xff]
      %s1519 = scalar_lea.vmem %s3, 8
      %v1520 = vld [vmem:[%s1519] sm:$0xff]
      %1527 = vrot.lane.b32.xlu0 %v1508, 127
      %v1528 = vpop.permute.xlu0 %1527
      %1529 = vrot.lane.b32.xlu0 %v1509, 127
      %v1530 = vpop.permute.xlu0 %1529
      %1531 = vrot.lane.b32.xlu0 %v1517, 127
      %v1532 = vpop.permute.xlu0 %1531
      %1533 = vrot.lane.b32.xlu0 %v1510, 127
      %v1534 = vpop.permute.xlu0 %1533
      %1535 = vrot.lane.b32.xlu0 %v1511, 127
      %v1536 = vpop.permute.xlu0 %1535
      %1537 = vrot.lane.b32.xlu0 %v1518, 127
      %v1538 = vpop.permute.xlu0 %1537
      %v1539 = vsel %vm442, %v1528, %v1530
      %v1540 = vsel %vm442, %v1530, %v1532
      %v1541 = vsel %vm442, %v1534, %v1536
      %v1542 = vsel %vm442, %v1536, %v1538
      %vm1547 = vcmask 130048
      %v1549 = vsel %vm1547, %v1520, 0
      %1551 = vmatprep.subr.mxu0 0.0
      %1552 = vmatpush1.msra.mxu0 0.0
      %1553 = vmatprep.subr.mxu0 0.0
      %1554 = vmatpush1.msra.mxu0 0.0
      %1555 = vmatprep.subr.mxu0 0.0
      %1556 = vmatpush1.msra.mxu0 0.0
      %1557 = vmatprep.subr.mxu0 0.0
      %1558 = vmatpush1.msra.mxu0 0.0
      %1559 = vmatprep.subr.mxu0 0.0
      %1560 = vmatpush1.msra.mxu0 0.0
      %1561 = vmatprep.subr.mxu0 0.0
      %1562 = vmatpush1.msra.mxu0 0.0
      %1563 = vmatprep.subr.mxu0 0.0
      %1564 = vmatpush1.msra.mxu0 0.0
      %1565 = vmatprep.subr.mxu0 0.0
      %1566 = vmatpush1.msra.mxu0 0.0
      %1567 = vmatprep.subr.mxu0 0.0
      %1568 = vmatpush1.msra.mxu0 0.0
      %1569 = vmatprep.subr.mxu0 0.0
      %1570 = vmatpush1.msra.mxu0 0.0
      %1571 = vmatprep.subr.mxu0 0.0
      %1572 = vmatpush1.msra.mxu0 0.0
      %1573 = vmatprep.subr.mxu0 0.0
      %1574 = vmatpush1.msra.mxu0 0.0
      %1575 = vmatprep.subr.mxu0 0.0
      %1576 = vmatpush1.msra.mxu0 0.0
      %1577 = vmatprep.subr.mxu0 0.0
      %1578 = vmatpush1.msra.mxu0 0.0
      %1579 = vmatprep.subr.mxu0 %v1542
      %1580 = vmatpush1.msra.mxu0 %v1541
      %1581 = vmatprep.subr.mxu0 %v1540
      %1582 = vmatpush1.msra.mxu0 %v1539
      %1583 = vmatprep.subr.mxu0 0.0
      %1584 = vmatpush2.msra.mxu0 0.0
      %1585 = vmatprep.subr.mxu0 0.0
      %1586 = vmatpush2.msra.mxu0 0.0
      %1587 = vmatprep.subr.mxu0 0.0
      %1588 = vmatpush2.msra.mxu0 0.0
      %1589 = vmatprep.subr.mxu0 0.0
      %1590 = vmatpush2.msra.mxu0 0.0
      %1591 = vmatprep.subr.mxu0 0.0
      %1592 = vmatpush2.msra.mxu0 0.0
      %1593 = vmatprep.subr.mxu0 0.0
      %1594 = vmatpush2.msra.mxu0 0.0
      %1595 = vmatprep.subr.mxu0 0.0
      %1596 = vmatpush2.msra.mxu0 0.0
      %1597 = vmatprep.subr.mxu0 0.0
      %1598 = vmatpush2.msra.mxu0 0.0
      %1599 = vmatprep.subr.mxu0 0.0
      %1600 = vmatpush2.msra.mxu0 0.0
      %1601 = vmatprep.subr.mxu0 0.0
      %1602 = vmatpush2.msra.mxu0 0.0
      %1603 = vmatprep.subr.mxu0 0.0
      %1604 = vmatpush2.msra.mxu0 0.0
      %1605 = vmatprep.subr.mxu0 0.0
      %1606 = vmatpush2.msra.mxu0 0.0
      %1607 = vmatprep.subr.mxu0 0.0
      %1608 = vmatpush2.msra.mxu0 0.0
      %1609 = vmatprep.subr.mxu0 0.0
      %1610 = vmatpush2.msra.mxu0 0.0
      %1611 = vmatprep.subr.mxu0 0.0
      %1612 = vmatpush2.msra.mxu0 0.0
      %1613 = vmatprep.subr.mxu0 0.0
      %1614 = vmatpush2.msra.mxu0 0.0
      %1615 = vmatprep.mubr.f32.mxu0 0.0
      %1616 = vmatmul.mubr.f32.gmra.mxu0 %v1549
      %v1617 = vpop.f32.mrf.mxu0
      %v1618 = vadd.f32 0.0, %v1617
      %v1619 = vpop.f32.mrf.mxu0
      %v1620 = vadd.f32 0.0, %v1619
      %1621 = vdwg.mxu0
      %v1623 = vsel %vm1547, %v1516, 0
      %1625 = vmatprep.subr.mxu0 0.0
      %1626 = vmatpush1.msra.mxu0 0.0
      %1627 = vmatprep.subr.mxu0 0.0
      %1628 = vmatpush1.msra.mxu0 0.0
      %1629 = vmatprep.subr.mxu0 0.0
      %1630 = vmatpush1.msra.mxu0 0.0
      %1631 = vmatprep.subr.mxu0 0.0
      %1632 = vmatpush1.msra.mxu0 0.0
      %1633 = vmatprep.subr.mxu0 0.0
      %1634 = vmatpush1.msra.mxu0 0.0
      %1635 = vmatprep.subr.mxu0 0.0
      %1636 = vmatpush1.msra.mxu0 0.0
      %1637 = vmatprep.subr.mxu0 0.0
      %1638 = vmatpush1.msra.mxu0 0.0
      %1639 = vmatprep.subr.mxu0 0.0
      %1640 = vmatpush1.msra.mxu0 0.0
      %1641 = vmatprep.subr.mxu0 0.0
      %1642 = vmatpush1.msra.mxu0 0.0
      %1643 = vmatprep.subr.mxu0 0.0
      %1644 = vmatpush1.msra.mxu0 0.0
      %1645 = vmatprep.subr.mxu0 0.0
      %1646 = vmatpush1.msra.mxu0 0.0
      %1647 = vmatprep.subr.mxu0 0.0
      %1648 = vmatpush1.msra.mxu0 0.0
      %1649 = vmatprep.subr.mxu0 0.0
      %1650 = vmatpush1.msra.mxu0 0.0
      %1651 = vmatprep.subr.mxu0 0.0
      %1652 = vmatpush1.msra.mxu0 0.0
      %1653 = vmatprep.subr.mxu0 %v1515
      %1654 = vmatpush1.msra.mxu0 %v1514
      %1655 = vmatprep.subr.mxu0 %v1513
      %1656 = vmatpush1.msra.mxu0 %v1512
      %1657 = vmatprep.subr.mxu0 0.0
      %1658 = vmatpush2.msra.mxu0 0.0
      %1659 = vmatprep.subr.mxu0 0.0
      %1660 = vmatpush2.msra.mxu0 0.0
      %1661 = vmatprep.subr.mxu0 0.0
      %1662 = vmatpush2.msra.mxu0 0.0
      %1663 = vmatprep.subr.mxu0 0.0
      %1664 = vmatpush2.msra.mxu0 0.0
      %1665 = vmatprep.subr.mxu0 0.0
      %1666 = vmatpush2.msra.mxu0 0.0
      %1667 = vmatprep.subr.mxu0 0.0
      %1668 = vmatpush2.msra.mxu0 0.0
      %1669 = vmatprep.subr.mxu0 0.0
      %1670 = vmatpush2.msra.mxu0 0.0
      %1671 = vmatprep.subr.mxu0 0.0
      %1672 = vmatpush2.msra.mxu0 0.0
      %1673 = vmatprep.subr.mxu0 0.0
      %1674 = vmatpush2.msra.mxu0 0.0
      %1675 = vmatprep.subr.mxu0 0.0
      %1676 = vmatpush2.msra.mxu0 0.0
      %1677 = vmatprep.subr.mxu0 0.0
      %1678 = vmatpush2.msra.mxu0 0.0
      %1679 = vmatprep.subr.mxu0 0.0
      %1680 = vmatpush2.msra.mxu0 0.0
      %1681 = vmatprep.subr.mxu0 0.0
      %1682 = vmatpush2.msra.mxu0 0.0
      %1683 = vmatprep.subr.mxu0 0.0
      %1684 = vmatpush2.msra.mxu0 0.0
      %1685 = vmatprep.subr.mxu0 0.0
      %1686 = vmatpush2.msra.mxu0 0.0
      %1687 = vmatprep.subr.mxu0 0.0
      %1688 = vmatpush2.msra.mxu0 0.0
      %1689 = vmatprep.mubr.f32.mxu0 0.0
      %1690 = vmatmul.mubr.f32.gmra.mxu0 %v1623
      %v1691 = vpop.f32.mrf.mxu0
      %v1692 = vadd.f32 %v1618, %v1691
      %v1693 = vpop.f32.mrf.mxu0
      %v1694 = vadd.f32 %v1620, %v1693
      %1695 = vdwg.mxu0
      %1696 = vrot.lane.b32.xlu0 %v1508, 126
      %v1697 = vpop.permute.xlu0 %1696
      %1698 = vrot.lane.b32.xlu0 %v1509, 126
      %v1699 = vpop.permute.xlu0 %1698
      %1700 = vrot.lane.b32.xlu0 %v1517, 126
      %v1701 = vpop.permute.xlu0 %1700
      %1702 = vrot.lane.b32.xlu0 %v1510, 126
      %v1703 = vpop.permute.xlu0 %1702
      %1704 = vrot.lane.b32.xlu0 %v1511, 126
      %v1705 = vpop.permute.xlu0 %1704
      %1706 = vrot.lane.b32.xlu0 %v1518, 126
      %v1707 = vpop.permute.xlu0 %1706
      %v1708 = vsel %vm643, %v1697, %v1699
      %v1709 = vsel %vm643, %v1699, %v1701
      %v1710 = vsel %vm643, %v1703, %v1705
      %v1711 = vsel %vm643, %v1705, %v1707
      %v1716 = vsel %vm629, %v1708, 0.0
      %v1717 = vsel %vm630, %v1709, 0.0
      %v1718 = vsel %vm629, %v1710, 0.0
      %v1719 = vsel %vm630, %v1711, 0.0
      %s1720 = scalar_lea.vmem %s3, 16
      %v1721 = vld [vmem:[%s1720] sm:$0xff]
      %v1723 = vsel %vm1547, %v1721, 0
      %1725 = vmatprep.subr.mxu0 0.0
      %1726 = vmatpush1.msra.mxu0 0.0
      %1727 = vmatprep.subr.mxu0 0.0
      %1728 = vmatpush1.msra.mxu0 0.0
      %1729 = vmatprep.subr.mxu0 0.0
      %1730 = vmatpush1.msra.mxu0 0.0
      %1731 = vmatprep.subr.mxu0 0.0
      %1732 = vmatpush1.msra.mxu0 0.0
      %1733 = vmatprep.subr.mxu0 0.0
      %1734 = vmatpush1.msra.mxu0 0.0
      %1735 = vmatprep.subr.mxu0 0.0
      %1736 = vmatpush1.msra.mxu0 0.0
      %1737 = vmatprep.subr.mxu0 0.0
      %1738 = vmatpush1.msra.mxu0 0.0
      %1739 = vmatprep.subr.mxu0 0.0
      %1740 = vmatpush1.msra.mxu0 0.0
      %1741 = vmatprep.subr.mxu0 0.0
      %1742 = vmatpush1.msra.mxu0 0.0
      %1743 = vmatprep.subr.mxu0 0.0
      %1744 = vmatpush1.msra.mxu0 0.0
      %1745 = vmatprep.subr.mxu0 0.0
      %1746 = vmatpush1.msra.mxu0 0.0
      %1747 = vmatprep.subr.mxu0 0.0
      %1748 = vmatpush1.msra.mxu0 0.0
      %1749 = vmatprep.subr.mxu0 0.0
      %1750 = vmatpush1.msra.mxu0 0.0
      %1751 = vmatprep.subr.mxu0 0.0
      %1752 = vmatpush1.msra.mxu0 0.0
      %1753 = vmatprep.subr.mxu0 %v1719
      %1754 = vmatpush1.msra.mxu0 %v1718
      %1755 = vmatprep.subr.mxu0 %v1717
      %1756 = vmatpush1.msra.mxu0 %v1716
      %1757 = vmatprep.subr.mxu0 0.0
      %1758 = vmatpush2.msra.mxu0 0.0
      %1759 = vmatprep.subr.mxu0 0.0
      %1760 = vmatpush2.msra.mxu0 0.0
      %1761 = vmatprep.subr.mxu0 0.0
      %1762 = vmatpush2.msra.mxu0 0.0
      %1763 = vmatprep.subr.mxu0 0.0
      %1764 = vmatpush2.msra.mxu0 0.0
      %1765 = vmatprep.subr.mxu0 0.0
      %1766 = vmatpush2.msra.mxu0 0.0
      %1767 = vmatprep.subr.mxu0 0.0
      %1768 = vmatpush2.msra.mxu0 0.0
      %1769 = vmatprep.subr.mxu0 0.0
      %1770 = vmatpush2.msra.mxu0 0.0
      %1771 = vmatprep.subr.mxu0 0.0
      %1772 = vmatpush2.msra.mxu0 0.0
      %1773 = vmatprep.subr.mxu0 0.0
      %1774 = vmatpush2.msra.mxu0 0.0
      %1775 = vmatprep.subr.mxu0 0.0
      %1776 = vmatpush2.msra.mxu0 0.0
      %1777 = vmatprep.subr.mxu0 0.0
      %1778 = vmatpush2.msra.mxu0 0.0
      %1779 = vmatprep.subr.mxu0 0.0
      %1780 = vmatpush2.msra.mxu0 0.0
      %1781 = vmatprep.subr.mxu0 0.0
      %1782 = vmatpush2.msra.mxu0 0.0
      %1783 = vmatprep.subr.mxu0 0.0
      %1784 = vmatpush2.msra.mxu0 0.0
      %1785 = vmatprep.subr.mxu0 0.0
      %1786 = vmatpush2.msra.mxu0 0.0
      %1787 = vmatprep.subr.mxu0 0.0
      %1788 = vmatpush2.msra.mxu0 0.0
      %1789 = vmatprep.mubr.f32.mxu0 0.0
      %1790 = vmatmul.mubr.f32.gmra.mxu0 %v1723
      %v1791 = vpop.f32.mrf.mxu0
      %v1792 = vadd.f32 0.0, %v1791
      %v1793 = vpop.f32.mrf.mxu0
      %v1794 = vadd.f32 0.0, %v1793
      %1795 = vdwg.mxu0
      %v1796 = vadd.f32 %v1692, %v1792
      %v1797 = vadd.f32 %v1694, %v1794
      %1798 = vrot.lane.b32.xlu0 %v1508, 112
      %v1799 = vpop.permute.xlu0 %1798
      %1800 = vrot.lane.b32.xlu0 %v1509, 112
      %v1801 = vpop.permute.xlu0 %1800
      %1802 = vrot.lane.b32.xlu0 %v1517, 112
      %v1803 = vpop.permute.xlu0 %1802
      %1804 = vrot.lane.b32.xlu0 %v1510, 112
      %v1805 = vpop.permute.xlu0 %1804
      %1806 = vrot.lane.b32.xlu0 %v1511, 112
      %v1807 = vpop.permute.xlu0 %1806
      %1808 = vrot.lane.b32.xlu0 %v1518, 112
      %v1809 = vpop.permute.xlu0 %1808
      %v1810 = vsel %vm764, %v1799, %v1801
      %v1811 = vsel %vm764, %v1801, %v1803
      %v1812 = vsel %vm764, %v1805, %v1807
      %v1813 = vsel %vm764, %v1807, %v1809
      %v1818 = vsel %vm411, %v1810, 0.0
      %v1819 = vsel %vm412, %v1811, 0.0
      %v1820 = vsel %vm411, %v1812, 0.0
      %v1821 = vsel %vm412, %v1813, 0.0
      %s1822 = scalar_lea.vmem %s3, 24
      %v1823 = vld [vmem:[%s1822] sm:$0xff]
      %v1825 = vsel %vm1547, %v1823, 0
      %1827 = vmatprep.subr.mxu0 0.0
      %1828 = vmatpush1.msra.mxu0 0.0
      %1829 = vmatprep.subr.mxu0 0.0
      %1830 = vmatpush1.msra.mxu0 0.0
      %1831 = vmatprep.subr.mxu0 0.0
      %1832 = vmatpush1.msra.mxu0 0.0
      %1833 = vmatprep.subr.mxu0 0.0
      %1834 = vmatpush1.msra.mxu0 0.0
      %1835 = vmatprep.subr.mxu0 0.0
      %1836 = vmatpush1.msra.mxu0 0.0
      %1837 = vmatprep.subr.mxu0 0.0
      %1838 = vmatpush1.msra.mxu0 0.0
      %1839 = vmatprep.subr.mxu0 0.0
      %1840 = vmatpush1.msra.mxu0 0.0
      %1841 = vmatprep.subr.mxu0 0.0
      %1842 = vmatpush1.msra.mxu0 0.0
      %1843 = vmatprep.subr.mxu0 0.0
      %1844 = vmatpush1.msra.mxu0 0.0
      %1845 = vmatprep.subr.mxu0 0.0
      %1846 = vmatpush1.msra.mxu0 0.0
      %1847 = vmatprep.subr.mxu0 0.0
      %1848 = vmatpush1.msra.mxu0 0.0
      %1849 = vmatprep.subr.mxu0 0.0
      %1850 = vmatpush1.msra.mxu0 0.0
      %1851 = vmatprep.subr.mxu0 0.0
      %1852 = vmatpush1.msra.mxu0 0.0
      %1853 = vmatprep.subr.mxu0 0.0
      %1854 = vmatpush1.msra.mxu0 0.0
      %1855 = vmatprep.subr.mxu0 %v1821
      %1856 = vmatpush1.msra.mxu0 %v1820
      %1857 = vmatprep.subr.mxu0 %v1819
      %1858 = vmatpush1.msra.mxu0 %v1818
      %1859 = vmatprep.subr.mxu0 0.0
      %1860 = vmatpush2.msra.mxu0 0.0
      %1861 = vmatprep.subr.mxu0 0.0
      %1862 = vmatpush2.msra.mxu0 0.0
      %1863 = vmatprep.subr.mxu0 0.0
      %1864 = vmatpush2.msra.mxu0 0.0
      %1865 = vmatprep.subr.mxu0 0.0
      %1866 = vmatpush2.msra.mxu0 0.0
      %1867 = vmatprep.subr.mxu0 0.0
      %1868 = vmatpush2.msra.mxu0 0.0
      %1869 = vmatprep.subr.mxu0 0.0
      %1870 = vmatpush2.msra.mxu0 0.0
      %1871 = vmatprep.subr.mxu0 0.0
      %1872 = vmatpush2.msra.mxu0 0.0
      %1873 = vmatprep.subr.mxu0 0.0
      %1874 = vmatpush2.msra.mxu0 0.0
      %1875 = vmatprep.subr.mxu0 0.0
      %1876 = vmatpush2.msra.mxu0 0.0
      %1877 = vmatprep.subr.mxu0 0.0
      %1878 = vmatpush2.msra.mxu0 0.0
      %1879 = vmatprep.subr.mxu0 0.0
      %1880 = vmatpush2.msra.mxu0 0.0
      %1881 = vmatprep.subr.mxu0 0.0
      %1882 = vmatpush2.msra.mxu0 0.0
      %1883 = vmatprep.subr.mxu0 0.0
      %1884 = vmatpush2.msra.mxu0 0.0
      %1885 = vmatprep.subr.mxu0 0.0
      %1886 = vmatpush2.msra.mxu0 0.0
      %1887 = vmatprep.subr.mxu0 0.0
      %1888 = vmatpush2.msra.mxu0 0.0
      %1889 = vmatprep.subr.mxu0 0.0
      %1890 = vmatpush2.msra.mxu0 0.0
      %1891 = vmatprep.mubr.f32.mxu0 0.0
      %1892 = vmatmul.mubr.f32.gmra.mxu0 %v1825
      %v1893 = vpop.f32.mrf.mxu0
      %v1894 = vadd.f32 0.0, %v1893
      %v1895 = vpop.f32.mrf.mxu0
      %v1896 = vadd.f32 0.0, %v1895
      %1897 = vdwg.mxu0
      %v1898 = vadd.f32 %v1796, %v1894
      %v1899 = vadd.f32 %v1797, %v1896
      %s1900 = scalar_lea.vmem %s3, 32
      %v1901 = vld [vmem:[%s1900] sm:$0xff]
      %1902 = vrot.lane.b32.xlu0 %v1508, 111
      %v1903 = vpop.permute.xlu0 %1902
      %1904 = vrot.lane.b32.xlu0 %v1509, 111
      %v1905 = vpop.permute.xlu0 %1904
      %1906 = vrot.lane.b32.xlu0 %v1517, 111
      %v1907 = vpop.permute.xlu0 %1906
      %1908 = vrot.lane.b32.xlu0 %v1510, 111
      %v1909 = vpop.permute.xlu0 %1908
      %1910 = vrot.lane.b32.xlu0 %v1511, 111
      %v1911 = vpop.permute.xlu0 %1910
      %1912 = vrot.lane.b32.xlu0 %v1518, 111
      %v1913 = vpop.permute.xlu0 %1912
      %v1914 = vsel %vm888, %v1903, %v1905
      %v1915 = vsel %vm888, %v1905, %v1907
      %v1916 = vsel %vm888, %v1909, %v1911
      %v1917 = vsel %vm888, %v1911, %v1913
      %v1923 = vsel %vm1547, %v1901, 0
      %1925 = vmatprep.subr.mxu0 0.0
      %1926 = vmatpush1.msra.mxu0 0.0
      %1927 = vmatprep.subr.mxu0 0.0
      %1928 = vmatpush1.msra.mxu0 0.0
      %1929 = vmatprep.subr.mxu0 0.0
      %1930 = vmatpush1.msra.mxu0 0.0
      %1931 = vmatprep.subr.mxu0 0.0
      %1932 = vmatpush1.msra.mxu0 0.0
      %1933 = vmatprep.subr.mxu0 0.0
      %1934 = vmatpush1.msra.mxu0 0.0
      %1935 = vmatprep.subr.mxu0 0.0
      %1936 = vmatpush1.msra.mxu0 0.0
      %1937 = vmatprep.subr.mxu0 0.0
      %1938 = vmatpush1.msra.mxu0 0.0
      %1939 = vmatprep.subr.mxu0 0.0
      %1940 = vmatpush1.msra.mxu0 0.0
      %1941 = vmatprep.subr.mxu0 0.0
      %1942 = vmatpush1.msra.mxu0 0.0
      %1943 = vmatprep.subr.mxu0 0.0
      %1944 = vmatpush1.msra.mxu0 0.0
      %1945 = vmatprep.subr.mxu0 0.0
      %1946 = vmatpush1.msra.mxu0 0.0
      %1947 = vmatprep.subr.mxu0 0.0
      %1948 = vmatpush1.msra.mxu0 0.0
      %1949 = vmatprep.subr.mxu0 0.0
      %1950 = vmatpush1.msra.mxu0 0.0
      %1951 = vmatprep.subr.mxu0 0.0
      %1952 = vmatpush1.msra.mxu0 0.0
      %1953 = vmatprep.subr.mxu0 %v1917
      %1954 = vmatpush1.msra.mxu0 %v1916
      %1955 = vmatprep.subr.mxu0 %v1915
      %1956 = vmatpush1.msra.mxu0 %v1914
      %1957 = vmatprep.subr.mxu0 0.0
      %1958 = vmatpush2.msra.mxu0 0.0
      %1959 = vmatprep.subr.mxu0 0.0
      %1960 = vmatpush2.msra.mxu0 0.0
      %1961 = vmatprep.subr.mxu0 0.0
      %1962 = vmatpush2.msra.mxu0 0.0
      %1963 = vmatprep.subr.mxu0 0.0
      %1964 = vmatpush2.msra.mxu0 0.0
      %1965 = vmatprep.subr.mxu0 0.0
      %1966 = vmatpush2.msra.mxu0 0.0
      %1967 = vmatprep.subr.mxu0 0.0
      %1968 = vmatpush2.msra.mxu0 0.0
      %1969 = vmatprep.subr.mxu0 0.0
      %1970 = vmatpush2.msra.mxu0 0.0
      %1971 = vmatprep.subr.mxu0 0.0
      %1972 = vmatpush2.msra.mxu0 0.0
      %1973 = vmatprep.subr.mxu0 0.0
      %1974 = vmatpush2.msra.mxu0 0.0
      %1975 = vmatprep.subr.mxu0 0.0
      %1976 = vmatpush2.msra.mxu0 0.0
      %1977 = vmatprep.subr.mxu0 0.0
      %1978 = vmatpush2.msra.mxu0 0.0
      %1979 = vmatprep.subr.mxu0 0.0
      %1980 = vmatpush2.msra.mxu0 0.0
      %1981 = vmatprep.subr.mxu0 0.0
      %1982 = vmatpush2.msra.mxu0 0.0
      %1983 = vmatprep.subr.mxu0 0.0
      %1984 = vmatpush2.msra.mxu0 0.0
      %1985 = vmatprep.subr.mxu0 0.0
      %1986 = vmatpush2.msra.mxu0 0.0
      %1987 = vmatprep.subr.mxu0 0.0
      %1988 = vmatpush2.msra.mxu0 0.0
      %1989 = vmatprep.mubr.f32.mxu0 0.0
      %1990 = vmatmul.mubr.f32.gmra.mxu0 %v1923
      %v1991 = vpop.f32.mrf.mxu0
      %v1992 = vadd.f32 0.0, %v1991
      %v1993 = vpop.f32.mrf.mxu0
      %v1994 = vadd.f32 0.0, %v1993
      %1995 = vdwg.mxu0
      %v1996 = vadd.f32 %v1898, %v1992
      %v1997 = vadd.f32 %v1899, %v1994
      %1998 = vrot.lane.b32.xlu0 %v1508, 110
      %v1999 = vpop.permute.xlu0 %1998
      %2000 = vrot.lane.b32.xlu0 %v1509, 110
      %v2001 = vpop.permute.xlu0 %2000
      %2002 = vrot.lane.b32.xlu0 %v1517, 110
      %v2003 = vpop.permute.xlu0 %2002
      %2004 = vrot.lane.b32.xlu0 %v1510, 110
      %v2005 = vpop.permute.xlu0 %2004
      %2006 = vrot.lane.b32.xlu0 %v1511, 110
      %v2007 = vpop.permute.xlu0 %2006
      %2008 = vrot.lane.b32.xlu0 %v1518, 110
      %v2009 = vpop.permute.xlu0 %2008
      %v2010 = vsel %vm998, %v1999, %v2001
      %v2011 = vsel %vm998, %v2001, %v2003
      %v2012 = vsel %vm998, %v2005, %v2007
      %v2013 = vsel %vm998, %v2007, %v2009
      %v2018 = vsel %vm629, %v2010, 0.0
      %v2019 = vsel %vm630, %v2011, 0.0
      %v2020 = vsel %vm629, %v2012, 0.0
      %v2021 = vsel %vm630, %v2013, 0.0
      %s2022 = scalar_lea.vmem %s3, 40
      %v2023 = vld [vmem:[%s2022] sm:$0xff]
      %v2025 = vsel %vm1547, %v2023, 0
      %2027 = vmatprep.subr.mxu0 0.0
      %2028 = vmatpush1.msra.mxu0 0.0
      %2029 = vmatprep.subr.mxu0 0.0
      %2030 = vmatpush1.msra.mxu0 0.0
      %2031 = vmatprep.subr.mxu0 0.0
      %2032 = vmatpush1.msra.mxu0 0.0
      %2033 = vmatprep.subr.mxu0 0.0
      %2034 = vmatpush1.msra.mxu0 0.0
      %2035 = vmatprep.subr.mxu0 0.0
      %2036 = vmatpush1.msra.mxu0 0.0
      %2037 = vmatprep.subr.mxu0 0.0
      %2038 = vmatpush1.msra.mxu0 0.0
      %2039 = vmatprep.subr.mxu0 0.0
      %2040 = vmatpush1.msra.mxu0 0.0
      %2041 = vmatprep.subr.mxu0 0.0
      %2042 = vmatpush1.msra.mxu0 0.0
      %2043 = vmatprep.subr.mxu0 0.0
      %2044 = vmatpush1.msra.mxu0 0.0
      %2045 = vmatprep.subr.mxu0 0.0
      %2046 = vmatpush1.msra.mxu0 0.0
      %2047 = vmatprep.subr.mxu0 0.0
      %2048 = vmatpush1.msra.mxu0 0.0
      %2049 = vmatprep.subr.mxu0 0.0
      %2050 = vmatpush1.msra.mxu0 0.0
      %2051 = vmatprep.subr.mxu0 0.0
      %2052 = vmatpush1.msra.mxu0 0.0
      %2053 = vmatprep.subr.mxu0 0.0
      %2054 = vmatpush1.msra.mxu0 0.0
      %2055 = vmatprep.subr.mxu0 %v2021
      %2056 = vmatpush1.msra.mxu0 %v2020
      %2057 = vmatprep.subr.mxu0 %v2019
      %2058 = vmatpush1.msra.mxu0 %v2018
      %2059 = vmatprep.subr.mxu0 0.0
      %2060 = vmatpush2.msra.mxu0 0.0
      %2061 = vmatprep.subr.mxu0 0.0
      %2062 = vmatpush2.msra.mxu0 0.0
      %2063 = vmatprep.subr.mxu0 0.0
      %2064 = vmatpush2.msra.mxu0 0.0
      %2065 = vmatprep.subr.mxu0 0.0
      %2066 = vmatpush2.msra.mxu0 0.0
      %2067 = vmatprep.subr.mxu0 0.0
      %2068 = vmatpush2.msra.mxu0 0.0
      %2069 = vmatprep.subr.mxu0 0.0
      %2070 = vmatpush2.msra.mxu0 0.0
      %2071 = vmatprep.subr.mxu0 0.0
      %2072 = vmatpush2.msra.mxu0 0.0
      %2073 = vmatprep.subr.mxu0 0.0
      %2074 = vmatpush2.msra.mxu0 0.0
      %2075 = vmatprep.subr.mxu0 0.0
      %2076 = vmatpush2.msra.mxu0 0.0
      %2077 = vmatprep.subr.mxu0 0.0
      %2078 = vmatpush2.msra.mxu0 0.0
      %2079 = vmatprep.subr.mxu0 0.0
      %2080 = vmatpush2.msra.mxu0 0.0
      %2081 = vmatprep.subr.mxu0 0.0
      %2082 = vmatpush2.msra.mxu0 0.0
      %2083 = vmatprep.subr.mxu0 0.0
      %2084 = vmatpush2.msra.mxu0 0.0
      %2085 = vmatprep.subr.mxu0 0.0
      %2086 = vmatpush2.msra.mxu0 0.0
      %2087 = vmatprep.subr.mxu0 0.0
      %2088 = vmatpush2.msra.mxu0 0.0
      %2089 = vmatprep.subr.mxu0 0.0
      %2090 = vmatpush2.msra.mxu0 0.0
      %2091 = vmatprep.mubr.f32.mxu0 0.0
      %2092 = vmatmul.mubr.f32.gmra.mxu0 %v2025
      %v2093 = vpop.f32.mrf.mxu0
      %v2094 = vadd.f32 0.0, %v2093
      %v2095 = vpop.f32.mrf.mxu0
      %v2096 = vadd.f32 0.0, %v2095
      %2097 = vdwg.mxu0
      %v2098 = vadd.f32 %v1996, %v2094
      %v2099 = vadd.f32 %v1997, %v2096
      %2100 = vrot.lane.b32.xlu0 %v1508, 96
      %v2101 = vpop.permute.xlu0 %2100
      %2102 = vrot.lane.b32.xlu0 %v1509, 96
      %v2103 = vpop.permute.xlu0 %2102
      %2104 = vrot.lane.b32.xlu0 %v1517, 96
      %v2105 = vpop.permute.xlu0 %2104
      %2106 = vrot.lane.b32.xlu0 %v1510, 96
      %v2107 = vpop.permute.xlu0 %2106
      %2108 = vrot.lane.b32.xlu0 %v1511, 96
      %v2109 = vpop.permute.xlu0 %2108
      %2110 = vrot.lane.b32.xlu0 %v1518, 96
      %v2111 = vpop.permute.xlu0 %2110
      %v2112 = vsel %vm1119, %v2101, %v2103
      %v2113 = vsel %vm1119, %v2103, %v2105
      %v2114 = vsel %vm1119, %v2107, %v2109
      %v2115 = vsel %vm1119, %v2109, %v2111
      %v2120 = vsel %vm411, %v2112, 0.0
      %v2121 = vsel %vm412, %v2113, 0.0
      %v2122 = vsel %vm411, %v2114, 0.0
      %v2123 = vsel %vm412, %v2115, 0.0
      %s2124 = scalar_lea.vmem %s3, 48
      %v2125 = vld [vmem:[%s2124] sm:$0xff]
      %v2127 = vsel %vm1547, %v2125, 0
      %2129 = vmatprep.subr.mxu0 0.0
      %2130 = vmatpush1.msra.mxu0 0.0
      %2131 = vmatprep.subr.mxu0 0.0
      %2132 = vmatpush1.msra.mxu0 0.0
      %2133 = vmatprep.subr.mxu0 0.0
      %2134 = vmatpush1.msra.mxu0 0.0
      %2135 = vmatprep.subr.mxu0 0.0
      %2136 = vmatpush1.msra.mxu0 0.0
      %2137 = vmatprep.subr.mxu0 0.0
      %2138 = vmatpush1.msra.mxu0 0.0
      %2139 = vmatprep.subr.mxu0 0.0
      %2140 = vmatpush1.msra.mxu0 0.0
      %2141 = vmatprep.subr.mxu0 0.0
      %2142 = vmatpush1.msra.mxu0 0.0
      %2143 = vmatprep.subr.mxu0 0.0
      %2144 = vmatpush1.msra.mxu0 0.0
      %2145 = vmatprep.subr.mxu0 0.0
      %2146 = vmatpush1.msra.mxu0 0.0
      %2147 = vmatprep.subr.mxu0 0.0
      %2148 = vmatpush1.msra.mxu0 0.0
      %2149 = vmatprep.subr.mxu0 0.0
      %2150 = vmatpush1.msra.mxu0 0.0
      %2151 = vmatprep.subr.mxu0 0.0
      %2152 = vmatpush1.msra.mxu0 0.0
      %2153 = vmatprep.subr.mxu0 0.0
      %2154 = vmatpush1.msra.mxu0 0.0
      %2155 = vmatprep.subr.mxu0 0.0
      %2156 = vmatpush1.msra.mxu0 0.0
      %2157 = vmatprep.subr.mxu0 %v2123
      %2158 = vmatpush1.msra.mxu0 %v2122
      %2159 = vmatprep.subr.mxu0 %v2121
      %2160 = vmatpush1.msra.mxu0 %v2120
      %2161 = vmatprep.subr.mxu0 0.0
      %2162 = vmatpush2.msra.mxu0 0.0
      %2163 = vmatprep.subr.mxu0 0.0
      %2164 = vmatpush2.msra.mxu0 0.0
      %2165 = vmatprep.subr.mxu0 0.0
      %2166 = vmatpush2.msra.mxu0 0.0
      %2167 = vmatprep.subr.mxu0 0.0
      %2168 = vmatpush2.msra.mxu0 0.0
      %2169 = vmatprep.subr.mxu0 0.0
      %2170 = vmatpush2.msra.mxu0 0.0
      %2171 = vmatprep.subr.mxu0 0.0
      %2172 = vmatpush2.msra.mxu0 0.0
      %2173 = vmatprep.subr.mxu0 0.0
      %2174 = vmatpush2.msra.mxu0 0.0
      %2175 = vmatprep.subr.mxu0 0.0
      %2176 = vmatpush2.msra.mxu0 0.0
      %2177 = vmatprep.subr.mxu0 0.0
      %2178 = vmatpush2.msra.mxu0 0.0
      %2179 = vmatprep.subr.mxu0 0.0
      %2180 = vmatpush2.msra.mxu0 0.0
      %2181 = vmatprep.subr.mxu0 0.0
      %2182 = vmatpush2.msra.mxu0 0.0
      %2183 = vmatprep.subr.mxu0 0.0
      %2184 = vmatpush2.msra.mxu0 0.0
      %2185 = vmatprep.subr.mxu0 0.0
      %2186 = vmatpush2.msra.mxu0 0.0
      %2187 = vmatprep.subr.mxu0 0.0
      %2188 = vmatpush2.msra.mxu0 0.0
      %2189 = vmatprep.subr.mxu0 0.0
      %2190 = vmatpush2.msra.mxu0 0.0
      %2191 = vmatprep.subr.mxu0 0.0
      %2192 = vmatpush2.msra.mxu0 0.0
      %2193 = vmatprep.mubr.f32.mxu0 0.0
      %2194 = vmatmul.mubr.f32.gmra.mxu0 %v2127
      %v2195 = vpop.f32.mrf.mxu0
      %v2196 = vadd.f32 0.0, %v2195
      %v2197 = vpop.f32.mrf.mxu0
      %v2198 = vadd.f32 0.0, %v2197
      %2199 = vdwg.mxu0
      %v2200 = vadd.f32 %v2098, %v2196
      %v2201 = vadd.f32 %v2099, %v2198
      %s2202 = scalar_lea.vmem %s3, 56
      %v2203 = vld [vmem:[%s2202] sm:$0xff]
      %2204 = vrot.lane.b32.xlu0 %v1508, 95
      %v2205 = vpop.permute.xlu0 %2204
      %2206 = vrot.lane.b32.xlu0 %v1509, 95
      %v2207 = vpop.permute.xlu0 %2206
      %2208 = vrot.lane.b32.xlu0 %v1517, 95
      %v2209 = vpop.permute.xlu0 %2208
      %2210 = vrot.lane.b32.xlu0 %v1510, 95
      %v2211 = vpop.permute.xlu0 %2210
      %2212 = vrot.lane.b32.xlu0 %v1511, 95
      %v2213 = vpop.permute.xlu0 %2212
      %2214 = vrot.lane.b32.xlu0 %v1518, 95
      %v2215 = vpop.permute.xlu0 %2214
      %v2216 = vsel %vm1243, %v2205, %v2207
      %v2217 = vsel %vm1243, %v2207, %v2209
      %v2218 = vsel %vm1243, %v2211, %v2213
      %v2219 = vsel %vm1243, %v2213, %v2215
      %v2225 = vsel %vm1547, %v2203, 0
      %2227 = vmatprep.subr.mxu0 0.0
      %2228 = vmatpush1.msra.mxu0 0.0
      %2229 = vmatprep.subr.mxu0 0.0
      %2230 = vmatpush1.msra.mxu0 0.0
      %2231 = vmatprep.subr.mxu0 0.0
      %2232 = vmatpush1.msra.mxu0 0.0
      %2233 = vmatprep.subr.mxu0 0.0
      %2234 = vmatpush1.msra.mxu0 0.0
      %2235 = vmatprep.subr.mxu0 0.0
      %2236 = vmatpush1.msra.mxu0 0.0
      %2237 = vmatprep.subr.mxu0 0.0
      %2238 = vmatpush1.msra.mxu0 0.0
      %2239 = vmatprep.subr.mxu0 0.0
      %2240 = vmatpush1.msra.mxu0 0.0
      %2241 = vmatprep.subr.mxu0 0.0
      %2242 = vmatpush1.msra.mxu0 0.0
      %2243 = vmatprep.subr.mxu0 0.0
      %2244 = vmatpush1.msra.mxu0 0.0
      %2245 = vmatprep.subr.mxu0 0.0
      %2246 = vmatpush1.msra.mxu0 0.0
      %2247 = vmatprep.subr.mxu0 0.0
      %2248 = vmatpush1.msra.mxu0 0.0
      %2249 = vmatprep.subr.mxu0 0.0
      %2250 = vmatpush1.msra.mxu0 0.0
      %2251 = vmatprep.subr.mxu0 0.0
      %2252 = vmatpush1.msra.mxu0 0.0
      %2253 = vmatprep.subr.mxu0 0.0
      %2254 = vmatpush1.msra.mxu0 0.0
      %2255 = vmatprep.subr.mxu0 %v2219
      %2256 = vmatpush1.msra.mxu0 %v2218
      %2257 = vmatprep.subr.mxu0 %v2217
      %2258 = vmatpush1.msra.mxu0 %v2216
      %2259 = vmatprep.subr.mxu0 0.0
      %2260 = vmatpush2.msra.mxu0 0.0
      %2261 = vmatprep.subr.mxu0 0.0
      %2262 = vmatpush2.msra.mxu0 0.0
      %2263 = vmatprep.subr.mxu0 0.0
      %2264 = vmatpush2.msra.mxu0 0.0
      %2265 = vmatprep.subr.mxu0 0.0
      %2266 = vmatpush2.msra.mxu0 0.0
      %2267 = vmatprep.subr.mxu0 0.0
      %2268 = vmatpush2.msra.mxu0 0.0
      %2269 = vmatprep.subr.mxu0 0.0
      %2270 = vmatpush2.msra.mxu0 0.0
      %2271 = vmatprep.subr.mxu0 0.0
      %2272 = vmatpush2.msra.mxu0 0.0
      %2273 = vmatprep.subr.mxu0 0.0
      %2274 = vmatpush2.msra.mxu0 0.0
      %2275 = vmatprep.subr.mxu0 0.0
      %2276 = vmatpush2.msra.mxu0 0.0
      %2277 = vmatprep.subr.mxu0 0.0
      %2278 = vmatpush2.msra.mxu0 0.0
      %2279 = vmatprep.subr.mxu0 0.0
      %2280 = vmatpush2.msra.mxu0 0.0
      %2281 = vmatprep.subr.mxu0 0.0
      %2282 = vmatpush2.msra.mxu0 0.0
      %2283 = vmatprep.subr.mxu0 0.0
      %2284 = vmatpush2.msra.mxu0 0.0
      %2285 = vmatprep.subr.mxu0 0.0
      %2286 = vmatpush2.msra.mxu0 0.0
      %2287 = vmatprep.subr.mxu0 0.0
      %2288 = vmatpush2.msra.mxu0 0.0
      %2289 = vmatprep.subr.mxu0 0.0
      %2290 = vmatpush2.msra.mxu0 0.0
      %2291 = vmatprep.mubr.f32.mxu0 0.0
      %2292 = vmatmul.mubr.f32.gmra.mxu0 %v2225
      %v2293 = vpop.f32.mrf.mxu0
      %v2294 = vadd.f32 0.0, %v2293
      %v2295 = vpop.f32.mrf.mxu0
      %v2296 = vadd.f32 0.0, %v2295
      %2297 = vdwg.mxu0
      %v2298 = vadd.f32 %v2200, %v2294
      %v2299 = vadd.f32 %v2201, %v2296
      %2300 = vrot.lane.b32.xlu0 %v1508, 94
      %v2301 = vpop.permute.xlu0 %2300
      %2302 = vrot.lane.b32.xlu0 %v1509, 94
      %v2303 = vpop.permute.xlu0 %2302
      %2304 = vrot.lane.b32.xlu0 %v1517, 94
      %v2305 = vpop.permute.xlu0 %2304
      %2306 = vrot.lane.b32.xlu0 %v1510, 94
      %v2307 = vpop.permute.xlu0 %2306
      %2308 = vrot.lane.b32.xlu0 %v1511, 94
      %v2309 = vpop.permute.xlu0 %2308
      %2310 = vrot.lane.b32.xlu0 %v1518, 94
      %v2311 = vpop.permute.xlu0 %2310
      %v2312 = vsel %vm1353, %v2301, %v2303
      %v2313 = vsel %vm1353, %v2303, %v2305
      %v2314 = vsel %vm1353, %v2307, %v2309
      %v2315 = vsel %vm1353, %v2309, %v2311
      %v2320 = vsel %vm629, %v2312, 0.0
      %v2321 = vsel %vm630, %v2313, 0.0
      %v2322 = vsel %vm629, %v2314, 0.0
      %v2323 = vsel %vm630, %v2315, 0.0
      %s2324 = scalar_lea.vmem %s3, 64
      %v2325 = vld [vmem:[%s2324] sm:$0xff]
      %v2327 = vsel %vm1547, %v2325, 0
      %2329 = vmatprep.subr.mxu0 0.0
      %2330 = vmatpush1.msra.mxu0 0.0
      %2331 = vmatprep.subr.mxu0 0.0
      %2332 = vmatpush1.msra.mxu0 0.0
      %2333 = vmatprep.subr.mxu0 0.0
      %2334 = vmatpush1.msra.mxu0 0.0
      %2335 = vmatprep.subr.mxu0 0.0
      %2336 = vmatpush1.msra.mxu0 0.0
      %2337 = vmatprep.subr.mxu0 0.0
      %2338 = vmatpush1.msra.mxu0 0.0
      %2339 = vmatprep.subr.mxu0 0.0
      %2340 = vmatpush1.msra.mxu0 0.0
      %2341 = vmatprep.subr.mxu0 0.0
      %2342 = vmatpush1.msra.mxu0 0.0
      %2343 = vmatprep.subr.mxu0 0.0
      %2344 = vmatpush1.msra.mxu0 0.0
      %2345 = vmatprep.subr.mxu0 0.0
      %2346 = vmatpush1.msra.mxu0 0.0
      %2347 = vmatprep.subr.mxu0 0.0
      %2348 = vmatpush1.msra.mxu0 0.0
      %2349 = vmatprep.subr.mxu0 0.0
      %2350 = vmatpush1.msra.mxu0 0.0
      %2351 = vmatprep.subr.mxu0 0.0
      %2352 = vmatpush1.msra.mxu0 0.0
      %2353 = vmatprep.subr.mxu0 0.0
      %2354 = vmatpush1.msra.mxu0 0.0
      %2355 = vmatprep.subr.mxu0 0.0
      %2356 = vmatpush1.msra.mxu0 0.0
      %2357 = vmatprep.subr.mxu0 %v2323
      %2358 = vmatpush1.msra.mxu0 %v2322
      %2359 = vmatprep.subr.mxu0 %v2321
      %2360 = vmatpush1.msra.mxu0 %v2320
      %2361 = vmatprep.subr.mxu0 0.0
      %2362 = vmatpush2.msra.mxu0 0.0
      %2363 = vmatprep.subr.mxu0 0.0
      %2364 = vmatpush2.msra.mxu0 0.0
      %2365 = vmatprep.subr.mxu0 0.0
      %2366 = vmatpush2.msra.mxu0 0.0
      %2367 = vmatprep.subr.mxu0 0.0
      %2368 = vmatpush2.msra.mxu0 0.0
      %2369 = vmatprep.subr.mxu0 0.0
      %2370 = vmatpush2.msra.mxu0 0.0
      %2371 = vmatprep.subr.mxu0 0.0
      %2372 = vmatpush2.msra.mxu0 0.0
      %2373 = vmatprep.subr.mxu0 0.0
      %2374 = vmatpush2.msra.mxu0 0.0
      %2375 = vmatprep.subr.mxu0 0.0
      %2376 = vmatpush2.msra.mxu0 0.0
      %2377 = vmatprep.subr.mxu0 0.0
      %2378 = vmatpush2.msra.mxu0 0.0
      %2379 = vmatprep.subr.mxu0 0.0
      %2380 = vmatpush2.msra.mxu0 0.0
      %2381 = vmatprep.subr.mxu0 0.0
      %2382 = vmatpush2.msra.mxu0 0.0
      %2383 = vmatprep.subr.mxu0 0.0
      %2384 = vmatpush2.msra.mxu0 0.0
      %2385 = vmatprep.subr.mxu0 0.0
      %2386 = vmatpush2.msra.mxu0 0.0
      %2387 = vmatprep.subr.mxu0 0.0
      %2388 = vmatpush2.msra.mxu0 0.0
      %2389 = vmatprep.subr.mxu0 0.0
      %2390 = vmatpush2.msra.mxu0 0.0
      %2391 = vmatprep.subr.mxu0 0.0
      %2392 = vmatpush2.msra.mxu0 0.0
      %2393 = vmatprep.mubr.f32.mxu0 0.0
      %2394 = vmatmul.mubr.f32.gmra.mxu0 %v2327
      %v2395 = vpop.f32.mrf.mxu0
      %v2396 = vadd.f32 0.0, %v2395
      %v2397 = vpop.f32.mrf.mxu0
      %v2398 = vadd.f32 0.0, %v2397
      %2399 = vdwg.mxu0
      %v2400 = vadd.f32 %v2298, %v2396
      %v2401 = vadd.f32 %v2299, %v2398
      %v2402 = vld [vmem:[%s4] sm:$0xff]
      %2404 = vset.pattern.permute.xlu0 0
      %2405 = vperm.xlu0 %2404, %v2402
      %v2406 = vpop.permute.xlu0 %2405
      %v2408 = vadd.f32 %v2400, %v2406
      %v2409 = vadd.f32 %v2401, %v2406
      %v2410 = vmax.f32 %v2408, 0.0
      %v2411 = vmax.f32 %v2409, 0.0
      %2414 = vrot.lane.b32.xlu0 %v2410, 17
      %v2415 = vpop.permute.xlu0 %2414
      %2416 = vrot.lane.b32.xlu0 %v2411, 17
      %v2417 = vpop.permute.xlu0 %2416
      %v2418 = vsel %vm387, %v2415, %v2417
      %2422 = vst.msk [vmem:[#allocation2] sm:$0xff] %vm396, %v2415
      %2423 = vst [vmem:[#allocation2 + $0x8] sm:$0xff] %v2418
      %2424 = vst.msk [vmem:[#allocation2 + $0x10] sm:$0xff] %vm387, %v2417
      %v2425 = vld [vmem:[#allocation2] sm:$0xff]
      %v2426 = vld [vmem:[#allocation2 + $0x8] sm:$0xff]
      %v2427 = vsel %vm411, %v2425, 0.0
      %v2428 = vsel %vm412, %v2426, 0.0
      %v2429 = vld [vmem:[%s5] sm:$0xf]
      %v2430 = vld [vmem:[#allocation2 + $0x10] sm:$0xff]
      %s2431 = scalar_lea.vmem %s5, 4
      %v2432 = vld [vmem:[%s2431] sm:$0xf]
      %2436 = vrot.lane.b32.xlu0 %v2425, 127
      %v2437 = vpop.permute.xlu0 %2436
      %2438 = vrot.lane.b32.xlu0 %v2426, 127
      %v2439 = vpop.permute.xlu0 %2438
      %2440 = vrot.lane.b32.xlu0 %v2430, 127
      %v2441 = vpop.permute.xlu0 %2440
      %v2442 = vsel %vm442, %v2437, %v2439
      %v2443 = vsel %vm442, %v2439, %v2441
      %vm2446 = vcmask 64512
      %v2448 = vsel %vm2446, %v2432, 0
      %2450 = vmatprep.subr.mxu0 0.0
      %2451 = vmatpush1.msra.mxu0 0.0
      %2452 = vmatprep.subr.mxu0 0.0
      %2453 = vmatpush1.msra.mxu0 0.0
      %2454 = vmatprep.subr.mxu0 0.0
      %2455 = vmatpush1.msra.mxu0 0.0
      %2456 = vmatprep.subr.mxu0 0.0
      %2457 = vmatpush1.msra.mxu0 0.0
      %2458 = vmatprep.subr.mxu0 0.0
      %2459 = vmatpush1.msra.mxu0 0.0
      %2460 = vmatprep.subr.mxu0 0.0
      %2461 = vmatpush1.msra.mxu0 0.0
      %2462 = vmatprep.subr.mxu0 0.0
      %2463 = vmatpush1.msra.mxu0 0.0
      %2464 = vmatprep.subr.mxu0 0.0
      %2465 = vmatpush1.msra.mxu0 0.0
      %2466 = vmatprep.subr.mxu0 0.0
      %2467 = vmatpush1.msra.mxu0 0.0
      %2468 = vmatprep.subr.mxu0 0.0
      %2469 = vmatpush1.msra.mxu0 0.0
      %2470 = vmatprep.subr.mxu0 0.0
      %2471 = vmatpush1.msra.mxu0 0.0
      %2472 = vmatprep.subr.mxu0 0.0
      %2473 = vmatpush1.msra.mxu0 0.0
      %2474 = vmatprep.subr.mxu0 0.0
      %2475 = vmatpush1.msra.mxu0 0.0
      %2476 = vmatprep.subr.mxu0 0.0
      %2477 = vmatpush1.msra.mxu0 0.0
      %2478 = vmatprep.subr.mxu0 0.0
      %2479 = vmatpush1.msra.mxu0 0.0
      %2480 = vmatprep.subr.mxu0 %v2443
      %2481 = vmatpush1.msra.mxu0 %v2442
      %2482 = vmatprep.subr.mxu0 0.0
      %2483 = vmatpush2.msra.mxu0 0.0
      %2484 = vmatprep.subr.mxu0 0.0
      %2485 = vmatpush2.msra.mxu0 0.0
      %2486 = vmatprep.subr.mxu0 0.0
      %2487 = vmatpush2.msra.mxu0 0.0
      %2488 = vmatprep.subr.mxu0 0.0
      %2489 = vmatpush2.msra.mxu0 0.0
      %2490 = vmatprep.subr.mxu0 0.0
      %2491 = vmatpush2.msra.mxu0 0.0
      %2492 = vmatprep.subr.mxu0 0.0
      %2493 = vmatpush2.msra.mxu0 0.0
      %2494 = vmatprep.subr.mxu0 0.0
      %2495 = vmatpush2.msra.mxu0 0.0
      %2496 = vmatprep.subr.mxu0 0.0
      %2497 = vmatpush2.msra.mxu0 0.0
      %2498 = vmatprep.subr.mxu0 0.0
      %2499 = vmatpush2.msra.mxu0 0.0
      %2500 = vmatprep.subr.mxu0 0.0
      %2501 = vmatpush2.msra.mxu0 0.0
      %2502 = vmatprep.subr.mxu0 0.0
      %2503 = vmatpush2.msra.mxu0 0.0
      %2504 = vmatprep.subr.mxu0 0.0
      %2505 = vmatpush2.msra.mxu0 0.0
      %2506 = vmatprep.subr.mxu0 0.0
      %2507 = vmatpush2.msra.mxu0 0.0
      %2508 = vmatprep.subr.mxu0 0.0
      %2509 = vmatpush2.msra.mxu0 0.0
      %2510 = vmatprep.subr.mxu0 0.0
      %2511 = vmatpush2.msra.mxu0 0.0
      %2512 = vmatprep.subr.mxu0 0.0
      %2513 = vmatpush2.msra.mxu0 0.0
      %2514 = vmatprep.mubr.f32.mxu0 0.0
      %2515 = vmatmul.mubr.f32.gmra.mxu0 %v2448
      %v2516 = vpop.f32.mrf.mxu0
      %v2517 = vadd.f32 0.0, %v2516
      %v2518 = vpop.f32.mrf.mxu0
      %v2519 = vadd.f32 0.0, %v2518
      %2520 = vdwg.mxu0
      %v2522 = vsel %vm2446, %v2429, 0
      %2524 = vmatprep.subr.mxu0 0.0
      %2525 = vmatpush1.msra.mxu0 0.0
      %2526 = vmatprep.subr.mxu0 0.0
      %2527 = vmatpush1.msra.mxu0 0.0
      %2528 = vmatprep.subr.mxu0 0.0
      %2529 = vmatpush1.msra.mxu0 0.0
      %2530 = vmatprep.subr.mxu0 0.0
      %2531 = vmatpush1.msra.mxu0 0.0
      %2532 = vmatprep.subr.mxu0 0.0
      %2533 = vmatpush1.msra.mxu0 0.0
      %2534 = vmatprep.subr.mxu0 0.0
      %2535 = vmatpush1.msra.mxu0 0.0
      %2536 = vmatprep.subr.mxu0 0.0
      %2537 = vmatpush1.msra.mxu0 0.0
      %2538 = vmatprep.subr.mxu0 0.0
      %2539 = vmatpush1.msra.mxu0 0.0
      %2540 = vmatprep.subr.mxu0 0.0
      %2541 = vmatpush1.msra.mxu0 0.0
      %2542 = vmatprep.subr.mxu0 0.0
      %2543 = vmatpush1.msra.mxu0 0.0
      %2544 = vmatprep.subr.mxu0 0.0
      %2545 = vmatpush1.msra.mxu0 0.0
      %2546 = vmatprep.subr.mxu0 0.0
      %2547 = vmatpush1.msra.mxu0 0.0
      %2548 = vmatprep.subr.mxu0 0.0
      %2549 = vmatpush1.msra.mxu0 0.0
      %2550 = vmatprep.subr.mxu0 0.0
      %2551 = vmatpush1.msra.mxu0 0.0
      %2552 = vmatprep.subr.mxu0 0.0
      %2553 = vmatpush1.msra.mxu0 0.0
      %2554 = vmatprep.subr.mxu0 %v2428
      %2555 = vmatpush1.msra.mxu0 %v2427
      %2556 = vmatprep.subr.mxu0 0.0
      %2557 = vmatpush2.msra.mxu0 0.0
      %2558 = vmatprep.subr.mxu0 0.0
      %2559 = vmatpush2.msra.mxu0 0.0
      %2560 = vmatprep.subr.mxu0 0.0
      %2561 = vmatpush2.msra.mxu0 0.0
      %2562 = vmatprep.subr.mxu0 0.0
      %2563 = vmatpush2.msra.mxu0 0.0
      %2564 = vmatprep.subr.mxu0 0.0
      %2565 = vmatpush2.msra.mxu0 0.0
      %2566 = vmatprep.subr.mxu0 0.0
      %2567 = vmatpush2.msra.mxu0 0.0
      %2568 = vmatprep.subr.mxu0 0.0
      %2569 = vmatpush2.msra.mxu0 0.0
      %2570 = vmatprep.subr.mxu0 0.0
      %2571 = vmatpush2.msra.mxu0 0.0
      %2572 = vmatprep.subr.mxu0 0.0
      %2573 = vmatpush2.msra.mxu0 0.0
      %2574 = vmatprep.subr.mxu0 0.0
      %2575 = vmatpush2.msra.mxu0 0.0
      %2576 = vmatprep.subr.mxu0 0.0
      %2577 = vmatpush2.msra.mxu0 0.0
      %2578 = vmatprep.subr.mxu0 0.0
      %2579 = vmatpush2.msra.mxu0 0.0
      %2580 = vmatprep.subr.mxu0 0.0
      %2581 = vmatpush2.msra.mxu0 0.0
      %2582 = vmatprep.subr.mxu0 0.0
      %2583 = vmatpush2.msra.mxu0 0.0
      %2584 = vmatprep.subr.mxu0 0.0
      %2585 = vmatpush2.msra.mxu0 0.0
      %2586 = vmatprep.subr.mxu0 0.0
      %2587 = vmatpush2.msra.mxu0 0.0
      %2588 = vmatprep.mubr.f32.mxu0 0.0
      %2589 = vmatmul.mubr.f32.gmra.mxu0 %v2522
      %v2590 = vpop.f32.mrf.mxu0
      %v2591 = vadd.f32 %v2517, %v2590
      %v2592 = vpop.f32.mrf.mxu0
      %v2593 = vadd.f32 %v2519, %v2592
      %2594 = vdwg.mxu0
      %2595 = vrot.lane.b32.xlu0 %v2425, 126
      %v2596 = vpop.permute.xlu0 %2595
      %2597 = vrot.lane.b32.xlu0 %v2426, 126
      %v2598 = vpop.permute.xlu0 %2597
      %2599 = vrot.lane.b32.xlu0 %v2430, 126
      %v2600 = vpop.permute.xlu0 %2599
      %v2601 = vsel %vm643, %v2596, %v2598
      %v2602 = vsel %vm643, %v2598, %v2600
      %v2605 = vsel %vm629, %v2601, 0.0
      %v2606 = vsel %vm630, %v2602, 0.0
      %s2607 = scalar_lea.vmem %s5, 8
      %v2608 = vld [vmem:[%s2607] sm:$0xf]
      %v2610 = vsel %vm2446, %v2608, 0
      %2612 = vmatprep.subr.mxu0 0.0
      %2613 = vmatpush1.msra.mxu0 0.0
      %2614 = vmatprep.subr.mxu0 0.0
      %2615 = vmatpush1.msra.mxu0 0.0
      %2616 = vmatprep.subr.mxu0 0.0
      %2617 = vmatpush1.msra.mxu0 0.0
      %2618 = vmatprep.subr.mxu0 0.0
      %2619 = vmatpush1.msra.mxu0 0.0
      %2620 = vmatprep.subr.mxu0 0.0
      %2621 = vmatpush1.msra.mxu0 0.0
      %2622 = vmatprep.subr.mxu0 0.0
      %2623 = vmatpush1.msra.mxu0 0.0
      %2624 = vmatprep.subr.mxu0 0.0
      %2625 = vmatpush1.msra.mxu0 0.0
      %2626 = vmatprep.subr.mxu0 0.0
      %2627 = vmatpush1.msra.mxu0 0.0
      %2628 = vmatprep.subr.mxu0 0.0
      %2629 = vmatpush1.msra.mxu0 0.0
      %2630 = vmatprep.subr.mxu0 0.0
      %2631 = vmatpush1.msra.mxu0 0.0
      %2632 = vmatprep.subr.mxu0 0.0
      %2633 = vmatpush1.msra.mxu0 0.0
      %2634 = vmatprep.subr.mxu0 0.0
      %2635 = vmatpush1.msra.mxu0 0.0
      %2636 = vmatprep.subr.mxu0 0.0
      %2637 = vmatpush1.msra.mxu0 0.0
      %2638 = vmatprep.subr.mxu0 0.0
      %2639 = vmatpush1.msra.mxu0 0.0
      %2640 = vmatprep.subr.mxu0 0.0
      %2641 = vmatpush1.msra.mxu0 0.0
      %2642 = vmatprep.subr.mxu0 %v2606
      %2643 = vmatpush1.msra.mxu0 %v2605
      %2644 = vmatprep.subr.mxu0 0.0
      %2645 = vmatpush2.msra.mxu0 0.0
      %2646 = vmatprep.subr.mxu0 0.0
      %2647 = vmatpush2.msra.mxu0 0.0
      %2648 = vmatprep.subr.mxu0 0.0
      %2649 = vmatpush2.msra.mxu0 0.0
      %2650 = vmatprep.subr.mxu0 0.0
      %2651 = vmatpush2.msra.mxu0 0.0
      %2652 = vmatprep.subr.mxu0 0.0
      %2653 = vmatpush2.msra.mxu0 0.0
      %2654 = vmatprep.subr.mxu0 0.0
      %2655 = vmatpush2.msra.mxu0 0.0
      %2656 = vmatprep.subr.mxu0 0.0
      %2657 = vmatpush2.msra.mxu0 0.0
      %2658 = vmatprep.subr.mxu0 0.0
      %2659 = vmatpush2.msra.mxu0 0.0
      %2660 = vmatprep.subr.mxu0 0.0
      %2661 = vmatpush2.msra.mxu0 0.0
      %2662 = vmatprep.subr.mxu0 0.0
      %2663 = vmatpush2.msra.mxu0 0.0
      %2664 = vmatprep.subr.mxu0 0.0
      %2665 = vmatpush2.msra.mxu0 0.0
      %2666 = vmatprep.subr.mxu0 0.0
      %2667 = vmatpush2.msra.mxu0 0.0
      %2668 = vmatprep.subr.mxu0 0.0
      %2669 = vmatpush2.msra.mxu0 0.0
      %2670 = vmatprep.subr.mxu0 0.0
      %2671 = vmatpush2.msra.mxu0 0.0
      %2672 = vmatprep.subr.mxu0 0.0
      %2673 = vmatpush2.msra.mxu0 0.0
      %2674 = vmatprep.subr.mxu0 0.0
      %2675 = vmatpush2.msra.mxu0 0.0
      %2676 = vmatprep.mubr.f32.mxu0 0.0
      %2677 = vmatmul.mubr.f32.gmra.mxu0 %v2610
      %v2678 = vpop.f32.mrf.mxu0
      %v2679 = vadd.f32 0.0, %v2678
      %v2680 = vpop.f32.mrf.mxu0
      %v2681 = vadd.f32 0.0, %v2680
      %2682 = vdwg.mxu0
      %v2683 = vadd.f32 %v2591, %v2679
      %v2684 = vadd.f32 %v2593, %v2681
      %2685 = vrot.lane.b32.xlu0 %v2425, 112
      %v2686 = vpop.permute.xlu0 %2685
      %2687 = vrot.lane.b32.xlu0 %v2426, 112
      %v2688 = vpop.permute.xlu0 %2687
      %2689 = vrot.lane.b32.xlu0 %v2430, 112
      %v2690 = vpop.permute.xlu0 %2689
      %v2691 = vsel %vm764, %v2686, %v2688
      %v2692 = vsel %vm764, %v2688, %v2690
      %v2695 = vsel %vm411, %v2691, 0.0
      %v2696 = vsel %vm412, %v2692, 0.0
      %s2697 = scalar_lea.vmem %s5, 12
      %v2698 = vld [vmem:[%s2697] sm:$0xf]
      %v2700 = vsel %vm2446, %v2698, 0
      %2702 = vmatprep.subr.mxu0 0.0
      %2703 = vmatpush1.msra.mxu0 0.0
      %2704 = vmatprep.subr.mxu0 0.0
      %2705 = vmatpush1.msra.mxu0 0.0
      %2706 = vmatprep.subr.mxu0 0.0
      %2707 = vmatpush1.msra.mxu0 0.0
      %2708 = vmatprep.subr.mxu0 0.0
      %2709 = vmatpush1.msra.mxu0 0.0
      %2710 = vmatprep.subr.mxu0 0.0
      %2711 = vmatpush1.msra.mxu0 0.0
      %2712 = vmatprep.subr.mxu0 0.0
      %2713 = vmatpush1.msra.mxu0 0.0
      %2714 = vmatprep.subr.mxu0 0.0
      %2715 = vmatpush1.msra.mxu0 0.0
      %2716 = vmatprep.subr.mxu0 0.0
      %2717 = vmatpush1.msra.mxu0 0.0
      %2718 = vmatprep.subr.mxu0 0.0
      %2719 = vmatpush1.msra.mxu0 0.0
      %2720 = vmatprep.subr.mxu0 0.0
      %2721 = vmatpush1.msra.mxu0 0.0
      %2722 = vmatprep.subr.mxu0 0.0
      %2723 = vmatpush1.msra.mxu0 0.0
      %2724 = vmatprep.subr.mxu0 0.0
      %2725 = vmatpush1.msra.mxu0 0.0
      %2726 = vmatprep.subr.mxu0 0.0
      %2727 = vmatpush1.msra.mxu0 0.0
      %2728 = vmatprep.subr.mxu0 0.0
      %2729 = vmatpush1.msra.mxu0 0.0
      %2730 = vmatprep.subr.mxu0 0.0
      %2731 = vmatpush1.msra.mxu0 0.0
      %2732 = vmatprep.subr.mxu0 %v2696
      %2733 = vmatpush1.msra.mxu0 %v2695
      %2734 = vmatprep.subr.mxu0 0.0
      %2735 = vmatpush2.msra.mxu0 0.0
      %2736 = vmatprep.subr.mxu0 0.0
      %2737 = vmatpush2.msra.mxu0 0.0
      %2738 = vmatprep.subr.mxu0 0.0
      %2739 = vmatpush2.msra.mxu0 0.0
      %2740 = vmatprep.subr.mxu0 0.0
      %2741 = vmatpush2.msra.mxu0 0.0
      %2742 = vmatprep.subr.mxu0 0.0
      %2743 = vmatpush2.msra.mxu0 0.0
      %2744 = vmatprep.subr.mxu0 0.0
      %2745 = vmatpush2.msra.mxu0 0.0
      %2746 = vmatprep.subr.mxu0 0.0
      %2747 = vmatpush2.msra.mxu0 0.0
      %2748 = vmatprep.subr.mxu0 0.0
      %2749 = vmatpush2.msra.mxu0 0.0
      %2750 = vmatprep.subr.mxu0 0.0
      %2751 = vmatpush2.msra.mxu0 0.0
      %2752 = vmatprep.subr.mxu0 0.0
      %2753 = vmatpush2.msra.mxu0 0.0
      %2754 = vmatprep.subr.mxu0 0.0
      %2755 = vmatpush2.msra.mxu0 0.0
      %2756 = vmatprep.subr.mxu0 0.0
      %2757 = vmatpush2.msra.mxu0 0.0
      %2758 = vmatprep.subr.mxu0 0.0
      %2759 = vmatpush2.msra.mxu0 0.0
      %2760 = vmatprep.subr.mxu0 0.0
      %2761 = vmatpush2.msra.mxu0 0.0
      %2762 = vmatprep.subr.mxu0 0.0
      %2763 = vmatpush2.msra.mxu0 0.0
      %2764 = vmatprep.subr.mxu0 0.0
      %2765 = vmatpush2.msra.mxu0 0.0
      %2766 = vmatprep.mubr.f32.mxu0 0.0
      %2767 = vmatmul.mubr.f32.gmra.mxu0 %v2700
      %v2768 = vpop.f32.mrf.mxu0
      %v2769 = vadd.f32 0.0, %v2768
      %v2770 = vpop.f32.mrf.mxu0
      %v2771 = vadd.f32 0.0, %v2770
      %2772 = vdwg.mxu0
      %v2773 = vadd.f32 %v2683, %v2769
      %v2774 = vadd.f32 %v2684, %v2771
      %s2775 = scalar_lea.vmem %s5, 16
      %v2776 = vld [vmem:[%s2775] sm:$0xf]
      %2777 = vrot.lane.b32.xlu0 %v2425, 111
      %v2778 = vpop.permute.xlu0 %2777
      %2779 = vrot.lane.b32.xlu0 %v2426, 111
      %v2780 = vpop.permute.xlu0 %2779
      %2781 = vrot.lane.b32.xlu0 %v2430, 111
      %v2782 = vpop.permute.xlu0 %2781
      %v2783 = vsel %vm888, %v2778, %v2780
      %v2784 = vsel %vm888, %v2780, %v2782
      %v2788 = vsel %vm2446, %v2776, 0
      %2790 = vmatprep.subr.mxu0 0.0
      %2791 = vmatpush1.msra.mxu0 0.0
      %2792 = vmatprep.subr.mxu0 0.0
      %2793 = vmatpush1.msra.mxu0 0.0
      %2794 = vmatprep.subr.mxu0 0.0
      %2795 = vmatpush1.msra.mxu0 0.0
      %2796 = vmatprep.subr.mxu0 0.0
      %2797 = vmatpush1.msra.mxu0 0.0
      %2798 = vmatprep.subr.mxu0 0.0
      %2799 = vmatpush1.msra.mxu0 0.0
      %2800 = vmatprep.subr.mxu0 0.0
      %2801 = vmatpush1.msra.mxu0 0.0
      %2802 = vmatprep.subr.mxu0 0.0
      %2803 = vmatpush1.msra.mxu0 0.0
      %2804 = vmatprep.subr.mxu0 0.0
      %2805 = vmatpush1.msra.mxu0 0.0
      %2806 = vmatprep.subr.mxu0 0.0
      %2807 = vmatpush1.msra.mxu0 0.0
      %2808 = vmatprep.subr.mxu0 0.0
      %2809 = vmatpush1.msra.mxu0 0.0
      %2810 = vmatprep.subr.mxu0 0.0
      %2811 = vmatpush1.msra.mxu0 0.0
      %2812 = vmatprep.subr.mxu0 0.0
      %2813 = vmatpush1.msra.mxu0 0.0
      %2814 = vmatprep.subr.mxu0 0.0
      %2815 = vmatpush1.msra.mxu0 0.0
      %2816 = vmatprep.subr.mxu0 0.0
      %2817 = vmatpush1.msra.mxu0 0.0
      %2818 = vmatprep.subr.mxu0 0.0
      %2819 = vmatpush1.msra.mxu0 0.0
      %2820 = vmatprep.subr.mxu0 %v2784
      %2821 = vmatpush1.msra.mxu0 %v2783
      %2822 = vmatprep.subr.mxu0 0.0
      %2823 = vmatpush2.msra.mxu0 0.0
      %2824 = vmatprep.subr.mxu0 0.0
      %2825 = vmatpush2.msra.mxu0 0.0
      %2826 = vmatprep.subr.mxu0 0.0
      %2827 = vmatpush2.msra.mxu0 0.0
      %2828 = vmatprep.subr.mxu0 0.0
      %2829 = vmatpush2.msra.mxu0 0.0
      %2830 = vmatprep.subr.mxu0 0.0
      %2831 = vmatpush2.msra.mxu0 0.0
      %2832 = vmatprep.subr.mxu0 0.0
      %2833 = vmatpush2.msra.mxu0 0.0
      %2834 = vmatprep.subr.mxu0 0.0
      %2835 = vmatpush2.msra.mxu0 0.0
      %2836 = vmatprep.subr.mxu0 0.0
      %2837 = vmatpush2.msra.mxu0 0.0
      %2838 = vmatprep.subr.mxu0 0.0
      %2839 = vmatpush2.msra.mxu0 0.0
      %2840 = vmatprep.subr.mxu0 0.0
      %2841 = vmatpush2.msra.mxu0 0.0
      %2842 = vmatprep.subr.mxu0 0.0
      %2843 = vmatpush2.msra.mxu0 0.0
      %2844 = vmatprep.subr.mxu0 0.0
      %2845 = vmatpush2.msra.mxu0 0.0
      %2846 = vmatprep.subr.mxu0 0.0
      %2847 = vmatpush2.msra.mxu0 0.0
      %2848 = vmatprep.subr.mxu0 0.0
      %2849 = vmatpush2.msra.mxu0 0.0
      %2850 = vmatprep.subr.mxu0 0.0
      %2851 = vmatpush2.msra.mxu0 0.0
      %2852 = vmatprep.subr.mxu0 0.0
      %2853 = vmatpush2.msra.mxu0 0.0
      %2854 = vmatprep.mubr.f32.mxu0 0.0
      %2855 = vmatmul.mubr.f32.gmra.mxu0 %v2788
      %v2856 = vpop.f32.mrf.mxu0
      %v2857 = vadd.f32 0.0, %v2856
      %v2858 = vpop.f32.mrf.mxu0
      %v2859 = vadd.f32 0.0, %v2858
      %2860 = vdwg.mxu0
      %v2861 = vadd.f32 %v2773, %v2857
      %v2862 = vadd.f32 %v2774, %v2859
      %2863 = vrot.lane.b32.xlu0 %v2425, 110
      %v2864 = vpop.permute.xlu0 %2863
      %2865 = vrot.lane.b32.xlu0 %v2426, 110
      %v2866 = vpop.permute.xlu0 %2865
      %2867 = vrot.lane.b32.xlu0 %v2430, 110
      %v2868 = vpop.permute.xlu0 %2867
      %v2869 = vsel %vm998, %v2864, %v2866
      %v2870 = vsel %vm998, %v2866, %v2868
      %v2873 = vsel %vm629, %v2869, 0.0
      %v2874 = vsel %vm630, %v2870, 0.0
      %s2875 = scalar_lea.vmem %s5, 20
      %v2876 = vld [vmem:[%s2875] sm:$0xf]
      %v2878 = vsel %vm2446, %v2876, 0
      %2880 = vmatprep.subr.mxu0 0.0
      %2881 = vmatpush1.msra.mxu0 0.0
      %2882 = vmatprep.subr.mxu0 0.0
      %2883 = vmatpush1.msra.mxu0 0.0
      %2884 = vmatprep.subr.mxu0 0.0
      %2885 = vmatpush1.msra.mxu0 0.0
      %2886 = vmatprep.subr.mxu0 0.0
      %2887 = vmatpush1.msra.mxu0 0.0
      %2888 = vmatprep.subr.mxu0 0.0
      %2889 = vmatpush1.msra.mxu0 0.0
      %2890 = vmatprep.subr.mxu0 0.0
      %2891 = vmatpush1.msra.mxu0 0.0
      %2892 = vmatprep.subr.mxu0 0.0
      %2893 = vmatpush1.msra.mxu0 0.0
      %2894 = vmatprep.subr.mxu0 0.0
      %2895 = vmatpush1.msra.mxu0 0.0
      %2896 = vmatprep.subr.mxu0 0.0
      %2897 = vmatpush1.msra.mxu0 0.0
      %2898 = vmatprep.subr.mxu0 0.0
      %2899 = vmatpush1.msra.mxu0 0.0
      %2900 = vmatprep.subr.mxu0 0.0
      %2901 = vmatpush1.msra.mxu0 0.0
      %2902 = vmatprep.subr.mxu0 0.0
      %2903 = vmatpush1.msra.mxu0 0.0
      %2904 = vmatprep.subr.mxu0 0.0
      %2905 = vmatpush1.msra.mxu0 0.0
      %2906 = vmatprep.subr.mxu0 0.0
      %2907 = vmatpush1.msra.mxu0 0.0
      %2908 = vmatprep.subr.mxu0 0.0
      %2909 = vmatpush1.msra.mxu0 0.0
      %2910 = vmatprep.subr.mxu0 %v2874
      %2911 = vmatpush1.msra.mxu0 %v2873
      %2912 = vmatprep.subr.mxu0 0.0
      %2913 = vmatpush2.msra.mxu0 0.0
      %2914 = vmatprep.subr.mxu0 0.0
      %2915 = vmatpush2.msra.mxu0 0.0
      %2916 = vmatprep.subr.mxu0 0.0
      %2917 = vmatpush2.msra.mxu0 0.0
      %2918 = vmatprep.subr.mxu0 0.0
      %2919 = vmatpush2.msra.mxu0 0.0
      %2920 = vmatprep.subr.mxu0 0.0
      %2921 = vmatpush2.msra.mxu0 0.0
      %2922 = vmatprep.subr.mxu0 0.0
      %2923 = vmatpush2.msra.mxu0 0.0
      %2924 = vmatprep.subr.mxu0 0.0
      %2925 = vmatpush2.msra.mxu0 0.0
      %2926 = vmatprep.subr.mxu0 0.0
      %2927 = vmatpush2.msra.mxu0 0.0
      %2928 = vmatprep.subr.mxu0 0.0
      %2929 = vmatpush2.msra.mxu0 0.0
      %2930 = vmatprep.subr.mxu0 0.0
      %2931 = vmatpush2.msra.mxu0 0.0
      %2932 = vmatprep.subr.mxu0 0.0
      %2933 = vmatpush2.msra.mxu0 0.0
      %2934 = vmatprep.subr.mxu0 0.0
      %2935 = vmatpush2.msra.mxu0 0.0
      %2936 = vmatprep.subr.mxu0 0.0
      %2937 = vmatpush2.msra.mxu0 0.0
      %2938 = vmatprep.subr.mxu0 0.0
      %2939 = vmatpush2.msra.mxu0 0.0
      %2940 = vmatprep.subr.mxu0 0.0
      %2941 = vmatpush2.msra.mxu0 0.0
      %2942 = vmatprep.subr.mxu0 0.0
      %2943 = vmatpush2.msra.mxu0 0.0
      %2944 = vmatprep.mubr.f32.mxu0 0.0
      %2945 = vmatmul.mubr.f32.gmra.mxu0 %v2878
      %v2946 = vpop.f32.mrf.mxu0
      %v2947 = vadd.f32 0.0, %v2946
      %v2948 = vpop.f32.mrf.mxu0
      %v2949 = vadd.f32 0.0, %v2948
      %2950 = vdwg.mxu0
      %v2951 = vadd.f32 %v2861, %v2947
      %v2952 = vadd.f32 %v2862, %v2949
      %2953 = vrot.lane.b32.xlu0 %v2425, 96
      %v2954 = vpop.permute.xlu0 %2953
      %2955 = vrot.lane.b32.xlu0 %v2426, 96
      %v2956 = vpop.permute.xlu0 %2955
      %2957 = vrot.lane.b32.xlu0 %v2430, 96
      %v2958 = vpop.permute.xlu0 %2957
      %v2959 = vsel %vm1119, %v2954, %v2956
      %v2960 = vsel %vm1119, %v2956, %v2958
      %v2963 = vsel %vm411, %v2959, 0.0
      %v2964 = vsel %vm412, %v2960, 0.0
      %s2965 = scalar_lea.vmem %s5, 24
      %v2966 = vld [vmem:[%s2965] sm:$0xf]
      %v2968 = vsel %vm2446, %v2966, 0
      %2970 = vmatprep.subr.mxu0 0.0
      %2971 = vmatpush1.msra.mxu0 0.0
      %2972 = vmatprep.subr.mxu0 0.0
      %2973 = vmatpush1.msra.mxu0 0.0
      %2974 = vmatprep.subr.mxu0 0.0
      %2975 = vmatpush1.msra.mxu0 0.0
      %2976 = vmatprep.subr.mxu0 0.0
      %2977 = vmatpush1.msra.mxu0 0.0
      %2978 = vmatprep.subr.mxu0 0.0
      %2979 = vmatpush1.msra.mxu0 0.0
      %2980 = vmatprep.subr.mxu0 0.0
      %2981 = vmatpush1.msra.mxu0 0.0
      %2982 = vmatprep.subr.mxu0 0.0
      %2983 = vmatpush1.msra.mxu0 0.0
      %2984 = vmatprep.subr.mxu0 0.0
      %2985 = vmatpush1.msra.mxu0 0.0
      %2986 = vmatprep.subr.mxu0 0.0
      %2987 = vmatpush1.msra.mxu0 0.0
      %2988 = vmatprep.subr.mxu0 0.0
      %2989 = vmatpush1.msra.mxu0 0.0
      %2990 = vmatprep.subr.mxu0 0.0
      %2991 = vmatpush1.msra.mxu0 0.0
      %2992 = vmatprep.subr.mxu0 0.0
      %2993 = vmatpush1.msra.mxu0 0.0
      %2994 = vmatprep.subr.mxu0 0.0
      %2995 = vmatpush1.msra.mxu0 0.0
      %2996 = vmatprep.subr.mxu0 0.0
      %2997 = vmatpush1.msra.mxu0 0.0
      %2998 = vmatprep.subr.mxu0 0.0
      %2999 = vmatpush1.msra.mxu0 0.0
      %3000 = vmatprep.subr.mxu0 %v2964
      %3001 = vmatpush1.msra.mxu0 %v2963
      %3002 = vmatprep.subr.mxu0 0.0
      %3003 = vmatpush2.msra.mxu0 0.0
      %3004 = vmatprep.subr.mxu0 0.0
      %3005 = vmatpush2.msra.mxu0 0.0
      %3006 = vmatprep.subr.mxu0 0.0
      %3007 = vmatpush2.msra.mxu0 0.0
      %3008 = vmatprep.subr.mxu0 0.0
      %3009 = vmatpush2.msra.mxu0 0.0
      %3010 = vmatprep.subr.mxu0 0.0
      %3011 = vmatpush2.msra.mxu0 0.0
      %3012 = vmatprep.subr.mxu0 0.0
      %3013 = vmatpush2.msra.mxu0 0.0
      %3014 = vmatprep.subr.mxu0 0.0
      %3015 = vmatpush2.msra.mxu0 0.0
      %3016 = vmatprep.subr.mxu0 0.0
      %3017 = vmatpush2.msra.mxu0 0.0
      %3018 = vmatprep.subr.mxu0 0.0
      %3019 = vmatpush2.msra.mxu0 0.0
      %3020 = vmatprep.subr.mxu0 0.0
      %3021 = vmatpush2.msra.mxu0 0.0
      %3022 = vmatprep.subr.mxu0 0.0
      %3023 = vmatpush2.msra.mxu0 0.0
      %3024 = vmatprep.subr.mxu0 0.0
      %3025 = vmatpush2.msra.mxu0 0.0
      %3026 = vmatprep.subr.mxu0 0.0
      %3027 = vmatpush2.msra.mxu0 0.0
      %3028 = vmatprep.subr.mxu0 0.0
      %3029 = vmatpush2.msra.mxu0 0.0
      %3030 = vmatprep.subr.mxu0 0.0
      %3031 = vmatpush2.msra.mxu0 0.0
      %3032 = vmatprep.subr.mxu0 0.0
      %3033 = vmatpush2.msra.mxu0 0.0
      %3034 = vmatprep.mubr.f32.mxu0 0.0
      %3035 = vmatmul.mubr.f32.gmra.mxu0 %v2968
      %v3036 = vpop.f32.mrf.mxu0
      %v3037 = vadd.f32 0.0, %v3036
      %v3038 = vpop.f32.mrf.mxu0
      %v3039 = vadd.f32 0.0, %v3038
      %3040 = vdwg.mxu0
      %v3041 = vadd.f32 %v2951, %v3037
      %v3042 = vadd.f32 %v2952, %v3039
      %s3043 = scalar_lea.vmem %s5, 28
      %v3044 = vld [vmem:[%s3043] sm:$0xf]
      %3045 = vrot.lane.b32.xlu0 %v2425, 95
      %v3046 = vpop.permute.xlu0 %3045
      %3047 = vrot.lane.b32.xlu0 %v2426, 95
      %v3048 = vpop.permute.xlu0 %3047
      %3049 = vrot.lane.b32.xlu0 %v2430, 95
      %v3050 = vpop.permute.xlu0 %3049
      %v3051 = vsel %vm1243, %v3046, %v3048
      %v3052 = vsel %vm1243, %v3048, %v3050
      %v3056 = vsel %vm2446, %v3044, 0
      %3058 = vmatprep.subr.mxu0 0.0
      %3059 = vmatpush1.msra.mxu0 0.0
      %3060 = vmatprep.subr.mxu0 0.0
      %3061 = vmatpush1.msra.mxu0 0.0
      %3062 = vmatprep.subr.mxu0 0.0
      %3063 = vmatpush1.msra.mxu0 0.0
      %3064 = vmatprep.subr.mxu0 0.0
      %3065 = vmatpush1.msra.mxu0 0.0
      %3066 = vmatprep.subr.mxu0 0.0
      %3067 = vmatpush1.msra.mxu0 0.0
      %3068 = vmatprep.subr.mxu0 0.0
      %3069 = vmatpush1.msra.mxu0 0.0
      %3070 = vmatprep.subr.mxu0 0.0
      %3071 = vmatpush1.msra.mxu0 0.0
      %3072 = vmatprep.subr.mxu0 0.0
      %3073 = vmatpush1.msra.mxu0 0.0
      %3074 = vmatprep.subr.mxu0 0.0
      %3075 = vmatpush1.msra.mxu0 0.0
      %3076 = vmatprep.subr.mxu0 0.0
      %3077 = vmatpush1.msra.mxu0 0.0
      %3078 = vmatprep.subr.mxu0 0.0
      %3079 = vmatpush1.msra.mxu0 0.0
      %3080 = vmatprep.subr.mxu0 0.0
      %3081 = vmatpush1.msra.mxu0 0.0
      %3082 = vmatprep.subr.mxu0 0.0
      %3083 = vmatpush1.msra.mxu0 0.0
      %3084 = vmatprep.subr.mxu0 0.0
      %3085 = vmatpush1.msra.mxu0 0.0
      %3086 = vmatprep.subr.mxu0 0.0
      %3087 = vmatpush1.msra.mxu0 0.0
      %3088 = vmatprep.subr.mxu0 %v3052
      %3089 = vmatpush1.msra.mxu0 %v3051
      %3090 = vmatprep.subr.mxu0 0.0
      %3091 = vmatpush2.msra.mxu0 0.0
      %3092 = vmatprep.subr.mxu0 0.0
      %3093 = vmatpush2.msra.mxu0 0.0
      %3094 = vmatprep.subr.mxu0 0.0
      %3095 = vmatpush2.msra.mxu0 0.0
      %3096 = vmatprep.subr.mxu0 0.0
      %3097 = vmatpush2.msra.mxu0 0.0
      %3098 = vmatprep.subr.mxu0 0.0
      %3099 = vmatpush2.msra.mxu0 0.0
      %3100 = vmatprep.subr.mxu0 0.0
      %3101 = vmatpush2.msra.mxu0 0.0
      %3102 = vmatprep.subr.mxu0 0.0
      %3103 = vmatpush2.msra.mxu0 0.0
      %3104 = vmatprep.subr.mxu0 0.0
      %3105 = vmatpush2.msra.mxu0 0.0
      %3106 = vmatprep.subr.mxu0 0.0
      %3107 = vmatpush2.msra.mxu0 0.0
      %3108 = vmatprep.subr.mxu0 0.0
      %3109 = vmatpush2.msra.mxu0 0.0
      %3110 = vmatprep.subr.mxu0 0.0
      %3111 = vmatpush2.msra.mxu0 0.0
      %3112 = vmatprep.subr.mxu0 0.0
      %3113 = vmatpush2.msra.mxu0 0.0
      %3114 = vmatprep.subr.mxu0 0.0
      %3115 = vmatpush2.msra.mxu0 0.0
      %3116 = vmatprep.subr.mxu0 0.0
      %3117 = vmatpush2.msra.mxu0 0.0
      %3118 = vmatprep.subr.mxu0 0.0
      %3119 = vmatpush2.msra.mxu0 0.0
      %3120 = vmatprep.subr.mxu0 0.0
      %3121 = vmatpush2.msra.mxu0 0.0
      %3122 = vmatprep.mubr.f32.mxu0 0.0
      %3123 = vmatmul.mubr.f32.gmra.mxu0 %v3056
      %v3124 = vpop.f32.mrf.mxu0
      %v3125 = vadd.f32 0.0, %v3124
      %v3126 = vpop.f32.mrf.mxu0
      %v3127 = vadd.f32 0.0, %v3126
      %3128 = vdwg.mxu0
      %v3129 = vadd.f32 %v3041, %v3125
      %v3130 = vadd.f32 %v3042, %v3127
      %3131 = vrot.lane.b32.xlu0 %v2425, 94
      %v3132 = vpop.permute.xlu0 %3131
      %3133 = vrot.lane.b32.xlu0 %v2426, 94
      %v3134 = vpop.permute.xlu0 %3133
      %3135 = vrot.lane.b32.xlu0 %v2430, 94
      %v3136 = vpop.permute.xlu0 %3135
      %v3137 = vsel %vm1353, %v3132, %v3134
      %v3138 = vsel %vm1353, %v3134, %v3136
      %v3141 = vsel %vm629, %v3137, 0.0
      %v3142 = vsel %vm630, %v3138, 0.0
      %s3143 = scalar_lea.vmem %s5, 32
      %v3144 = vld [vmem:[%s3143] sm:$0xf]
      %v3146 = vsel %vm2446, %v3144, 0
      %3148 = vmatprep.subr.mxu0 0.0
      %3149 = vmatpush1.msra.mxu0 0.0
      %3150 = vmatprep.subr.mxu0 0.0
      %3151 = vmatpush1.msra.mxu0 0.0
      %3152 = vmatprep.subr.mxu0 0.0
      %3153 = vmatpush1.msra.mxu0 0.0
      %3154 = vmatprep.subr.mxu0 0.0
      %3155 = vmatpush1.msra.mxu0 0.0
      %3156 = vmatprep.subr.mxu0 0.0
      %3157 = vmatpush1.msra.mxu0 0.0
      %3158 = vmatprep.subr.mxu0 0.0
      %3159 = vmatpush1.msra.mxu0 0.0
      %3160 = vmatprep.subr.mxu0 0.0
      %3161 = vmatpush1.msra.mxu0 0.0
      %3162 = vmatprep.subr.mxu0 0.0
      %3163 = vmatpush1.msra.mxu0 0.0
      %3164 = vmatprep.subr.mxu0 0.0
      %3165 = vmatpush1.msra.mxu0 0.0
      %3166 = vmatprep.subr.mxu0 0.0
      %3167 = vmatpush1.msra.mxu0 0.0
      %3168 = vmatprep.subr.mxu0 0.0
      %3169 = vmatpush1.msra.mxu0 0.0
      %3170 = vmatprep.subr.mxu0 0.0
      %3171 = vmatpush1.msra.mxu0 0.0
      %3172 = vmatprep.subr.mxu0 0.0
      %3173 = vmatpush1.msra.mxu0 0.0
      %3174 = vmatprep.subr.mxu0 0.0
      %3175 = vmatpush1.msra.mxu0 0.0
      %3176 = vmatprep.subr.mxu0 0.0
      %3177 = vmatpush1.msra.mxu0 0.0
      %3178 = vmatprep.subr.mxu0 %v3142
      %3179 = vmatpush1.msra.mxu0 %v3141
      %3180 = vmatprep.subr.mxu0 0.0
      %3181 = vmatpush2.msra.mxu0 0.0
      %3182 = vmatprep.subr.mxu0 0.0
      %3183 = vmatpush2.msra.mxu0 0.0
      %3184 = vmatprep.subr.mxu0 0.0
      %3185 = vmatpush2.msra.mxu0 0.0
      %3186 = vmatprep.subr.mxu0 0.0
      %3187 = vmatpush2.msra.mxu0 0.0
      %3188 = vmatprep.subr.mxu0 0.0
      %3189 = vmatpush2.msra.mxu0 0.0
      %3190 = vmatprep.subr.mxu0 0.0
      %3191 = vmatpush2.msra.mxu0 0.0
      %3192 = vmatprep.subr.mxu0 0.0
      %3193 = vmatpush2.msra.mxu0 0.0
      %3194 = vmatprep.subr.mxu0 0.0
      %3195 = vmatpush2.msra.mxu0 0.0
      %3196 = vmatprep.subr.mxu0 0.0
      %3197 = vmatpush2.msra.mxu0 0.0
      %3198 = vmatprep.subr.mxu0 0.0
      %3199 = vmatpush2.msra.mxu0 0.0
      %3200 = vmatprep.subr.mxu0 0.0
      %3201 = vmatpush2.msra.mxu0 0.0
      %3202 = vmatprep.subr.mxu0 0.0
      %3203 = vmatpush2.msra.mxu0 0.0
      %3204 = vmatprep.subr.mxu0 0.0
      %3205 = vmatpush2.msra.mxu0 0.0
      %3206 = vmatprep.subr.mxu0 0.0
      %3207 = vmatpush2.msra.mxu0 0.0
      %3208 = vmatprep.subr.mxu0 0.0
      %3209 = vmatpush2.msra.mxu0 0.0
      %3210 = vmatprep.subr.mxu0 0.0
      %3211 = vmatpush2.msra.mxu0 0.0
      %3212 = vmatprep.mubr.f32.mxu0 0.0
      %3213 = vmatmul.mubr.f32.gmra.mxu0 %v3146
      %v3214 = vpop.f32.mrf.mxu0
      %v3215 = vadd.f32 0.0, %v3214
      %v3216 = vpop.f32.mrf.mxu0
      %v3217 = vadd.f32 0.0, %v3216
      %3218 = vdwg.mxu0
      %v3219 = vadd.f32 %v3129, %v3215
      %v3220 = vadd.f32 %v3130, %v3217
      %v3221 = vld [vmem:[%s6] sm:$0xf]
      %3223 = vset.pattern.permute.xlu0 0
      %3224 = vperm.xlu0 %3223, %v3221
      %v3225 = vpop.permute.xlu0 %3224
      %v3227 = vadd.f32 %v3219, %v3225
      %v3228 = vadd.f32 %v3220, %v3225
      %v3229 = vmax.f32 %v3227, 0.0
      %v3230 = vmax.f32 %v3228, 0.0
      %3233 = vrot.lane.b32.xlu0 %v3229, 17
      %v3234 = vpop.permute.xlu0 %3233
      %3235 = vrot.lane.b32.xlu0 %v3230, 17
      %v3236 = vpop.permute.xlu0 %3235
      %v3237 = vsel %vm387, %v3234, %v3236
      %3241 = vst.msk [vmem:[#allocation2] sm:$0xf] %vm400, %v3234
      %3242 = vst [vmem:[#allocation2 + $0x8] sm:$0xf] %v3237
      %3243 = vst.msk [vmem:[#allocation2 + $0x10] sm:$0xf] %vm403, %v3236
      %v3244 = vld [vmem:[#allocation2] sm:$0xf]
      %v3245 = vld [vmem:[#allocation2 + $0x8] sm:$0xf]
      %v3246 = vsel %vm411, %v3244, 0.0
      %v3247 = vsel %vm412, %v3245, 0.0
      %v3248 = vld [vmem:[%s7] sm:$0x7]
      %v3249 = vld [vmem:[#allocation2 + $0x10] sm:$0xf]
      %s3250 = scalar_lea.vmem %s7, 4
      %v3251 = vld [vmem:[%s3250] sm:$0x7]
      %3255 = vrot.lane.b32.xlu0 %v3244, 127
      %v3256 = vpop.permute.xlu0 %3255
      %3257 = vrot.lane.b32.xlu0 %v3245, 127
      %v3258 = vpop.permute.xlu0 %3257
      %3259 = vrot.lane.b32.xlu0 %v3249, 127
      %v3260 = vpop.permute.xlu0 %3259
      %v3261 = vsel %vm442, %v3256, %v3258
      %v3262 = vsel %vm442, %v3258, %v3260
      %vm3263 = vcmask 31744
      %v3265 = vsel %vm3263, %v3251, 0
      %v3267 = vsel %vm456, %v3261, 0
      %v3269 = vsel %vm456, %v3262, 0
      %3271 = vmatprep.subr.mxu0 0.0
      %3272 = vmatpush1.msra.mxu0 0.0
      %3273 = vmatprep.subr.mxu0 0.0
      %3274 = vmatpush1.msra.mxu0 0.0
      %3275 = vmatprep.subr.mxu0 0.0
      %3276 = vmatpush1.msra.mxu0 0.0
      %3277 = vmatprep.subr.mxu0 0.0
      %3278 = vmatpush1.msra.mxu0 0.0
      %3279 = vmatprep.subr.mxu0 0.0
      %3280 = vmatpush1.msra.mxu0 0.0
      %3281 = vmatprep.subr.mxu0 0.0
      %3282 = vmatpush1.msra.mxu0 0.0
      %3283 = vmatprep.subr.mxu0 0.0
      %3284 = vmatpush1.msra.mxu0 0.0
      %3285 = vmatprep.subr.mxu0 0.0
      %3286 = vmatpush1.msra.mxu0 0.0
      %3287 = vmatprep.subr.mxu0 0.0
      %3288 = vmatpush1.msra.mxu0 0.0
      %3289 = vmatprep.subr.mxu0 0.0
      %3290 = vmatpush1.msra.mxu0 0.0
      %3291 = vmatprep.subr.mxu0 0.0
      %3292 = vmatpush1.msra.mxu0 0.0
      %3293 = vmatprep.subr.mxu0 0.0
      %3294 = vmatpush1.msra.mxu0 0.0
      %3295 = vmatprep.subr.mxu0 0.0
      %3296 = vmatpush1.msra.mxu0 0.0
      %3297 = vmatprep.subr.mxu0 0.0
      %3298 = vmatpush1.msra.mxu0 0.0
      %3299 = vmatprep.subr.mxu0 0.0
      %3300 = vmatpush1.msra.mxu0 0.0
      %3301 = vmatprep.subr.mxu0 %v3269
      %3302 = vmatpush1.msra.mxu0 %v3267
      %3303 = vmatprep.subr.mxu0 0.0
      %3304 = vmatpush2.msra.mxu0 0.0
      %3305 = vmatprep.subr.mxu0 0.0
      %3306 = vmatpush2.msra.mxu0 0.0
      %3307 = vmatprep.subr.mxu0 0.0
      %3308 = vmatpush2.msra.mxu0 0.0
      %3309 = vmatprep.subr.mxu0 0.0
      %3310 = vmatpush2.msra.mxu0 0.0
      %3311 = vmatprep.subr.mxu0 0.0
      %3312 = vmatpush2.msra.mxu0 0.0
      %3313 = vmatprep.subr.mxu0 0.0
      %3314 = vmatpush2.msra.mxu0 0.0
      %3315 = vmatprep.subr.mxu0 0.0
      %3316 = vmatpush2.msra.mxu0 0.0
      %3317 = vmatprep.subr.mxu0 0.0
      %3318 = vmatpush2.msra.mxu0 0.0
      %3319 = vmatprep.subr.mxu0 0.0
      %3320 = vmatpush2.msra.mxu0 0.0
      %3321 = vmatprep.subr.mxu0 0.0
      %3322 = vmatpush2.msra.mxu0 0.0
      %3323 = vmatprep.subr.mxu0 0.0
      %3324 = vmatpush2.msra.mxu0 0.0
      %3325 = vmatprep.subr.mxu0 0.0
      %3326 = vmatpush2.msra.mxu0 0.0
      %3327 = vmatprep.subr.mxu0 0.0
      %3328 = vmatpush2.msra.mxu0 0.0
      %3329 = vmatprep.subr.mxu0 0.0
      %3330 = vmatpush2.msra.mxu0 0.0
      %3331 = vmatprep.subr.mxu0 0.0
      %3332 = vmatpush2.msra.mxu0 0.0
      %3333 = vmatprep.subr.mxu0 0.0
      %3334 = vmatpush2.msra.mxu0 0.0
      %3335 = vmatprep.mubr.f32.mxu0 0.0
      %3336 = vmatmul.mubr.f32.gmra.mxu0 %v3265
      %v3337 = vpop.f32.mrf.mxu0
      %v3338 = vadd.f32 0.0, %v3337
      %v3339 = vpop.f32.mrf.mxu0
      %v3340 = vadd.f32 0.0, %v3339
      %3341 = vdwg.mxu0
      %v3343 = vsel %vm3263, %v3248, 0
      %v3346 = vsel %vm456, %v3246, 0
      %v3349 = vsel %vm456, %v3247, 0
      %3351 = vmatprep.subr.mxu0 0.0
      %3352 = vmatpush1.msra.mxu0 0.0
      %3353 = vmatprep.subr.mxu0 0.0
      %3354 = vmatpush1.msra.mxu0 0.0
      %3355 = vmatprep.subr.mxu0 0.0
      %3356 = vmatpush1.msra.mxu0 0.0
      %3357 = vmatprep.subr.mxu0 0.0
      %3358 = vmatpush1.msra.mxu0 0.0
      %3359 = vmatprep.subr.mxu0 0.0
      %3360 = vmatpush1.msra.mxu0 0.0
      %3361 = vmatprep.subr.mxu0 0.0
      %3362 = vmatpush1.msra.mxu0 0.0
      %3363 = vmatprep.subr.mxu0 0.0
      %3364 = vmatpush1.msra.mxu0 0.0
      %3365 = vmatprep.subr.mxu0 0.0
      %3366 = vmatpush1.msra.mxu0 0.0
      %3367 = vmatprep.subr.mxu0 0.0
      %3368 = vmatpush1.msra.mxu0 0.0
      %3369 = vmatprep.subr.mxu0 0.0
      %3370 = vmatpush1.msra.mxu0 0.0
      %3371 = vmatprep.subr.mxu0 0.0
      %3372 = vmatpush1.msra.mxu0 0.0
      %3373 = vmatprep.subr.mxu0 0.0
      %3374 = vmatpush1.msra.mxu0 0.0
      %3375 = vmatprep.subr.mxu0 0.0
      %3376 = vmatpush1.msra.mxu0 0.0
      %3377 = vmatprep.subr.mxu0 0.0
      %3378 = vmatpush1.msra.mxu0 0.0
      %3379 = vmatprep.subr.mxu0 0.0
      %3380 = vmatpush1.msra.mxu0 0.0
      %3381 = vmatprep.subr.mxu0 %v3349
      %3382 = vmatpush1.msra.mxu0 %v3346
      %3383 = vmatprep.subr.mxu0 0.0
      %3384 = vmatpush2.msra.mxu0 0.0
      %3385 = vmatprep.subr.mxu0 0.0
      %3386 = vmatpush2.msra.mxu0 0.0
      %3387 = vmatprep.subr.mxu0 0.0
      %3388 = vmatpush2.msra.mxu0 0.0
      %3389 = vmatprep.subr.mxu0 0.0
      %3390 = vmatpush2.msra.mxu0 0.0
      %3391 = vmatprep.subr.mxu0 0.0
      %3392 = vmatpush2.msra.mxu0 0.0
      %3393 = vmatprep.subr.mxu0 0.0
      %3394 = vmatpush2.msra.mxu0 0.0
      %3395 = vmatprep.subr.mxu0 0.0
      %3396 = vmatpush2.msra.mxu0 0.0
      %3397 = vmatprep.subr.mxu0 0.0
      %3398 = vmatpush2.msra.mxu0 0.0
      %3399 = vmatprep.subr.mxu0 0.0
      %3400 = vmatpush2.msra.mxu0 0.0
      %3401 = vmatprep.subr.mxu0 0.0
      %3402 = vmatpush2.msra.mxu0 0.0
      %3403 = vmatprep.subr.mxu0 0.0
      %3404 = vmatpush2.msra.mxu0 0.0
      %3405 = vmatprep.subr.mxu0 0.0
      %3406 = vmatpush2.msra.mxu0 0.0
      %3407 = vmatprep.subr.mxu0 0.0
      %3408 = vmatpush2.msra.mxu0 0.0
      %3409 = vmatprep.subr.mxu0 0.0
      %3410 = vmatpush2.msra.mxu0 0.0
      %3411 = vmatprep.subr.mxu0 0.0
      %3412 = vmatpush2.msra.mxu0 0.0
      %3413 = vmatprep.subr.mxu0 0.0
      %3414 = vmatpush2.msra.mxu0 0.0
      %3415 = vmatprep.mubr.f32.mxu0 0.0
      %3416 = vmatmul.mubr.f32.gmra.mxu0 %v3343
      %v3417 = vpop.f32.mrf.mxu0
      %v3418 = vadd.f32 %v3338, %v3417
      %v3419 = vpop.f32.mrf.mxu0
      %v3420 = vadd.f32 %v3340, %v3419
      %3421 = vdwg.mxu0
      %3422 = vrot.lane.b32.xlu0 %v3244, 126
      %v3423 = vpop.permute.xlu0 %3422
      %3424 = vrot.lane.b32.xlu0 %v3245, 126
      %v3425 = vpop.permute.xlu0 %3424
      %3426 = vrot.lane.b32.xlu0 %v3249, 126
      %v3427 = vpop.permute.xlu0 %3426
      %v3428 = vsel %vm643, %v3423, %v3425
      %v3429 = vsel %vm643, %v3425, %v3427
      %v3432 = vsel %vm629, %v3428, 0.0
      %v3433 = vsel %vm630, %v3429, 0.0
      %s3434 = scalar_lea.vmem %s7, 8
      %v3435 = vld [vmem:[%s3434] sm:$0x7]
      %v3437 = vsel %vm3263, %v3435, 0
      %v3440 = vsel %vm456, %v3432, 0
      %v3443 = vsel %vm456, %v3433, 0
      %3445 = vmatprep.subr.mxu0 0.0
      %3446 = vmatpush1.msra.mxu0 0.0
      %3447 = vmatprep.subr.mxu0 0.0
      %3448 = vmatpush1.msra.mxu0 0.0
      %3449 = vmatprep.subr.mxu0 0.0
      %3450 = vmatpush1.msra.mxu0 0.0
      %3451 = vmatprep.subr.mxu0 0.0
      %3452 = vmatpush1.msra.mxu0 0.0
      %3453 = vmatprep.subr.mxu0 0.0
      %3454 = vmatpush1.msra.mxu0 0.0
      %3455 = vmatprep.subr.mxu0 0.0
      %3456 = vmatpush1.msra.mxu0 0.0
      %3457 = vmatprep.subr.mxu0 0.0
      %3458 = vmatpush1.msra.mxu0 0.0
      %3459 = vmatprep.subr.mxu0 0.0
      %3460 = vmatpush1.msra.mxu0 0.0
      %3461 = vmatprep.subr.mxu0 0.0
      %3462 = vmatpush1.msra.mxu0 0.0
      %3463 = vmatprep.subr.mxu0 0.0
      %3464 = vmatpush1.msra.mxu0 0.0
      %3465 = vmatprep.subr.mxu0 0.0
      %3466 = vmatpush1.msra.mxu0 0.0
      %3467 = vmatprep.subr.mxu0 0.0
      %3468 = vmatpush1.msra.mxu0 0.0
      %3469 = vmatprep.subr.mxu0 0.0
      %3470 = vmatpush1.msra.mxu0 0.0
      %3471 = vmatprep.subr.mxu0 0.0
      %3472 = vmatpush1.msra.mxu0 0.0
      %3473 = vmatprep.subr.mxu0 0.0
      %3474 = vmatpush1.msra.mxu0 0.0
      %3475 = vmatprep.subr.mxu0 %v3443
      %3476 = vmatpush1.msra.mxu0 %v3440
      %3477 = vmatprep.subr.mxu0 0.0
      %3478 = vmatpush2.msra.mxu0 0.0
      %3479 = vmatprep.subr.mxu0 0.0
      %3480 = vmatpush2.msra.mxu0 0.0
      %3481 = vmatprep.subr.mxu0 0.0
      %3482 = vmatpush2.msra.mxu0 0.0
      %3483 = vmatprep.subr.mxu0 0.0
      %3484 = vmatpush2.msra.mxu0 0.0
      %3485 = vmatprep.subr.mxu0 0.0
      %3486 = vmatpush2.msra.mxu0 0.0
      %3487 = vmatprep.subr.mxu0 0.0
      %3488 = vmatpush2.msra.mxu0 0.0
      %3489 = vmatprep.subr.mxu0 0.0
      %3490 = vmatpush2.msra.mxu0 0.0
      %3491 = vmatprep.subr.mxu0 0.0
      %3492 = vmatpush2.msra.mxu0 0.0
      %3493 = vmatprep.subr.mxu0 0.0
      %3494 = vmatpush2.msra.mxu0 0.0
      %3495 = vmatprep.subr.mxu0 0.0
      %3496 = vmatpush2.msra.mxu0 0.0
      %3497 = vmatprep.subr.mxu0 0.0
      %3498 = vmatpush2.msra.mxu0 0.0
      %3499 = vmatprep.subr.mxu0 0.0
      %3500 = vmatpush2.msra.mxu0 0.0
      %3501 = vmatprep.subr.mxu0 0.0
      %3502 = vmatpush2.msra.mxu0 0.0
      %3503 = vmatprep.subr.mxu0 0.0
      %3504 = vmatpush2.msra.mxu0 0.0
      %3505 = vmatprep.subr.mxu0 0.0
      %3506 = vmatpush2.msra.mxu0 0.0
      %3507 = vmatprep.subr.mxu0 0.0
      %3508 = vmatpush2.msra.mxu0 0.0
      %3509 = vmatprep.mubr.f32.mxu0 0.0
      %3510 = vmatmul.mubr.f32.gmra.mxu0 %v3437
      %v3511 = vpop.f32.mrf.mxu0
      %v3512 = vadd.f32 0.0, %v3511
      %v3513 = vpop.f32.mrf.mxu0
      %v3514 = vadd.f32 0.0, %v3513
      %3515 = vdwg.mxu0
      %v3516 = vadd.f32 %v3418, %v3512
      %v3517 = vadd.f32 %v3420, %v3514
      %3518 = vrot.lane.b32.xlu0 %v3244, 112
      %v3519 = vpop.permute.xlu0 %3518
      %3520 = vrot.lane.b32.xlu0 %v3245, 112
      %v3521 = vpop.permute.xlu0 %3520
      %3522 = vrot.lane.b32.xlu0 %v3249, 112
      %v3523 = vpop.permute.xlu0 %3522
      %v3524 = vsel %vm764, %v3519, %v3521
      %v3525 = vsel %vm764, %v3521, %v3523
      %v3528 = vsel %vm411, %v3524, 0.0
      %v3529 = vsel %vm412, %v3525, 0.0
      %s3530 = scalar_lea.vmem %s7, 12
      %v3531 = vld [vmem:[%s3530] sm:$0x7]
      %v3533 = vsel %vm3263, %v3531, 0
      %v3536 = vsel %vm456, %v3528, 0
      %v3539 = vsel %vm456, %v3529, 0
      %3541 = vmatprep.subr.mxu0 0.0
      %3542 = vmatpush1.msra.mxu0 0.0
      %3543 = vmatprep.subr.mxu0 0.0
      %3544 = vmatpush1.msra.mxu0 0.0
      %3545 = vmatprep.subr.mxu0 0.0
      %3546 = vmatpush1.msra.mxu0 0.0
      %3547 = vmatprep.subr.mxu0 0.0
      %3548 = vmatpush1.msra.mxu0 0.0
      %3549 = vmatprep.subr.mxu0 0.0
      %3550 = vmatpush1.msra.mxu0 0.0
      %3551 = vmatprep.subr.mxu0 0.0
      %3552 = vmatpush1.msra.mxu0 0.0
      %3553 = vmatprep.subr.mxu0 0.0
      %3554 = vmatpush1.msra.mxu0 0.0
      %3555 = vmatprep.subr.mxu0 0.0
      %3556 = vmatpush1.msra.mxu0 0.0
      %3557 = vmatprep.subr.mxu0 0.0
      %3558 = vmatpush1.msra.mxu0 0.0
      %3559 = vmatprep.subr.mxu0 0.0
      %3560 = vmatpush1.msra.mxu0 0.0
      %3561 = vmatprep.subr.mxu0 0.0
      %3562 = vmatpush1.msra.mxu0 0.0
      %3563 = vmatprep.subr.mxu0 0.0
      %3564 = vmatpush1.msra.mxu0 0.0
      %3565 = vmatprep.subr.mxu0 0.0
      %3566 = vmatpush1.msra.mxu0 0.0
      %3567 = vmatprep.subr.mxu0 0.0
      %3568 = vmatpush1.msra.mxu0 0.0
      %3569 = vmatprep.subr.mxu0 0.0
      %3570 = vmatpush1.msra.mxu0 0.0
      %3571 = vmatprep.subr.mxu0 %v3539
      %3572 = vmatpush1.msra.mxu0 %v3536
      %3573 = vmatprep.subr.mxu0 0.0
      %3574 = vmatpush2.msra.mxu0 0.0
      %3575 = vmatprep.subr.mxu0 0.0
      %3576 = vmatpush2.msra.mxu0 0.0
      %3577 = vmatprep.subr.mxu0 0.0
      %3578 = vmatpush2.msra.mxu0 0.0
      %3579 = vmatprep.subr.mxu0 0.0
      %3580 = vmatpush2.msra.mxu0 0.0
      %3581 = vmatprep.subr.mxu0 0.0
      %3582 = vmatpush2.msra.mxu0 0.0
      %3583 = vmatprep.subr.mxu0 0.0
      %3584 = vmatpush2.msra.mxu0 0.0
      %3585 = vmatprep.subr.mxu0 0.0
      %3586 = vmatpush2.msra.mxu0 0.0
      %3587 = vmatprep.subr.mxu0 0.0
      %3588 = vmatpush2.msra.mxu0 0.0
      %3589 = vmatprep.subr.mxu0 0.0
      %3590 = vmatpush2.msra.mxu0 0.0
      %3591 = vmatprep.subr.mxu0 0.0
      %3592 = vmatpush2.msra.mxu0 0.0
      %3593 = vmatprep.subr.mxu0 0.0
      %3594 = vmatpush2.msra.mxu0 0.0
      %3595 = vmatprep.subr.mxu0 0.0
      %3596 = vmatpush2.msra.mxu0 0.0
      %3597 = vmatprep.subr.mxu0 0.0
      %3598 = vmatpush2.msra.mxu0 0.0
      %3599 = vmatprep.subr.mxu0 0.0
      %3600 = vmatpush2.msra.mxu0 0.0
      %3601 = vmatprep.subr.mxu0 0.0
      %3602 = vmatpush2.msra.mxu0 0.0
      %3603 = vmatprep.subr.mxu0 0.0
      %3604 = vmatpush2.msra.mxu0 0.0
      %3605 = vmatprep.mubr.f32.mxu0 0.0
      %3606 = vmatmul.mubr.f32.gmra.mxu0 %v3533
      %v3607 = vpop.f32.mrf.mxu0
      %v3608 = vadd.f32 0.0, %v3607
      %v3609 = vpop.f32.mrf.mxu0
      %v3610 = vadd.f32 0.0, %v3609
      %3611 = vdwg.mxu0
      %v3612 = vadd.f32 %v3516, %v3608
      %v3613 = vadd.f32 %v3517, %v3610
      %s3614 = scalar_lea.vmem %s7, 16
      %v3615 = vld [vmem:[%s3614] sm:$0x7]
      %3616 = vrot.lane.b32.xlu0 %v3244, 111
      %v3617 = vpop.permute.xlu0 %3616
      %3618 = vrot.lane.b32.xlu0 %v3245, 111
      %v3619 = vpop.permute.xlu0 %3618
      %3620 = vrot.lane.b32.xlu0 %v3249, 111
      %v3621 = vpop.permute.xlu0 %3620
      %v3622 = vsel %vm888, %v3617, %v3619
      %v3623 = vsel %vm888, %v3619, %v3621
      %v3625 = vsel %vm3263, %v3615, 0
      %v3627 = vsel %vm456, %v3622, 0
      %v3629 = vsel %vm456, %v3623, 0
      %3631 = vmatprep.subr.mxu0 0.0
      %3632 = vmatpush1.msra.mxu0 0.0
      %3633 = vmatprep.subr.mxu0 0.0
      %3634 = vmatpush1.msra.mxu0 0.0
      %3635 = vmatprep.subr.mxu0 0.0
      %3636 = vmatpush1.msra.mxu0 0.0
      %3637 = vmatprep.subr.mxu0 0.0
      %3638 = vmatpush1.msra.mxu0 0.0
      %3639 = vmatprep.subr.mxu0 0.0
      %3640 = vmatpush1.msra.mxu0 0.0
      %3641 = vmatprep.subr.mxu0 0.0
      %3642 = vmatpush1.msra.mxu0 0.0
      %3643 = vmatprep.subr.mxu0 0.0
      %3644 = vmatpush1.msra.mxu0 0.0
      %3645 = vmatprep.subr.mxu0 0.0
      %3646 = vmatpush1.msra.mxu0 0.0
      %3647 = vmatprep.subr.mxu0 0.0
      %3648 = vmatpush1.msra.mxu0 0.0
      %3649 = vmatprep.subr.mxu0 0.0
      %3650 = vmatpush1.msra.mxu0 0.0
      %3651 = vmatprep.subr.mxu0 0.0
      %3652 = vmatpush1.msra.mxu0 0.0
      %3653 = vmatprep.subr.mxu0 0.0
      %3654 = vmatpush1.msra.mxu0 0.0
      %3655 = vmatprep.subr.mxu0 0.0
      %3656 = vmatpush1.msra.mxu0 0.0
      %3657 = vmatprep.subr.mxu0 0.0
      %3658 = vmatpush1.msra.mxu0 0.0
      %3659 = vmatprep.subr.mxu0 0.0
      %3660 = vmatpush1.msra.mxu0 0.0
      %3661 = vmatprep.subr.mxu0 %v3629
      %3662 = vmatpush1.msra.mxu0 %v3627
      %3663 = vmatprep.subr.mxu0 0.0
      %3664 = vmatpush2.msra.mxu0 0.0
      %3665 = vmatprep.subr.mxu0 0.0
      %3666 = vmatpush2.msra.mxu0 0.0
      %3667 = vmatprep.subr.mxu0 0.0
      %3668 = vmatpush2.msra.mxu0 0.0
      %3669 = vmatprep.subr.mxu0 0.0
      %3670 = vmatpush2.msra.mxu0 0.0
      %3671 = vmatprep.subr.mxu0 0.0
      %3672 = vmatpush2.msra.mxu0 0.0
      %3673 = vmatprep.subr.mxu0 0.0
      %3674 = vmatpush2.msra.mxu0 0.0
      %3675 = vmatprep.subr.mxu0 0.0
      %3676 = vmatpush2.msra.mxu0 0.0
      %3677 = vmatprep.subr.mxu0 0.0
      %3678 = vmatpush2.msra.mxu0 0.0
      %3679 = vmatprep.subr.mxu0 0.0
      %3680 = vmatpush2.msra.mxu0 0.0
      %3681 = vmatprep.subr.mxu0 0.0
      %3682 = vmatpush2.msra.mxu0 0.0
      %3683 = vmatprep.subr.mxu0 0.0
      %3684 = vmatpush2.msra.mxu0 0.0
      %3685 = vmatprep.subr.mxu0 0.0
      %3686 = vmatpush2.msra.mxu0 0.0
      %3687 = vmatprep.subr.mxu0 0.0
      %3688 = vmatpush2.msra.mxu0 0.0
      %3689 = vmatprep.subr.mxu0 0.0
      %3690 = vmatpush2.msra.mxu0 0.0
      %3691 = vmatprep.subr.mxu0 0.0
      %3692 = vmatpush2.msra.mxu0 0.0
      %3693 = vmatprep.subr.mxu0 0.0
      %3694 = vmatpush2.msra.mxu0 0.0
      %3695 = vmatprep.mubr.f32.mxu0 0.0
      %3696 = vmatmul.mubr.f32.gmra.mxu0 %v3625
      %v3697 = vpop.f32.mrf.mxu0
      %v3698 = vadd.f32 0.0, %v3697
      %v3699 = vpop.f32.mrf.mxu0
      %v3700 = vadd.f32 0.0, %v3699
      %3701 = vdwg.mxu0
      %v3702 = vadd.f32 %v3612, %v3698
      %v3703 = vadd.f32 %v3613, %v3700
      %3704 = vrot.lane.b32.xlu0 %v3244, 110
      %v3705 = vpop.permute.xlu0 %3704
      %3706 = vrot.lane.b32.xlu0 %v3245, 110
      %v3707 = vpop.permute.xlu0 %3706
      %3708 = vrot.lane.b32.xlu0 %v3249, 110
      %v3709 = vpop.permute.xlu0 %3708
      %v3710 = vsel %vm998, %v3705, %v3707
      %v3711 = vsel %vm998, %v3707, %v3709
      %v3714 = vsel %vm629, %v3710, 0.0
      %v3715 = vsel %vm630, %v3711, 0.0
      %s3716 = scalar_lea.vmem %s7, 20
      %v3717 = vld [vmem:[%s3716] sm:$0x7]
      %v3719 = vsel %vm3263, %v3717, 0
      %v3722 = vsel %vm456, %v3714, 0
      %v3725 = vsel %vm456, %v3715, 0
      %3727 = vmatprep.subr.mxu0 0.0
      %3728 = vmatpush1.msra.mxu0 0.0
      %3729 = vmatprep.subr.mxu0 0.0
      %3730 = vmatpush1.msra.mxu0 0.0
      %3731 = vmatprep.subr.mxu0 0.0
      %3732 = vmatpush1.msra.mxu0 0.0
      %3733 = vmatprep.subr.mxu0 0.0
      %3734 = vmatpush1.msra.mxu0 0.0
      %3735 = vmatprep.subr.mxu0 0.0
      %3736 = vmatpush1.msra.mxu0 0.0
      %3737 = vmatprep.subr.mxu0 0.0
      %3738 = vmatpush1.msra.mxu0 0.0
      %3739 = vmatprep.subr.mxu0 0.0
      %3740 = vmatpush1.msra.mxu0 0.0
      %3741 = vmatprep.subr.mxu0 0.0
      %3742 = vmatpush1.msra.mxu0 0.0
      %3743 = vmatprep.subr.mxu0 0.0
      %3744 = vmatpush1.msra.mxu0 0.0
      %3745 = vmatprep.subr.mxu0 0.0
      %3746 = vmatpush1.msra.mxu0 0.0
      %3747 = vmatprep.subr.mxu0 0.0
      %3748 = vmatpush1.msra.mxu0 0.0
      %3749 = vmatprep.subr.mxu0 0.0
      %3750 = vmatpush1.msra.mxu0 0.0
      %3751 = vmatprep.subr.mxu0 0.0
      %3752 = vmatpush1.msra.mxu0 0.0
      %3753 = vmatprep.subr.mxu0 0.0
      %3754 = vmatpush1.msra.mxu0 0.0
      %3755 = vmatprep.subr.mxu0 0.0
      %3756 = vmatpush1.msra.mxu0 0.0
      %3757 = vmatprep.subr.mxu0 %v3725
      %3758 = vmatpush1.msra.mxu0 %v3722
      %3759 = vmatprep.subr.mxu0 0.0
      %3760 = vmatpush2.msra.mxu0 0.0
      %3761 = vmatprep.subr.mxu0 0.0
      %3762 = vmatpush2.msra.mxu0 0.0
      %3763 = vmatprep.subr.mxu0 0.0
      %3764 = vmatpush2.msra.mxu0 0.0
      %3765 = vmatprep.subr.mxu0 0.0
      %3766 = vmatpush2.msra.mxu0 0.0
      %3767 = vmatprep.subr.mxu0 0.0
      %3768 = vmatpush2.msra.mxu0 0.0
      %3769 = vmatprep.subr.mxu0 0.0
      %3770 = vmatpush2.msra.mxu0 0.0
      %3771 = vmatprep.subr.mxu0 0.0
      %3772 = vmatpush2.msra.mxu0 0.0
      %3773 = vmatprep.subr.mxu0 0.0
      %3774 = vmatpush2.msra.mxu0 0.0
      %3775 = vmatprep.subr.mxu0 0.0
      %3776 = vmatpush2.msra.mxu0 0.0
      %3777 = vmatprep.subr.mxu0 0.0
      %3778 = vmatpush2.msra.mxu0 0.0
      %3779 = vmatprep.subr.mxu0 0.0
      %3780 = vmatpush2.msra.mxu0 0.0
      %3781 = vmatprep.subr.mxu0 0.0
      %3782 = vmatpush2.msra.mxu0 0.0
      %3783 = vmatprep.subr.mxu0 0.0
      %3784 = vmatpush2.msra.mxu0 0.0
      %3785 = vmatprep.subr.mxu0 0.0
      %3786 = vmatpush2.msra.mxu0 0.0
      %3787 = vmatprep.subr.mxu0 0.0
      %3788 = vmatpush2.msra.mxu0 0.0
      %3789 = vmatprep.subr.mxu0 0.0
      %3790 = vmatpush2.msra.mxu0 0.0
      %3791 = vmatprep.mubr.f32.mxu0 0.0
      %3792 = vmatmul.mubr.f32.gmra.mxu0 %v3719
      %v3793 = vpop.f32.mrf.mxu0
      %v3794 = vadd.f32 0.0, %v3793
      %v3795 = vpop.f32.mrf.mxu0
      %v3796 = vadd.f32 0.0, %v3795
      %3797 = vdwg.mxu0
      %v3798 = vadd.f32 %v3702, %v3794
      %v3799 = vadd.f32 %v3703, %v3796
      %3800 = vrot.lane.b32.xlu0 %v3244, 96
      %v3801 = vpop.permute.xlu0 %3800
      %3802 = vrot.lane.b32.xlu0 %v3245, 96
      %v3803 = vpop.permute.xlu0 %3802
      %3804 = vrot.lane.b32.xlu0 %v3249, 96
      %v3805 = vpop.permute.xlu0 %3804
      %v3806 = vsel %vm1119, %v3801, %v3803
      %v3807 = vsel %vm1119, %v3803, %v3805
      %v3810 = vsel %vm411, %v3806, 0.0
      %v3811 = vsel %vm412, %v3807, 0.0
      %s3812 = scalar_lea.vmem %s7, 24
      %v3813 = vld [vmem:[%s3812] sm:$0x7]
      %v3815 = vsel %vm3263, %v3813, 0
      %v3818 = vsel %vm456, %v3810, 0
      %v3821 = vsel %vm456, %v3811, 0
      %3823 = vmatprep.subr.mxu0 0.0
      %3824 = vmatpush1.msra.mxu0 0.0
      %3825 = vmatprep.subr.mxu0 0.0
      %3826 = vmatpush1.msra.mxu0 0.0
      %3827 = vmatprep.subr.mxu0 0.0
      %3828 = vmatpush1.msra.mxu0 0.0
      %3829 = vmatprep.subr.mxu0 0.0
      %3830 = vmatpush1.msra.mxu0 0.0
      %3831 = vmatprep.subr.mxu0 0.0
      %3832 = vmatpush1.msra.mxu0 0.0
      %3833 = vmatprep.subr.mxu0 0.0
      %3834 = vmatpush1.msra.mxu0 0.0
      %3835 = vmatprep.subr.mxu0 0.0
      %3836 = vmatpush1.msra.mxu0 0.0
      %3837 = vmatprep.subr.mxu0 0.0
      %3838 = vmatpush1.msra.mxu0 0.0
      %3839 = vmatprep.subr.mxu0 0.0
      %3840 = vmatpush1.msra.mxu0 0.0
      %3841 = vmatprep.subr.mxu0 0.0
      %3842 = vmatpush1.msra.mxu0 0.0
      %3843 = vmatprep.subr.mxu0 0.0
      %3844 = vmatpush1.msra.mxu0 0.0
      %3845 = vmatprep.subr.mxu0 0.0
      %3846 = vmatpush1.msra.mxu0 0.0
      %3847 = vmatprep.subr.mxu0 0.0
      %3848 = vmatpush1.msra.mxu0 0.0
      %3849 = vmatprep.subr.mxu0 0.0
      %3850 = vmatpush1.msra.mxu0 0.0
      %3851 = vmatprep.subr.mxu0 0.0
      %3852 = vmatpush1.msra.mxu0 0.0
      %3853 = vmatprep.subr.mxu0 %v3821
      %3854 = vmatpush1.msra.mxu0 %v3818
      %3855 = vmatprep.subr.mxu0 0.0
      %3856 = vmatpush2.msra.mxu0 0.0
      %3857 = vmatprep.subr.mxu0 0.0
      %3858 = vmatpush2.msra.mxu0 0.0
      %3859 = vmatprep.subr.mxu0 0.0
      %3860 = vmatpush2.msra.mxu0 0.0
      %3861 = vmatprep.subr.mxu0 0.0
      %3862 = vmatpush2.msra.mxu0 0.0
      %3863 = vmatprep.subr.mxu0 0.0
      %3864 = vmatpush2.msra.mxu0 0.0
      %3865 = vmatprep.subr.mxu0 0.0
      %3866 = vmatpush2.msra.mxu0 0.0
      %3867 = vmatprep.subr.mxu0 0.0
      %3868 = vmatpush2.msra.mxu0 0.0
      %3869 = vmatprep.subr.mxu0 0.0
      %3870 = vmatpush2.msra.mxu0 0.0
      %3871 = vmatprep.subr.mxu0 0.0
      %3872 = vmatpush2.msra.mxu0 0.0
      %3873 = vmatprep.subr.mxu0 0.0
      %3874 = vmatpush2.msra.mxu0 0.0
      %3875 = vmatprep.subr.mxu0 0.0
      %3876 = vmatpush2.msra.mxu0 0.0
      %3877 = vmatprep.subr.mxu0 0.0
      %3878 = vmatpush2.msra.mxu0 0.0
      %3879 = vmatprep.subr.mxu0 0.0
      %3880 = vmatpush2.msra.mxu0 0.0
      %3881 = vmatprep.subr.mxu0 0.0
      %3882 = vmatpush2.msra.mxu0 0.0
      %3883 = vmatprep.subr.mxu0 0.0
      %3884 = vmatpush2.msra.mxu0 0.0
      %3885 = vmatprep.subr.mxu0 0.0
      %3886 = vmatpush2.msra.mxu0 0.0
      %3887 = vmatprep.mubr.f32.mxu0 0.0
      %3888 = vmatmul.mubr.f32.gmra.mxu0 %v3815
      %v3889 = vpop.f32.mrf.mxu0
      %v3890 = vadd.f32 0.0, %v3889
      %v3891 = vpop.f32.mrf.mxu0
      %v3892 = vadd.f32 0.0, %v3891
      %3893 = vdwg.mxu0
      %v3894 = vadd.f32 %v3798, %v3890
      %v3895 = vadd.f32 %v3799, %v3892
      %s3896 = scalar_lea.vmem %s7, 28
      %v3897 = vld [vmem:[%s3896] sm:$0x7]
      %3898 = vrot.lane.b32.xlu0 %v3244, 95
      %v3899 = vpop.permute.xlu0 %3898
      %3900 = vrot.lane.b32.xlu0 %v3245, 95
      %v3901 = vpop.permute.xlu0 %3900
      %3902 = vrot.lane.b32.xlu0 %v3249, 95
      %v3903 = vpop.permute.xlu0 %3902
      %v3904 = vsel %vm1243, %v3899, %v3901
      %v3905 = vsel %vm1243, %v3901, %v3903
      %v3907 = vsel %vm3263, %v3897, 0
      %v3909 = vsel %vm456, %v3904, 0
      %v3911 = vsel %vm456, %v3905, 0
      %3913 = vmatprep.subr.mxu0 0.0
      %3914 = vmatpush1.msra.mxu0 0.0
      %3915 = vmatprep.subr.mxu0 0.0
      %3916 = vmatpush1.msra.mxu0 0.0
      %3917 = vmatprep.subr.mxu0 0.0
      %3918 = vmatpush1.msra.mxu0 0.0
      %3919 = vmatprep.subr.mxu0 0.0
      %3920 = vmatpush1.msra.mxu0 0.0
      %3921 = vmatprep.subr.mxu0 0.0
      %3922 = vmatpush1.msra.mxu0 0.0
      %3923 = vmatprep.subr.mxu0 0.0
      %3924 = vmatpush1.msra.mxu0 0.0
      %3925 = vmatprep.subr.mxu0 0.0
      %3926 = vmatpush1.msra.mxu0 0.0
      %3927 = vmatprep.subr.mxu0 0.0
      %3928 = vmatpush1.msra.mxu0 0.0
      %3929 = vmatprep.subr.mxu0 0.0
      %3930 = vmatpush1.msra.mxu0 0.0
      %3931 = vmatprep.subr.mxu0 0.0
      %3932 = vmatpush1.msra.mxu0 0.0
      %3933 = vmatprep.subr.mxu0 0.0
      %3934 = vmatpush1.msra.mxu0 0.0
      %3935 = vmatprep.subr.mxu0 0.0
      %3936 = vmatpush1.msra.mxu0 0.0
      %3937 = vmatprep.subr.mxu0 0.0
      %3938 = vmatpush1.msra.mxu0 0.0
      %3939 = vmatprep.subr.mxu0 0.0
      %3940 = vmatpush1.msra.mxu0 0.0
      %3941 = vmatprep.subr.mxu0 0.0
      %3942 = vmatpush1.msra.mxu0 0.0
      %3943 = vmatprep.subr.mxu0 %v3911
      %3944 = vmatpush1.msra.mxu0 %v3909
      %3945 = vmatprep.subr.mxu0 0.0
      %3946 = vmatpush2.msra.mxu0 0.0
      %3947 = vmatprep.subr.mxu0 0.0
      %3948 = vmatpush2.msra.mxu0 0.0
      %3949 = vmatprep.subr.mxu0 0.0
      %3950 = vmatpush2.msra.mxu0 0.0
      %3951 = vmatprep.subr.mxu0 0.0
      %3952 = vmatpush2.msra.mxu0 0.0
      %3953 = vmatprep.subr.mxu0 0.0
      %3954 = vmatpush2.msra.mxu0 0.0
      %3955 = vmatprep.subr.mxu0 0.0
      %3956 = vmatpush2.msra.mxu0 0.0
      %3957 = vmatprep.subr.mxu0 0.0
      %3958 = vmatpush2.msra.mxu0 0.0
      %3959 = vmatprep.subr.mxu0 0.0
      %3960 = vmatpush2.msra.mxu0 0.0
      %3961 = vmatprep.subr.mxu0 0.0
      %3962 = vmatpush2.msra.mxu0 0.0
      %3963 = vmatprep.subr.mxu0 0.0
      %3964 = vmatpush2.msra.mxu0 0.0
      %3965 = vmatprep.subr.mxu0 0.0
      %3966 = vmatpush2.msra.mxu0 0.0
      %3967 = vmatprep.subr.mxu0 0.0
      %3968 = vmatpush2.msra.mxu0 0.0
      %3969 = vmatprep.subr.mxu0 0.0
      %3970 = vmatpush2.msra.mxu0 0.0
      %3971 = vmatprep.subr.mxu0 0.0
      %3972 = vmatpush2.msra.mxu0 0.0
      %3973 = vmatprep.subr.mxu0 0.0
      %3974 = vmatpush2.msra.mxu0 0.0
      %3975 = vmatprep.subr.mxu0 0.0
      %3976 = vmatpush2.msra.mxu0 0.0
      %3977 = vmatprep.mubr.f32.mxu0 0.0
      %3978 = vmatmul.mubr.f32.gmra.mxu0 %v3907
      %v3979 = vpop.f32.mrf.mxu0
      %v3980 = vadd.f32 0.0, %v3979
      %v3981 = vpop.f32.mrf.mxu0
      %v3982 = vadd.f32 0.0, %v3981
      %3983 = vdwg.mxu0
      %v3984 = vadd.f32 %v3894, %v3980
      %v3985 = vadd.f32 %v3895, %v3982
      %3986 = vrot.lane.b32.xlu0 %v3244, 94
      %v3987 = vpop.permute.xlu0 %3986
      %3988 = vrot.lane.b32.xlu0 %v3245, 94
      %v3989 = vpop.permute.xlu0 %3988
      %3990 = vrot.lane.b32.xlu0 %v3249, 94
      %v3991 = vpop.permute.xlu0 %3990
      %v3992 = vsel %vm1353, %v3987, %v3989
      %v3993 = vsel %vm1353, %v3989, %v3991
      %v3996 = vsel %vm629, %v3992, 0.0
      %v3997 = vsel %vm630, %v3993, 0.0
      %s3998 = scalar_lea.vmem %s7, 32
      %v3999 = vld [vmem:[%s3998] sm:$0x7]
      %v4001 = vsel %vm3263, %v3999, 0
      %v4004 = vsel %vm456, %v3996, 0
      %v4007 = vsel %vm456, %v3997, 0
      %4009 = vmatprep.subr.mxu0 0.0
      %4010 = vmatpush1.msra.mxu0 0.0
      %4011 = vmatprep.subr.mxu0 0.0
      %4012 = vmatpush1.msra.mxu0 0.0
      %4013 = vmatprep.subr.mxu0 0.0
      %4014 = vmatpush1.msra.mxu0 0.0
      %4015 = vmatprep.subr.mxu0 0.0
      %4016 = vmatpush1.msra.mxu0 0.0
      %4017 = vmatprep.subr.mxu0 0.0
      %4018 = vmatpush1.msra.mxu0 0.0
      %4019 = vmatprep.subr.mxu0 0.0
      %4020 = vmatpush1.msra.mxu0 0.0
      %4021 = vmatprep.subr.mxu0 0.0
      %4022 = vmatpush1.msra.mxu0 0.0
      %4023 = vmatprep.subr.mxu0 0.0
      %4024 = vmatpush1.msra.mxu0 0.0
      %4025 = vmatprep.subr.mxu0 0.0
      %4026 = vmatpush1.msra.mxu0 0.0
      %4027 = vmatprep.subr.mxu0 0.0
      %4028 = vmatpush1.msra.mxu0 0.0
      %4029 = vmatprep.subr.mxu0 0.0
      %4030 = vmatpush1.msra.mxu0 0.0
      %4031 = vmatprep.subr.mxu0 0.0
      %4032 = vmatpush1.msra.mxu0 0.0
      %4033 = vmatprep.subr.mxu0 0.0
      %4034 = vmatpush1.msra.mxu0 0.0
      %4035 = vmatprep.subr.mxu0 0.0
      %4036 = vmatpush1.msra.mxu0 0.0
      %4037 = vmatprep.subr.mxu0 0.0
      %4038 = vmatpush1.msra.mxu0 0.0
      %4039 = vmatprep.subr.mxu0 %v4007
      %4040 = vmatpush1.msra.mxu0 %v4004
      %4041 = vmatprep.subr.mxu0 0.0
      %4042 = vmatpush2.msra.mxu0 0.0
      %4043 = vmatprep.subr.mxu0 0.0
      %4044 = vmatpush2.msra.mxu0 0.0
      %4045 = vmatprep.subr.mxu0 0.0
      %4046 = vmatpush2.msra.mxu0 0.0
      %4047 = vmatprep.subr.mxu0 0.0
      %4048 = vmatpush2.msra.mxu0 0.0
      %4049 = vmatprep.subr.mxu0 0.0
      %4050 = vmatpush2.msra.mxu0 0.0
      %4051 = vmatprep.subr.mxu0 0.0
      %4052 = vmatpush2.msra.mxu0 0.0
      %4053 = vmatprep.subr.mxu0 0.0
      %4054 = vmatpush2.msra.mxu0 0.0
      %4055 = vmatprep.subr.mxu0 0.0
      %4056 = vmatpush2.msra.mxu0 0.0
      %4057 = vmatprep.subr.mxu0 0.0
      %4058 = vmatpush2.msra.mxu0 0.0
      %4059 = vmatprep.subr.mxu0 0.0
      %4060 = vmatpush2.msra.mxu0 0.0
      %4061 = vmatprep.subr.mxu0 0.0
      %4062 = vmatpush2.msra.mxu0 0.0
      %4063 = vmatprep.subr.mxu0 0.0
      %4064 = vmatpush2.msra.mxu0 0.0
      %4065 = vmatprep.subr.mxu0 0.0
      %4066 = vmatpush2.msra.mxu0 0.0
      %4067 = vmatprep.subr.mxu0 0.0
      %4068 = vmatpush2.msra.mxu0 0.0
      %4069 = vmatprep.subr.mxu0 0.0
      %4070 = vmatpush2.msra.mxu0 0.0
      %4071 = vmatprep.subr.mxu0 0.0
      %4072 = vmatpush2.msra.mxu0 0.0
      %4073 = vmatprep.mubr.f32.mxu0 0.0
      %4074 = vmatmul.mubr.f32.gmra.mxu0 %v4001
      %v4075 = vpop.f32.mrf.mxu0
      %v4076 = vadd.f32 0.0, %v4075
      %v4077 = vpop.f32.mrf.mxu0
      %v4078 = vadd.f32 0.0, %v4077
      %4079 = vdwg.mxu0
      %v4080 = vadd.f32 %v3984, %v4076
      %v4081 = vadd.f32 %v3985, %v4078
      %v4082 = vld [vmem:[%s8] sm:$0x7]
      %4084 = vset.pattern.permute.xlu0 0
      %4085 = vperm.xlu0 %4084, %v4082
      %v4086 = vpop.permute.xlu0 %4085
      %v4088 = vadd.f32 %v4080, %v4086
      %v4089 = vadd.f32 %v4081, %v4086
      %v4092 = vcombine.low %v4088, %v4089
      %4094 = vst [vmem:[%s332] sm:$0x77] %v4092
      %p4095 = scmp.lt.s32.totalorder %s20, 1
      %s4096 = scalar_select %p4095, %s20, 1
      %s4097 = smul.addr %s4096, 2
      %s4098 = smul.addr %s4097, 4
      %s4099 = scalar_lea.vmem %s9, %s4098
      // Predicated region
      $region57: #{tpu_custom_call.1} parent=55 // pred_check
        %p4100 = pneg %p232
      $region58: #{tpu_custom_call.1} parent=55 // pred_check_branch
        %4102 = sbr.rel (%p4100) target = $region60
      $region59: #{tpu_custom_call.1} parent=55 // pred_region
        _
      $region60: #{tpu_custom_call.1} parent=55 // pred_fallthru
        _
    $region56: #{tpu_custom_call.1} parent=5 // pred_fallthru
      _
    %p4103 = scmp.le.s32.totalorder 2, %s15
    // Predicated region
    $region61: #{tpu_custom_call.1} parent=5 // pred_check
      %p4104 = pneg %p4103
    $region62: #{tpu_custom_call.1} parent=5 // pred_check_branch
      %4106 = sbr.rel (%p4104) target = $region64
    $region63: #{tpu_custom_call.1} parent=5 // pred_region
      %s4107 = ssub.s32 %s15, 2
      // Predicated region
      $region65: #{tpu_custom_call.1} parent=63 // pred_check
        %p4108 = pneg %p238
      $region66: #{tpu_custom_call.1} parent=63 // pred_check_branch
        %4110 = sbr.rel (%p4108) target = $region68
      $region67: #{tpu_custom_call.1} parent=63 // pred_region
        %p4111 = scmp.lt.s32.totalorder %s21, 1
        %s4112 = scalar_select %p4111, %s21, 1
        %s4113 = smul.addr %s4112, 2
        %s4114 = smul.addr %s4113, 4
        %s4115 = scalar_lea.vmem %s9, %s4114
      $region68: #{tpu_custom_call.1} parent=63 // pred_fallthru
        _
    $region64: #{tpu_custom_call.1} parent=5 // pred_fallthru
      _
  $region6: #{tpu_custom_call.1} parent=0 // loop_footer
    %s19 = sadd.s32 1, %s15
  $region7: #{tpu_custom_call.1} parent=0 // loop_footer_branch
    %14 = sbr.rel target = $region3
  $region8: #{tpu_custom_call.1} parent=0 // loop_exit
    _

</llo_original>
